<compile_context>
chip_gen: v5e
topology: v5e:2x2
jax: 0.10.0
libtpu: 0.0.40
codegen_flags: <defaults>
</compile_context>

<pallas_src>
import functools

import jax
import jax.numpy as jnp
from jax import lax
from jax.experimental import pallas as pl
from jax.experimental.pallas import tpu as pltpu

EPS = 1e-5  # PyTorch BatchNorm2d default eps

# VMEM limit: derive from hardware when possible; fall back to the smallest
# per-core VMEM across supported chips (v7x: 64 MiB).
try:
    _VMEM_CAP = int(pltpu.get_tpu_info().vmem_capacity_bytes)
except Exception:
    _VMEM_CAP = 64 * 1024 * 1024
_VMEM_LIMIT = max(32 * 1024 * 1024, min((_VMEM_CAP * 3) // 4, 96 * 1024 * 1024))


# --------------------------------------------------------------------------
# Fused Conv3x3 + BatchNorm + ReLU (+ optional fused 2x2 MaxPool) kernel
# --------------------------------------------------------------------------

def _conv3x3_bn_relu_kernel(x_ref, w_ref, scale_ref, shift_ref, o_ref,
                            xpad_ref, acc_ref,
                            *, H, W, R, mid_rows, pool, ceil_mode, Wo):
    # x_ref    : (1, H, W, Cin)  bf16 full image (resident across row tiles)
    # w_ref    : (3, 3, Cin, Cout) bf16
    # scale_ref, shift_ref : (1, Cout) f32 (folded BN + conv bias)
    # o_ref    : (1, tro, Wo, Cout)   (tro = R if not pool else R // 2)
    # xpad_ref : (R+2, W+2, Cin) bf16 scratch: zero-padded rows for this tile
    # acc_ref  : (R*W, Cout)     f32 scratch accumulator
    t = pl.program_id(1)
    Cin = x_ref.shape[3]
    Cout = o_ref.shape[3]

    # ---- Build the zero-padded halo tile in VMEM (no HBM pad round trip). --
    xpad_ref[...] = jnp.zeros_like(xpad_ref)
    row0 = t * R
    xpad_ref[1:1 + mid_rows, 1:1 + W, :] = x_ref[0, pl.ds(row0, mid_rows), :, :]

    @pl.when(t > 0)
    def _():  # top halo row
        xpad_ref[0:1, 1:1 + W, :] = x_ref[0, pl.ds(row0 - 1, 1), :, :]

    @pl.when(row0 + R < H)
    def _():  # bottom halo row
        xpad_ref[1 + R:2 + R, 1:1 + W, :] = x_ref[0, pl.ds(row0 + R, 1), :, :]

    # ---- 9-tap conv: shifted bf16 MXU matmuls -> f32 VMEM accumulator. ----
    first = True
    for dy in range(3):
        for dx in range(3):
            patch = xpad_ref[dy:dy + R, dx:dx + W, :].reshape(R * W, Cin)
            contrib = jnp.dot(patch, w_ref[dy, dx],
                              preferred_element_type=jnp.float32)
            if first:
                acc_ref[...] = contrib
                first = False
            else:
                acc_ref[...] += contrib

    # ---- Folded-BN + ReLU epilogue in f32. --------------------------------
    y = acc_ref[...] * scale_ref[0][None, :] + shift_ref[0][None, :]
    y = jnp.maximum(y, 0.0)

    if not pool:
        o_ref[...] = y.reshape(1, R, W, Cout).astype(o_ref.dtype)
    else:
        y = y.reshape(R, W, Cout)
        if ceil_mode and (H % 2 == 1):
            # mask phantom conv rows (past the real image) before the max;
            # zeros are safe because post-ReLU values are >= 0.
            ridx = row0 + lax.broadcasted_iota(jnp.int32, (R, 1, 1), 0)
            y = jnp.where(ridx < H, y, 0.0)
        if W > 2 * Wo:            # floor mode, odd W: drop last column
            y = y[:, :2 * Wo, :]
        elif W < 2 * Wo:          # ceil mode, odd W: append a zero column
            y = jnp.concatenate([y, jnp.zeros((R, 1, Cout), y.dtype)], axis=1)
        yw = jnp.max(y.reshape(R, Wo, 2, Cout), axis=2)
        yp = jnp.max(yw.reshape(R // 2, 2, Wo, Cout), axis=1)
        o_ref[...] = yp.reshape(1, R // 2, Wo, Cout).astype(o_ref.dtype)


def conv3x3_bn_relu(x, w, scale, shift, *, pool=False, ceil_mode=False,
                    out_dtype=jnp.bfloat16):
    """x: (N,H,W,Cin), w: (3,3,Cin,Cout), scale/shift: (Cout,).

    Returns conv+BN+ReLU output, optionally 2x2-max-pooled (floor/ceil mode).
    """
    N, H, W, Cin = x.shape
    Cout = w.shape[-1]

    # Pad tiny channel counts (first layer Cin=3) to a multiple of 8.
    if Cin % 8 != 0:
        pc = 8 - Cin % 8
        x = jnp.pad(x, ((0, 0), (0, 0), (0, 0), (0, pc)))
        w = jnp.pad(w, ((0, 0), (0, 0), (0, pc), (0, 0)))
        Cin += pc

    x = x.astype(jnp.bfloat16)
    w = w.astype(jnp.bfloat16)
    scale2 = scale.reshape(1, Cout).astype(jnp.float32)
    shift2 = shift.reshape(1, Cout).astype(jnp.float32)

    if pool:
        if ceil_mode:
            Ho, Wo = -(-H // 2), -(-W // 2)
        else:
            Ho, Wo = H // 2, W // 2
        rows_per_out = 2
    else:
        Ho, Wo = H, W
        rows_per_out = 1

    # Output-row tile: a divisor of Ho keeping the f32 accumulator <= ~2 MiB.
    if pool and ceil_mode and (H % 2 == 1):
        tro = Ho                  # single tile; phantom last row handled in-kernel
    else:
        budget = 2 * 1024 * 1024
        max_rows = max(1, budget // (W * Cout * 4 * rows_per_out))
        tro = 1
        for d in range(1, Ho + 1):
            if Ho % d == 0 and d <= max_rows:
                tro = d
    T = Ho // tro
    R = tro * rows_per_out        # conv rows computed per grid step
    mid_rows = min(R, H)

    kernel = functools.partial(
        _conv3x3_bn_relu_kernel,
        H=H, W=W, R=R, mid_rows=mid_rows, pool=pool, ceil_mode=ceil_mode, Wo=Wo)

    return pl.pallas_call(
        kernel,
        out_shape=jax.ShapeDtypeStruct((N, Ho, Wo, Cout), out_dtype),
        grid_spec=pltpu.PrefetchScalarGridSpec(
            num_scalar_prefetch=0,
            grid=(N, T),
            in_specs=[
                pl.BlockSpec((1, H, W, Cin), lambda n, t: (n, 0, 0, 0)),
                pl.BlockSpec((3, 3, Cin, Cout), lambda n, t: (0, 0, 0, 0)),
                pl.BlockSpec((1, Cout), lambda n, t: (0, 0)),
                pl.BlockSpec((1, Cout), lambda n, t: (0, 0)),
            ],
            out_specs=pl.BlockSpec((1, tro, Wo, Cout), lambda n, t: (n, t, 0, 0)),
            scratch_shapes=[
                pltpu.VMEM((R + 2, W + 2, Cin), jnp.bfloat16),   # padded tile
                pltpu.VMEM((R * W, Cout), jnp.float32),          # accumulator
            ],
        ),
        compiler_params=pltpu.CompilerParams(
            dimension_semantics=("parallel", "parallel"),
            vmem_limit_bytes=_VMEM_LIMIT,
        ),
    )(x, w, scale2, shift2)


# --------------------------------------------------------------------------
# Linear (+ optional ReLU) kernel, tiled over output columns
# --------------------------------------------------------------------------

def _linear_kernel(x_ref, w_ref, b_ref, o_ref, *, relu):
    # x_ref: (M, K) bf16, w_ref: (K, tn) bf16, b_ref: (1, tn) f32
    y = jnp.dot(x_ref[...], w_ref[...], preferred_element_type=jnp.float32)
    y = y + b_ref[0][None, :]
    if relu:
        y = jnp.maximum(y, 0.0)
    o_ref[...] = y.astype(o_ref.dtype)


def linear(x, w, b, *, relu=False, tn=512, out_dtype=jnp.bfloat16):
    """x: (M, K), w: (K, Nout), b: (Nout,). bf16 matmul, f32 accumulate."""
    M, K = x.shape
    Nout = w.shape[1]
    Npad = ((Nout + tn - 1) // tn) * tn
    if Npad != Nout:
        w = jnp.pad(w, ((0, 0), (0, Npad - Nout)))
        b = jnp.pad(b, (0, Npad - Nout))
    x = x.astype(jnp.bfloat16)
    w = w.astype(jnp.bfloat16)
    b2 = b.reshape(1, Npad).astype(jnp.float32)
    out = pl.pallas_call(
        functools.partial(_linear_kernel, relu=relu),
        out_shape=jax.ShapeDtypeStruct((M, Npad), out_dtype),
        grid_spec=pltpu.PrefetchScalarGridSpec(
            num_scalar_prefetch=0,
            grid=(Npad // tn,),
            in_specs=[
                pl.BlockSpec((M, K), lambda j: (0, 0)),
                pl.BlockSpec((K, tn), lambda j: (0, j)),
                pl.BlockSpec((1, tn), lambda j: (0, j)),
            ],
            out_specs=pl.BlockSpec((M, tn), lambda j: (0, j)),
        ),
        compiler_params=pltpu.CompilerParams(
            dimension_semantics=("parallel",),
            vmem_limit_bytes=_VMEM_LIMIT,
        ),
    )(x, w, b2)
    return out[:, :Nout]


# --------------------------------------------------------------------------
# Deterministic parameter initialization (synthetic, no checkpoints)
# --------------------------------------------------------------------------

def _init_conv_bn(key, cin, cout, pool, ceil_mode):
    kw, kb, kg, kbeta, km, kv = jax.random.split(key, 6)
    std = (2.0 / (9.0 * cin)) ** 0.5
    w = jax.random.normal(kw, (3, 3, cin, cout), jnp.float32) * std
    bias = 0.01 * jax.random.normal(kb, (cout,), jnp.float32)
    gamma = 1.0 + 0.1 * jax.random.normal(kg, (cout,), jnp.float32)
    beta = 0.01 * jax.random.normal(kbeta, (cout,), jnp.float32)
    running_mean = 0.01 * jax.random.normal(km, (cout,), jnp.float32)
    running_var = 1.0 + 0.1 * jax.random.uniform(kv, (cout,), jnp.float32)
    scale = gamma / jnp.sqrt(running_var + EPS)
    shift = (bias - running_mean) * scale + beta
    return {"w": w, "scale": scale, "shift": shift,
            "pool": pool, "ceil": ceil_mode}


def _init_linear(key, k, n):
    kw, kb = jax.random.split(key)
    std = (2.0 / k) ** 0.5
    w = jax.random.normal(kw, (k, n), jnp.float32) * std
    b = 0.01 * jax.random.normal(kb, (n,), jnp.float32)
    return {"w": w, "b": b}


def init_params(key, in_features=3, num_classes=1000):
    # (cin, cout, pool_after, ceil_mode) — pools are fused into the conv.
    trunk_cfg = [
        (in_features, 64, False, False),
        (64, 64, True, False),
        (64, 128, False, False),
        (128, 128, True, False),
        (128, 256, False, False),
        (256, 256, True, False),
        (256, 512, False, False),
    ]
    reconv_cfg = [
        (512, 512, False, False),
        (512, 512, True, True),     # MaxPool2d(2,2, ceil_mode=True)
    ]
    keys = jax.random.split(key, len(trunk_cfg) + len(reconv_cfg) + 3)
    ki = iter(range(len(keys)))

    conv2d = [_init_conv_bn(keys[next(ki)], cin, cout, p, c)
              for (cin, cout, p, c) in trunk_cfg]
    reconv2d = [_init_conv_bn(keys[next(ki)], cin, cout, p, c)
                for (cin, cout, p, c) in reconv_cfg]
    classifier = [
        _init_linear(keys[next(ki)], 512, 4096),
        _init_linear(keys[next(ki)], 4096, 4096),
        _init_linear(keys[next(ki)], 4096, num_classes),
    ]
    return {"conv2d": conv2d, "reconv2d": reconv2d, "classifier": classifier}


# --------------------------------------------------------------------------
# Forward pass (mirrors VGGre13.forward)
# --------------------------------------------------------------------------

def vggre13_forward(params, x_nchw):
    # NCHW (PyTorch convention) -> NHWC (kernel layout)
    x = jnp.transpose(x_nchw, (0, 2, 3, 1)).astype(jnp.float32)

    # self.conv2d (pools fused into the preceding conv)
    for layer in params["conv2d"]:
        x = conv3x3_bn_relu(x, layer["w"], layer["scale"], layer["shift"],
                            pool=layer["pool"], ceil_mode=layer["ceil"])

    # while feature.size(2) > 1 or feature.size(3) > 1: feature = reConv2d(feature)
    while x.shape[1] > 1 or x.shape[2] > 1:
        for layer in params["reconv2d"]:
            x = conv3x3_bn_relu(x, layer["w"], layer["scale"], layer["shift"],
                                pool=layer["pool"], ceil_mode=layer["ceil"])

    # Flatten: spatial is 1x1 so NHWC flatten == NCHW flatten -> (N, 512)
    feat = x.reshape(x.shape[0], -1)

    c = params["classifier"]
    h = linear(feat, c[0]["w"], c[0]["b"], relu=True, out_dtype=jnp.bfloat16)
    h = linear(h, c[1]["w"], c[1]["b"], relu=True, out_dtype=jnp.bfloat16)
    out = linear(h, c[2]["w"], c[2]["b"], relu=False, out_dtype=jnp.float32)
    return out


# --------------------------------------------------------------------------

if __name__ == "__main__":
    key = jax.random.PRNGKey(0)
    kx, kp = jax.random.split(key)

    # Small deterministic input, NCHW like the PyTorch module expects.
    batch, in_features, spatial, num_classes = 2, 3, 16, 1000
    x = jax.random.normal(kx, (batch, in_features, spatial, spatial), jnp.float32)

    params = init_params(kp, in_features=in_features, num_classes=num_classes)
    out = vggre13_forward(params, x)
    out = jax.block_until_ready(out)

    assert out.shape == (batch, num_classes), out.shape
    assert bool(jnp.all(jnp.isfinite(out)))
    print("KERNEL_OK")
</pallas_src>

<mosaic_0001>
module attributes {stable_mosaic.version = 11 : i64} {
  func.func @_conv3x3_bn_relu_kernel(%arg0: i32, %arg1: i32, %arg2: memref<1x16x16x8xbf16, #tpu.memory_space<vmem>>, %arg3: memref<3x3x8x64xbf16, #tpu.memory_space<vmem>>, %arg4: memref<1x64xf32, #tpu.memory_space<vmem>>, %arg5: memref<1x64xf32, #tpu.memory_space<vmem>>, %arg6: memref<1x16x16x64xbf16, #tpu.memory_space<vmem>>, %arg7: memref<18x18x8xbf16, #tpu.memory_space<vmem>>, %arg8: memref<256x64xf32, #tpu.memory_space<vmem>>) attributes {dimension_semantics = [#tpu.dimension_semantics<parallel>, #tpu.dimension_semantics<parallel>], iteration_bounds = array<i64: 2, 1>, scalar_prefetch = 0 : i64, scratch_operands = 2 : i64, tpu.core_type = #tpu.core_type<tc>, window_params = [{transform_indices = @transform_0, window_bounds = array<i64: 1, 16, 16, 8>}, {pipeline_mode = #tpu.pipeline_mode<synchronous>, transform_indices = @transform_1, window_bounds = array<i64: 3, 3, 8, 64>}, {pipeline_mode = #tpu.pipeline_mode<synchronous>, transform_indices = @transform_2, window_bounds = array<i64: 1, 64>}, {pipeline_mode = #tpu.pipeline_mode<synchronous>, transform_indices = @transform_3, window_bounds = array<i64: 1, 64>}, {transform_indices = @transform_4, window_bounds = array<i64: 1, 16, 16, 64>}]} {
    %cst = arith.constant 0.000000e+00 : bf16
    %0 = vector.broadcast %cst : bf16 to vector<18x18x8xbf16>
    %c0 = arith.constant 0 : index
    %c0_0 = arith.constant 0 : index
    %c0_1 = arith.constant 0 : index
    %1 = vector.load %arg7[%c0, %c0_0, %c0_1] : memref<18x18x8xbf16, #tpu.memory_space<vmem>>, vector<18x18x8xbf16>
    tpu.vector_store %arg7[%c0, %c0_0, %c0_1], %0 {strides = array<i32>} : memref<18x18x8xbf16, #tpu.memory_space<vmem>>, vector<18x18x8xbf16>,
    %c16_i32 = arith.constant 16 : i32
    %2 = arith.muli %arg1, %c16_i32 : i32
    %c0_2 = arith.constant 0 : index
    %3 = arith.index_cast %2 : i32 to index
    %c0_3 = arith.constant 0 : index
    %c0_4 = arith.constant 0 : index
    %4 = vector.load %arg2[%c0_2, %3, %c0_3, %c0_4] : memref<1x16x16x8xbf16, #tpu.memory_space<vmem>>, vector<1x16x16x8xbf16>
    %5 = vector.shape_cast %4 : vector<1x16x16x8xbf16> to vector<16x16x8xbf16>
    %c1 = arith.constant 1 : index
    %c1_5 = arith.constant 1 : index
    %c0_6 = arith.constant 0 : index
    %6 = vector.load %arg7[%c1, %c1_5, %c0_6] : memref<18x18x8xbf16, #tpu.memory_space<vmem>>, vector<16x16x8xbf16>
    tpu.vector_store %arg7[%c1, %c1_5, %c0_6], %5 {strides = array<i32>} : memref<18x18x8xbf16, #tpu.memory_space<vmem>>, vector<16x16x8xbf16>,
    %c0_i32 = arith.constant 0 : i32
    %7 = arith.cmpi sgt, %arg1, %c0_i32 : i32
    %8 = arith.extui %7 : i1 to i32
    %c0_i32_7 = arith.constant 0 : i32
    %9 = arith.cmpi ne, %8, %c0_i32_7 : i32
    scf.if %9 {
      %c1_i32 = arith.constant 1 : i32
      %100 = arith.subi %2, %c1_i32 : i32
      %c0_127 = arith.constant 0 : index
      %101 = arith.index_cast %100 : i32 to index
      %c0_128 = arith.constant 0 : index
      %c0_129 = arith.constant 0 : index
      %102 = vector.load %arg2[%c0_127, %101, %c0_128, %c0_129] : memref<1x16x16x8xbf16, #tpu.memory_space<vmem>>, vector<1x1x16x8xbf16>
      %103 = vector.shape_cast %102 : vector<1x1x16x8xbf16> to vector<1x16x8xbf16>
      %c0_130 = arith.constant 0 : index
      %c1_131 = arith.constant 1 : index
      %c0_132 = arith.constant 0 : index
      %104 = vector.load %arg7[%c0_130, %c1_131, %c0_132] : memref<18x18x8xbf16, #tpu.memory_space<vmem>>, vector<1x16x8xbf16>
      tpu.vector_store %arg7[%c0_130, %c1_131, %c0_132], %103 {strides = array<i32>} : memref<18x18x8xbf16, #tpu.memory_space<vmem>>, vector<1x16x8xbf16>,
    } else {
    }
    %c16_i32_8 = arith.constant 16 : i32
    %10 = arith.addi %2, %c16_i32_8 : i32
    %c16_i32_9 = arith.constant 16 : i32
    %11 = arith.cmpi slt, %10, %c16_i32_9 : i32
    %12 = arith.extui %11 : i1 to i32
    %c0_i32_10 = arith.constant 0 : i32
    %13 = arith.cmpi ne, %12, %c0_i32_10 : i32
    scf.if %13 {
      %c16_i32_127 = arith.constant 16 : i32
      %100 = arith.addi %2, %c16_i32_127 : i32
      %c0_128 = arith.constant 0 : index
      %101 = arith.index_cast %100 : i32 to index
      %c0_129 = arith.constant 0 : index
      %c0_130 = arith.constant 0 : index
      %102 = vector.load %arg2[%c0_128, %101, %c0_129, %c0_130] : memref<1x16x16x8xbf16, #tpu.memory_space<vmem>>, vector<1x1x16x8xbf16>
      %103 = vector.shape_cast %102 : vector<1x1x16x8xbf16> to vector<1x16x8xbf16>
      %c17 = arith.constant 17 : index
      %c1_131 = arith.constant 1 : index
      %c0_132 = arith.constant 0 : index
      %104 = vector.load %arg7[%c17, %c1_131, %c0_132] : memref<18x18x8xbf16, #tpu.memory_space<vmem>>, vector<1x16x8xbf16>
      tpu.vector_store %arg7[%c17, %c1_131, %c0_132], %103 {strides = array<i32>} : memref<18x18x8xbf16, #tpu.memory_space<vmem>>, vector<1x16x8xbf16>,
    } else {
    }
    %c0_11 = arith.constant 0 : index
    %c0_12 = arith.constant 0 : index
    %c0_13 = arith.constant 0 : index
    %14 = vector.load %arg7[%c0_11, %c0_12, %c0_13] : memref<18x18x8xbf16, #tpu.memory_space<vmem>>, vector<16x16x8xbf16>
    %15 = vector.shape_cast %14 : vector<16x16x8xbf16> to vector<256x8xbf16>
    %c0_14 = arith.constant 0 : index
    %c0_15 = arith.constant 0 : index
    %c0_16 = arith.constant 0 : index
    %c0_17 = arith.constant 0 : index
    %16 = vector.load %arg3[%c0_14, %c0_15, %c0_16, %c0_17] : memref<3x3x8x64xbf16, #tpu.memory_space<vmem>>, vector<1x1x8x64xbf16>
    %17 = vector.shape_cast %16 : vector<1x1x8x64xbf16> to vector<8x64xbf16>
    %cst_18 = arith.constant dense<0.000000e+00> : vector<256x64xf32>
    %18 = tpu.matmul %15, %17, %cst_18 {dimension_numbers = #tpu.dot_dimension_numbers<[1], [0], [0], [1], [0, 0, 1, 1], [], []>} : vector<256x8xbf16>, vector<8x64xbf16>, vector<256x64xf32> -> vector<256x64xf32>
    %c0_19 = arith.constant 0 : index
    %c0_20 = arith.constant 0 : index
    %19 = vector.load %arg8[%c0_19, %c0_20] : memref<256x64xf32, #tpu.memory_space<vmem>>, vector<256x64xf32>
    tpu.vector_store %arg8[%c0_19, %c0_20], %18 {strides = array<i32>} : memref<256x64xf32, #tpu.memory_space<vmem>>, vector<256x64xf32>,
    %c0_21 = arith.constant 0 : index
    %c1_22 = arith.constant 1 : index
    %c0_23 = arith.constant 0 : index
    %20 = vector.load %arg7[%c0_21, %c1_22, %c0_23] : memref<18x18x8xbf16, #tpu.memory_space<vmem>>, vector<16x16x8xbf16>
    %21 = vector.shape_cast %20 : vector<16x16x8xbf16> to vector<256x8xbf16>
    %c0_24 = arith.constant 0 : index
    %c1_25 = arith.constant 1 : index
    %c0_26 = arith.constant 0 : index
    %c0_27 = arith.constant 0 : index
    %22 = vector.load %arg3[%c0_24, %c1_25, %c0_26, %c0_27] : memref<3x3x8x64xbf16, #tpu.memory_space<vmem>>, vector<1x1x8x64xbf16>
    %23 = vector.shape_cast %22 : vector<1x1x8x64xbf16> to vector<8x64xbf16>
    %cst_28 = arith.constant dense<0.000000e+00> : vector<256x64xf32>
    %24 = tpu.matmul %21, %23, %cst_28 {dimension_numbers = #tpu.dot_dimension_numbers<[1], [0], [0], [1], [0, 0, 1, 1], [], []>} : vector<256x8xbf16>, vector<8x64xbf16>, vector<256x64xf32> -> vector<256x64xf32>
    %c0_29 = arith.constant 0 : index
    %c0_30 = arith.constant 0 : index
    %25 = vector.load %arg8[%c0_29, %c0_30] : memref<256x64xf32, #tpu.memory_space<vmem>>, vector<256x64xf32>
    %26 = arith.addf %25, %24 : vector<256x64xf32>
    %c0_31 = arith.constant 0 : index
    %c0_32 = arith.constant 0 : index
    %27 = vector.load %arg8[%c0_31, %c0_32] : memref<256x64xf32, #tpu.memory_space<vmem>>, vector<256x64xf32>
    tpu.vector_store %arg8[%c0_31, %c0_32], %26 {strides = array<i32>} : memref<256x64xf32, #tpu.memory_space<vmem>>, vector<256x64xf32>,
    %c0_33 = arith.constant 0 : index
    %c2 = arith.constant 2 : index
    %c0_34 = arith.constant 0 : index
    %28 = vector.load %arg7[%c0_33, %c2, %c0_34] : memref<18x18x8xbf16, #tpu.memory_space<vmem>>, vector<16x16x8xbf16>
    %29 = vector.shape_cast %28 : vector<16x16x8xbf16> to vector<256x8xbf16>
    %c0_35 = arith.constant 0 : index
    %c2_36 = arith.constant 2 : index
    %c0_37 = arith.constant 0 : index
    %c0_38 = arith.constant 0 : index
    %30 = vector.load %arg3[%c0_35, %c2_36, %c0_37, %c0_38] : memref<3x3x8x64xbf16, #tpu.memory_space<vmem>>, vector<1x1x8x64xbf16>
    %31 = vector.shape_cast %30 : vector<1x1x8x64xbf16> to vector<8x64xbf16>
    %cst_39 = arith.constant dense<0.000000e+00> : vector<256x64xf32>
    %32 = tpu.matmul %29, %31, %cst_39 {dimension_numbers = #tpu.dot_dimension_numbers<[1], [0], [0], [1], [0, 0, 1, 1], [], []>} : vector<256x8xbf16>, vector<8x64xbf16>, vector<256x64xf32> -> vector<256x64xf32>
    %c0_40 = arith.constant 0 : index
    %c0_41 = arith.constant 0 : index
    %33 = vector.load %arg8[%c0_40, %c0_41] : memref<256x64xf32, #tpu.memory_space<vmem>>, vector<256x64xf32>
    %34 = arith.addf %33, %32 : vector<256x64xf32>
    %c0_42 = arith.constant 0 : index
    %c0_43 = arith.constant 0 : index
    %35 = vector.load %arg8[%c0_42, %c0_43] : memref<256x64xf32, #tpu.memory_space<vmem>>, vector<256x64xf32>
    tpu.vector_store %arg8[%c0_42, %c0_43], %34 {strides = array<i32>} : memref<256x64xf32, #tpu.memory_space<vmem>>, vector<256x64xf32>,
    %c1_44 = arith.constant 1 : index
    %c0_45 = arith.constant 0 : index
    %c0_46 = arith.constant 0 : index
    %36 = vector.load %arg7[%c1_44, %c0_45, %c0_46] : memref<18x18x8xbf16, #tpu.memory_space<vmem>>, vector<16x16x8xbf16>
    %37 = vector.shape_cast %36 : vector<16x16x8xbf16> to vector<256x8xbf16>
    %c1_47 = arith.constant 1 : index
    %c0_48 = arith.constant 0 : index
    %c0_49 = arith.constant 0 : index
    %c0_50 = arith.constant 0 : index
    %38 = vector.load %arg3[%c1_47, %c0_48, %c0_49, %c0_50] : memref<3x3x8x64xbf16, #tpu.memory_space<vmem>>, vector<1x1x8x64xbf16>
    %39 = vector.shape_cast %38 : vector<1x1x8x64xbf16> to vector<8x64xbf16>
    %cst_51 = arith.constant dense<0.000000e+00> : vector<256x64xf32>
    %40 = tpu.matmul %37, %39, %cst_51 {dimension_numbers = #tpu.dot_dimension_numbers<[1], [0], [0], [1], [0, 0, 1, 1], [], []>} : vector<256x8xbf16>, vector<8x64xbf16>, vector<256x64xf32> -> vector<256x64xf32>
    %c0_52 = arith.constant 0 : index
    %c0_53 = arith.constant 0 : index
    %41 = vector.load %arg8[%c0_52, %c0_53] : memref<256x64xf32, #tpu.memory_space<vmem>>, vector<256x64xf32>
    %42 = arith.addf %41, %40 : vector<256x64xf32>
    %c0_54 = arith.constant 0 : index
    %c0_55 = arith.constant 0 : index
    %43 = vector.load %arg8[%c0_54, %c0_55] : memref<256x64xf32, #tpu.memory_space<vmem>>, vector<256x64xf32>
    tpu.vector_store %arg8[%c0_54, %c0_55], %42 {strides = array<i32>} : memref<256x64xf32, #tpu.memory_space<vmem>>, vector<256x64xf32>,
    %c1_56 = arith.constant 1 : index
    %c1_57 = arith.constant 1 : index
    %c0_58 = arith.constant 0 : index
    %44 = vector.load %arg7[%c1_56, %c1_57, %c0_58] : memref<18x18x8xbf16, #tpu.memory_space<vmem>>, vector<16x16x8xbf16>
    %45 = vector.shape_cast %44 : vector<16x16x8xbf16> to vector<256x8xbf16>
    %c1_59 = arith.constant 1 : index
    %c1_60 = arith.constant 1 : index
    %c0_61 = arith.constant 0 : index
    %c0_62 = arith.constant 0 : index
    %46 = vector.load %arg3[%c1_59, %c1_60, %c0_61, %c0_62] : memref<3x3x8x64xbf16, #tpu.memory_space<vmem>>, vector<1x1x8x64xbf16>
    %47 = vector.shape_cast %46 : vector<1x1x8x64xbf16> to vector<8x64xbf16>
    %cst_63 = arith.constant dense<0.000000e+00> : vector<256x64xf32>
    %48 = tpu.matmul %45, %47, %cst_63 {dimension_numbers = #tpu.dot_dimension_numbers<[1], [0], [0], [1], [0, 0, 1, 1], [], []>} : vector<256x8xbf16>, vector<8x64xbf16>, vector<256x64xf32> -> vector<256x64xf32>
    %c0_64 = arith.constant 0 : index
    %c0_65 = arith.constant 0 : index
    %49 = vector.load %arg8[%c0_64, %c0_65] : memref<256x64xf32, #tpu.memory_space<vmem>>, vector<256x64xf32>
    %50 = arith.addf %49, %48 : vector<256x64xf32>
    %c0_66 = arith.constant 0 : index
    %c0_67 = arith.constant 0 : index
    %51 = vector.load %arg8[%c0_66, %c0_67] : memref<256x64xf32, #tpu.memory_space<vmem>>, vector<256x64xf32>
    tpu.vector_store %arg8[%c0_66, %c0_67], %50 {strides = array<i32>} : memref<256x64xf32, #tpu.memory_space<vmem>>, vector<256x64xf32>,
    %c1_68 = arith.constant 1 : index
    %c2_69 = arith.constant 2 : index
    %c0_70 = arith.constant 0 : index
    %52 = vector.load %arg7[%c1_68, %c2_69, %c0_70] : memref<18x18x8xbf16, #tpu.memory_space<vmem>>, vector<16x16x8xbf16>
    %53 = vector.shape_cast %52 : vector<16x16x8xbf16> to vector<256x8xbf16>
    %c1_71 = arith.constant 1 : index
    %c2_72 = arith.constant 2 : index
    %c0_73 = arith.constant 0 : index
    %c0_74 = arith.constant 0 : index
    %54 = vector.load %arg3[%c1_71, %c2_72, %c0_73, %c0_74] : memref<3x3x8x64xbf16, #tpu.memory_space<vmem>>, vector<1x1x8x64xbf16>
    %55 = vector.shape_cast %54 : vector<1x1x8x64xbf16> to vector<8x64xbf16>
    %cst_75 = arith.constant dense<0.000000e+00> : vector<256x64xf32>
    %56 = tpu.matmul %53, %55, %cst_75 {dimension_numbers = #tpu.dot_dimension_numbers<[1], [0], [0], [1], [0, 0, 1, 1], [], []>} : vector<256x8xbf16>, vector<8x64xbf16>, vector<256x64xf32> -> vector<256x64xf32>
    %c0_76 = arith.constant 0 : index
    %c0_77 = arith.constant 0 : index
    %57 = vector.load %arg8[%c0_76, %c0_77] : memref<256x64xf32, #tpu.memory_space<vmem>>, vector<256x64xf32>
    %58 = arith.addf %57, %56 : vector<256x64xf32>
    %c0_78 = arith.constant 0 : index
    %c0_79 = arith.constant 0 : index
    %59 = vector.load %arg8[%c0_78, %c0_79] : memref<256x64xf32, #tpu.memory_space<vmem>>, vector<256x64xf32>
    tpu.vector_store %arg8[%c0_78, %c0_79], %58 {strides = array<i32>} : memref<256x64xf32, #tpu.memory_space<vmem>>, vector<256x64xf32>,
    %c2_80 = arith.constant 2 : index
    %c0_81 = arith.constant 0 : index
    %c0_82 = arith.constant 0 : index
    %60 = vector.load %arg7[%c2_80, %c0_81, %c0_82] : memref<18x18x8xbf16, #tpu.memory_space<vmem>>, vector<16x16x8xbf16>
    %61 = vector.shape_cast %60 : vector<16x16x8xbf16> to vector<256x8xbf16>
    %c2_83 = arith.constant 2 : index
    %c0_84 = arith.constant 0 : index
    %c0_85 = arith.constant 0 : index
    %c0_86 = arith.constant 0 : index
    %62 = vector.load %arg3[%c2_83, %c0_84, %c0_85, %c0_86] : memref<3x3x8x64xbf16, #tpu.memory_space<vmem>>, vector<1x1x8x64xbf16>
    %63 = vector.shape_cast %62 : vector<1x1x8x64xbf16> to vector<8x64xbf16>
    %cst_87 = arith.constant dense<0.000000e+00> : vector<256x64xf32>
    %64 = tpu.matmul %61, %63, %cst_87 {dimension_numbers = #tpu.dot_dimension_numbers<[1], [0], [0], [1], [0, 0, 1, 1], [], []>} : vector<256x8xbf16>, vector<8x64xbf16>, vector<256x64xf32> -> vector<256x64xf32>
    %c0_88 = arith.constant 0 : index
    %c0_89 = arith.constant 0 : index
    %65 = vector.load %arg8[%c0_88, %c0_89] : memref<256x64xf32, #tpu.memory_space<vmem>>, vector<256x64xf32>
    %66 = arith.addf %65, %64 : vector<256x64xf32>
    %c0_90 = arith.constant 0 : index
    %c0_91 = arith.constant 0 : index
    %67 = vector.load %arg8[%c0_90, %c0_91] : memref<256x64xf32, #tpu.memory_space<vmem>>, vector<256x64xf32>
    tpu.vector_store %arg8[%c0_90, %c0_91], %66 {strides = array<i32>} : memref<256x64xf32, #tpu.memory_space<vmem>>, vector<256x64xf32>,
    %c2_92 = arith.constant 2 : index
    %c1_93 = arith.constant 1 : index
    %c0_94 = arith.constant 0 : index
    %68 = vector.load %arg7[%c2_92, %c1_93, %c0_94] : memref<18x18x8xbf16, #tpu.memory_space<vmem>>, vector<16x16x8xbf16>
    %69 = vector.shape_cast %68 : vector<16x16x8xbf16> to vector<256x8xbf16>
    %c2_95 = arith.constant 2 : index
    %c1_96 = arith.constant 1 : index
    %c0_97 = arith.constant 0 : index
    %c0_98 = arith.constant 0 : index
    %70 = vector.load %arg3[%c2_95, %c1_96, %c0_97, %c0_98] : memref<3x3x8x64xbf16, #tpu.memory_space<vmem>>, vector<1x1x8x64xbf16>
    %71 = vector.shape_cast %70 : vector<1x1x8x64xbf16> to vector<8x64xbf16>
    %cst_99 = arith.constant dense<0.000000e+00> : vector<256x64xf32>
    %72 = tpu.matmul %69, %71, %cst_99 {dimension_numbers = #tpu.dot_dimension_numbers<[1], [0], [0], [1], [0, 0, 1, 1], [], []>} : vector<256x8xbf16>, vector<8x64xbf16>, vector<256x64xf32> -> vector<256x64xf32>
    %c0_100 = arith.constant 0 : index
    %c0_101 = arith.constant 0 : index
    %73 = vector.load %arg8[%c0_100, %c0_101] : memref<256x64xf32, #tpu.memory_space<vmem>>, vector<256x64xf32>
    %74 = arith.addf %73, %72 : vector<256x64xf32>
    %c0_102 = arith.constant 0 : index
    %c0_103 = arith.constant 0 : index
    %75 = vector.load %arg8[%c0_102, %c0_103] : memref<256x64xf32, #tpu.memory_space<vmem>>, vector<256x64xf32>
    tpu.vector_store %arg8[%c0_102, %c0_103], %74 {strides = array<i32>} : memref<256x64xf32, #tpu.memory_space<vmem>>, vector<256x64xf32>,
    %c2_104 = arith.constant 2 : index
    %c2_105 = arith.constant 2 : index
    %c0_106 = arith.constant 0 : index
    %76 = vector.load %arg7[%c2_104, %c2_105, %c0_106] : memref<18x18x8xbf16, #tpu.memory_space<vmem>>, vector<16x16x8xbf16>
    %77 = vector.shape_cast %76 : vector<16x16x8xbf16> to vector<256x8xbf16>
    %c2_107 = arith.constant 2 : index
    %c2_108 = arith.constant 2 : index
    %c0_109 = arith.constant 0 : index
    %c0_110 = arith.constant 0 : index
    %78 = vector.load %arg3[%c2_107, %c2_108, %c0_109, %c0_110] : memref<3x3x8x64xbf16, #tpu.memory_space<vmem>>, vector<1x1x8x64xbf16>
    %79 = vector.shape_cast %78 : vector<1x1x8x64xbf16> to vector<8x64xbf16>
    %cst_111 = arith.constant dense<0.000000e+00> : vector<256x64xf32>
    %80 = tpu.matmul %77, %79, %cst_111 {dimension_numbers = #tpu.dot_dimension_numbers<[1], [0], [0], [1], [0, 0, 1, 1], [], []>} : vector<256x8xbf16>, vector<8x64xbf16>, vector<256x64xf32> -> vector<256x64xf32>
    %c0_112 = arith.constant 0 : index
    %c0_113 = arith.constant 0 : index
    %81 = vector.load %arg8[%c0_112, %c0_113] : memref<256x64xf32, #tpu.memory_space<vmem>>, vector<256x64xf32>
    %82 = arith.addf %81, %80 : vector<256x64xf32>
    %c0_114 = arith.constant 0 : index
    %c0_115 = arith.constant 0 : index
    %83 = vector.load %arg8[%c0_114, %c0_115] : memref<256x64xf32, #tpu.memory_space<vmem>>, vector<256x64xf32>
    tpu.vector_store %arg8[%c0_114, %c0_115], %82 {strides = array<i32>} : memref<256x64xf32, #tpu.memory_space<vmem>>, vector<256x64xf32>,
    %c0_116 = arith.constant 0 : index
    %c0_117 = arith.constant 0 : index
    %84 = vector.load %arg8[%c0_116, %c0_117] : memref<256x64xf32, #tpu.memory_space<vmem>>, vector<256x64xf32>
    %c0_118 = arith.constant 0 : index
    %c0_119 = arith.constant 0 : index
    %85 = vector.load %arg4[%c0_118, %c0_119] : memref<1x64xf32, #tpu.memory_space<vmem>>, vector<1x64xf32>
    %86 = vector.shape_cast %85 : vector<1x64xf32> to vector<64xf32>
    %87 = vector.shape_cast %86 : vector<64xf32> to vector<1x64xf32>
    %88 = vector.broadcast %87 : vector<1x64xf32> to vector<256x64xf32>
    %89 = arith.mulf %84, %88 : vector<256x64xf32>
    %c0_120 = arith.constant 0 : index
    %c0_121 = arith.constant 0 : index
    %90 = vector.load %arg5[%c0_120, %c0_121] : memref<1x64xf32, #tpu.memory_space<vmem>>, vector<1x64xf32>
    %91 = vector.shape_cast %90 : vector<1x64xf32> to vector<64xf32>
    %92 = vector.shape_cast %91 : vector<64xf32> to vector<1x64xf32>
    %93 = vector.broadcast %92 : vector<1x64xf32> to vector<256x64xf32>
    %94 = arith.addf %89, %93 : vector<256x64xf32>
    %cst_122 = arith.constant 0.000000e+00 : f32
    %95 = vector.broadcast %cst_122 : f32 to vector<256x64xf32>
    %96 = arith.maximumf %94, %95 : vector<256x64xf32>
    %97 = vector.shape_cast %96 : vector<256x64xf32> to vector<1x16x16x64xf32>
    %98 = arith.truncf %97 : vector<1x16x16x64xf32> to vector<1x16x16x64xbf16>
    %c0_123 = arith.constant 0 : index
    %c0_124 = arith.constant 0 : index
    %c0_125 = arith.constant 0 : index
    %c0_126 = arith.constant 0 : index
    %99 = vector.load %arg6[%c0_123, %c0_124, %c0_125, %c0_126] : memref<1x16x16x64xbf16, #tpu.memory_space<vmem>>, vector<1x16x16x64xbf16>
    tpu.vector_store %arg6[%c0_123, %c0_124, %c0_125, %c0_126], %98 {strides = array<i32>} : memref<1x16x16x64xbf16, #tpu.memory_space<vmem>>, vector<1x16x16x64xbf16>,
    return
  }
  func.func @transform_0(%arg0: i32, %arg1: i32) -> (i32, i32, i32, i32) {
    %c0_i32 = arith.constant 0 : i32
    %c0_i32_0 = arith.constant 0 : i32
    %c0_i32_1 = arith.constant 0 : i32
    %c0_i32_2 = arith.constant 0 : i32
    return %arg0, %c0_i32, %c0_i32_0, %c0_i32_1 : i32, i32, i32, i32
  }
  func.func @transform_1(%arg0: i32, %arg1: i32) -> (i32, i32, i32, i32) {
    %c0_i32 = arith.constant 0 : i32
    %c0_i32_0 = arith.constant 0 : i32
    %c0_i32_1 = arith.constant 0 : i32
    %c0_i32_2 = arith.constant 0 : i32
    %c0_i32_3 = arith.constant 0 : i32
    return %c0_i32, %c0_i32_0, %c0_i32_1, %c0_i32_2 : i32, i32, i32, i32
  }
  func.func @transform_2(%arg0: i32, %arg1: i32) -> (i32, i32) {
    %c0_i32 = arith.constant 0 : i32
    %c0_i32_0 = arith.constant 0 : i32
    %c0_i32_1 = arith.constant 0 : i32
    return %c0_i32, %c0_i32_0 : i32, i32
  }
  func.func @transform_3(%arg0: i32, %arg1: i32) -> (i32, i32) {
    %c0_i32 = arith.constant 0 : i32
    %c0_i32_0 = arith.constant 0 : i32
    %c0_i32_1 = arith.constant 0 : i32
    return %c0_i32, %c0_i32_0 : i32, i32
  }
  func.func @transform_4(%arg0: i32, %arg1: i32) -> (i32, i32, i32, i32) {
    %c0_i32 = arith.constant 0 : i32
    %c0_i32_0 = arith.constant 0 : i32
    %c0_i32_1 = arith.constant 0 : i32
    return %arg0, %arg1, %c0_i32, %c0_i32_0 : i32, i32, i32, i32
  }
}

</mosaic_0001>

<llo_original>
// kernel: tpu_custom_call.1
$region0: #{tpu_custom_call.1}
  #allocation0 [shape = 'u32[]', space=smem, size = 0x4, offset = 0x4, fixed_abs, tag = 'smem constant byte address 0x4 - core index']
  #allocation1 [shape = 'u32[72,128]{1,0:T(1,128)}', space=vmem, size = 0x9000, scoped, tag = 'internal scratch']
  #allocation2 [shape = 'bf16[18,18,8]{2,1,0:T(8,128)(2,1)}', space=vmem, size = 0x1b000, scoped, tag = 'scratch operand']
  #allocation3 [shape = 'f32[256,64]{1,0:T(8,128)}', space=vmem, size = 0x20000, scoped, tag = 'scratch operand']
  %s0 = inlined_call_operand.vmem [shape: bf16[2,16,16,8], index: 0, kind: input, shape index: {}]
  %s1 = inlined_call_operand.vmem [shape: bf16[3,3,8,64], index: 1, kind: input, shape index: {}]
  %s2 = inlined_call_operand.vmem [shape: f32[1,64], index: 2, kind: input, shape index: {}]
  %s3 = inlined_call_operand.vmem [shape: f32[1,64], index: 3, kind: input, shape index: {}]
  %s4 = inlined_call_operand.hbm [shape: bf16[2,16,16,64], index: 4, kind: output, shape index: {}]
  %s5 = sld [smem:[#allocation0]]
  $region57: #{tpu_custom_call.1} parent=0
    _
  %s7 = ssub.s32 1, %s5
  %s8 = scalar_select 0, %s7, %s5
  $region1: #{tpu_custom_call.1} parent=0
    #allocation4 [shape = 'u8[131072]{0}', space=vmem, size = 0x20000, scoped, tag = 'output window, operand 0']
    #allocation5 [shape = 's32[2]{0}', space=sflag, size = 0x8, scoped, tag = 'scoped memory for tpu_custom_call.1']
    %9 = vsyncpa [#allocation5], 0
    %s10 = scalar_lea.sflag [#allocation5], 1
    %11 = vsyncpa %s10, 0
    loop: start=0, step=1, limit=4
    $region2: #{tpu_custom_call.1} parent=1 // loop_pre_header
      _
    $region3: #{tpu_custom_call.1} parent=1 // loop_header
      %s13 = sphi 0, %s17
      %p14 = scmp.ge.s32.totalorder %s13, 4
      %s20 = sphi 0, %s32
      %s21 = sphi 0, %s28
      %s22 = sphi 0, %s20
      %s23 = sphi 0, %s21
      %s24 = sphi 0, %s22
      %s25 = sphi 0, %s23
      %s35 = sphi 0, %s37
      %s38 = sphi 0, %s35
      %s39 = sphi 0, %s38
      %s55 = sphi 0, %s39
      %s59 = sphi 0, %s59
      %s61 = sphi 0, %s59
      %s62 = sphi 0, %s61
      %s76 = sphi 0, %s62
      %s80 = sphi 0, %s80
      %s82 = sphi 0, %s80
      %s83 = sphi 0, %s82
      %s97 = sphi 0, %s83
      %s101 = sphi 0, %s101
      %s103 = sphi 0, %s101
      %s104 = sphi 0, %s103
      %s118 = sphi 0, %s104
      %s126 = sphi 0, %s128
      %s129 = sphi 0, %s126
      %s130 = sphi 0, %s129
      %s146 = sphi 0, %s130
    $region4: #{tpu_custom_call.1} parent=1 // loop_header_branch
      %16 = sbr.rel (%p14) target = $region8
    $region5: #{tpu_custom_call.1} parent=1 // loop_body
      %s18 = ssub.s32 %s13, 1
      %s19 = ssub.s32 %s13, 2
      %s26 = sadd.s32 1, %s21
      %p27 = scmp.ge.s32.totalorder %s26, 1
      %s28 = scalar_select %p27, 0, %s26
      %s29 = sadd.s32 1, %s20
      %s30 = scalar_select %p27, %s29, %s20
      %p31 = scmp.ge.s32.totalorder %s30, 2
      %s32 = scalar_select %p31, 0, %s30
      %s33 = ssub.s32 %s20, %s32
      %p34 = scmp.eq.s32.totalorder %s33, 0
      %s36 = sadd.s32 %s35, 1
      %s37 = scalar_select %p34, %s35, %s36
      %p40 = pneg %p34
      %p41 = scmp.eq.s32.totalorder %s13, 1
      %p42 = por %p40, %p41
      %p43 = scmp.ne.s32.totalorder %s35, %s38
      %p44 = scmp.eq.s32.totalorder %s13, 0
      %p45 = por %p43, %p44
      %p46 = scmp.ne.s32.totalorder %s35, %s38
      %p47 = scmp.eq.s32.totalorder %s18, 1
      %p48 = por %p46, %p47
      %p49 = scmp.ne.s32.totalorder %s38, %s39
      %p50 = scmp.eq.s32.totalorder %s18, 0
      %p51 = por %p49, %p50
      %p52 = scmp.ne.s32.totalorder %s38, %s39
      %p53 = scmp.eq.s32.totalorder %s19, 1
      %p54 = por %p52, %p53
      %p56 = scmp.ne.s32.totalorder %s39, %s55
      %p57 = scmp.eq.s32.totalorder %s19, 0
      %p58 = por %p56, %p57
      %s60 = sadd.s32 %s59, 1
      %p63 = scmp.eq.s32.totalorder %s13, 1
      %p64 = scmp.ne.s32.totalorder %s59, %s61
      %p65 = scmp.eq.s32.totalorder %s13, 0
      %p66 = por %p64, %p65
      %p67 = scmp.ne.s32.totalorder %s59, %s61
      %p68 = scmp.eq.s32.totalorder %s18, 1
      %p69 = por %p67, %p68
      %p70 = scmp.ne.s32.totalorder %s61, %s62
      %p71 = scmp.eq.s32.totalorder %s18, 0
      %p72 = por %p70, %p71
      %p73 = scmp.ne.s32.totalorder %s61, %s62
      %p74 = scmp.eq.s32.totalorder %s19, 1
      %p75 = por %p73, %p74
      %p77 = scmp.ne.s32.totalorder %s62, %s76
      %p78 = scmp.eq.s32.totalorder %s19, 0
      %p79 = por %p77, %p78
      %s81 = sadd.s32 %s80, 1
      %p84 = scmp.eq.s32.totalorder %s13, 1
      %p85 = scmp.ne.s32.totalorder %s80, %s82
      %p86 = scmp.eq.s32.totalorder %s13, 0
      %p87 = por %p85, %p86
      %p88 = scmp.ne.s32.totalorder %s80, %s82
      %p89 = scmp.eq.s32.totalorder %s18, 1
      %p90 = por %p88, %p89
      %p91 = scmp.ne.s32.totalorder %s82, %s83
      %p92 = scmp.eq.s32.totalorder %s18, 0
      %p93 = por %p91, %p92
      %p94 = scmp.ne.s32.totalorder %s82, %s83
      %p95 = scmp.eq.s32.totalorder %s19, 1
      %p96 = por %p94, %p95
      %p98 = scmp.ne.s32.totalorder %s83, %s97
      %p99 = scmp.eq.s32.totalorder %s19, 0
      %p100 = por %p98, %p99
      %s102 = sadd.s32 %s101, 1
      %p105 = scmp.eq.s32.totalorder %s13, 1
      %p106 = scmp.ne.s32.totalorder %s101, %s103
      %p107 = scmp.eq.s32.totalorder %s13, 0
      %p108 = por %p106, %p107
      %p109 = scmp.ne.s32.totalorder %s101, %s103
      %p110 = scmp.eq.s32.totalorder %s18, 1
      %p111 = por %p109, %p110
      %p112 = scmp.ne.s32.totalorder %s103, %s104
      %p113 = scmp.eq.s32.totalorder %s18, 0
      %p114 = por %p112, %p113
      %p115 = scmp.ne.s32.totalorder %s103, %s104
      %p116 = scmp.eq.s32.totalorder %s19, 1
      %p117 = por %p115, %p116
      %p119 = scmp.ne.s32.totalorder %s104, %s118
      %p120 = scmp.eq.s32.totalorder %s19, 0
      %p121 = por %p119, %p120
      %s122 = ssub.s32 %s20, %s32
      %s123 = ssub.s32 %s21, %s28
      %s124 = sor.u32 %s122, %s123
      %p125 = scmp.eq.s32.totalorder %s124, 0
      %s127 = sadd.s32 %s126, 1
      %s128 = scalar_select %p125, %s126, %s127
      %p131 = pneg %p125
      %p132 = scmp.eq.s32.totalorder %s13, 1
      %p133 = por %p131, %p132
      %p134 = scmp.ne.s32.totalorder %s126, %s129
      %p135 = scmp.eq.s32.totalorder %s13, 0
      %p136 = por %p134, %p135
      %p137 = scmp.ne.s32.totalorder %s126, %s129
      %p138 = scmp.eq.s32.totalorder %s18, 1
      %p139 = por %p137, %p138
      %p140 = scmp.ne.s32.totalorder %s129, %s130
      %p141 = scmp.eq.s32.totalorder %s18, 0
      %p142 = por %p140, %p141
      %p143 = scmp.ne.s32.totalorder %s129, %s130
      %p144 = scmp.eq.s32.totalorder %s19, 1
      %p145 = por %p143, %p144
      %p147 = scmp.ne.s32.totalorder %s130, %s146
      %p148 = scmp.eq.s32.totalorder %s19, 0
      %p149 = por %p147, %p148
      %p150 = scmp.le.s32.totalorder 1, %s13
      %p151 = scmp.lt.s32.totalorder %s13, 3
      %p152 = pnand %p150, %p151
      %p153 = pneg %p152
      // Predicated region
      $region9: #{tpu_custom_call.1} parent=5 // pred_check
        _
      $region10: #{tpu_custom_call.1} parent=5 // pred_check_branch
        %155 = sbr.rel (%p152) target = $region12
      $region11: #{tpu_custom_call.1} parent=5 // pred_region
        %s156 = ssub.s32 %s13, 1
        // Predicated region
        $region13: #{tpu_custom_call.1} parent=11 // pred_check
          %p157 = pneg %p72
        $region14: #{tpu_custom_call.1} parent=11 // pred_check_branch
          %159 = sbr.rel (%p157) target = $region16
        $region15: #{tpu_custom_call.1} parent=11 // pred_region
          _
        $region16: #{tpu_custom_call.1} parent=11 // pred_fallthru
          _
        // Predicated region
        $region17: #{tpu_custom_call.1} parent=11 // pred_check
          %p160 = pneg %p93
        $region18: #{tpu_custom_call.1} parent=11 // pred_check_branch
          %162 = sbr.rel (%p160) target = $region20
        $region19: #{tpu_custom_call.1} parent=11 // pred_region
          _
        $region20: #{tpu_custom_call.1} parent=11 // pred_fallthru
          _
        // Predicated region
        $region21: #{tpu_custom_call.1} parent=11 // pred_check
          %p163 = pneg %p114
        $region22: #{tpu_custom_call.1} parent=11 // pred_check_branch
          %165 = sbr.rel (%p163) target = $region24
        $region23: #{tpu_custom_call.1} parent=11 // pred_region
          _
        $region24: #{tpu_custom_call.1} parent=11 // pred_fallthru
          _
      $region12: #{tpu_custom_call.1} parent=5 // pred_fallthru
        _
      %p166 = scmp.lt.s32.totalorder %s13, 2
      // Predicated region
      $region25: #{tpu_custom_call.1} parent=5 // pred_check
        %p167 = pneg %p166
      $region26: #{tpu_custom_call.1} parent=5 // pred_check_branch
        %169 = sbr.rel (%p167) target = $region28
      $region27: #{tpu_custom_call.1} parent=5 // pred_region
        // Predicated region
        $region29: #{tpu_custom_call.1} parent=27 // pred_check
          %p170 = pneg %p45
        $region30: #{tpu_custom_call.1} parent=27 // pred_check_branch
          %172 = sbr.rel (%p170) target = $region32
        $region31: #{tpu_custom_call.1} parent=27 // pred_region
          %p173 = scmp.lt.s32.totalorder %s20, 1
          %s174 = scalar_select %p173, %s20, 1
          %s175 = smul.addr %s174, 32
          %s176 = smul.addr %s175, 4
          %s177 = scalar_lea.vmem %s0, %s176
        $region32: #{tpu_custom_call.1} parent=27 // pred_fallthru
          _
      $region28: #{tpu_custom_call.1} parent=5 // pred_fallthru
        _
      %p178 = scmp.le.s32.totalorder 1, %s13
      %p179 = scmp.lt.s32.totalorder %s13, 3
      %p180 = pnand %p178, %p179
      %p181 = pneg %p180
      // Predicated region
      $region33: #{tpu_custom_call.1} parent=5 // pred_check
        _
      $region34: #{tpu_custom_call.1} parent=5 // pred_check_branch
        %183 = sbr.rel (%p180) target = $region36
      $region35: #{tpu_custom_call.1} parent=5 // pred_region
        %s184 = ssub.s32 %s13, 1
        %p185 = scmp.lt.s32.totalorder %s22, 1
        %s186 = scalar_select %p185, %s22, 1
        %s187 = smul.addr %s186, 32
        %s188 = smul.addr %s187, 4
        %s189 = scalar_lea.vmem %s0, %s188
        %p190 = pneg %p51
        %p191 = pneg %p48
        %p192 = pneg %p72
        %p193 = pneg %p69
        %p194 = pneg %p93
        %p195 = pneg %p90
        %p196 = pneg %p114
        %p197 = pneg %p111
        %p198 = pneg %p142
        %p199 = pneg %p139
        %s200 = sand.u32 %s129, 1
        %s201 = scalar_lea.sflag [#allocation5], %s200
        %s202 = sand.u32 %s129, 1
        %s203 = smul.addr %s202, 128
        %s204 = scalar_lea.vmem [#allocation4], %s203
        %p205 = scmp.lt.s32.totalorder %s22, 1
        %s206 = scalar_select %p205, %s22, 1
        %s207 = smul.addr %s206, 32
        %s208 = smul.addr %s207, 4
        %s209 = scalar_lea.vmem %s0, %s208
        %s210 = smul.u32 16, %s23
        %vm212 = vcmask 60416
        %213 = vst.msk [vmem:[#allocation2] sm:$0xf] %vm212, 0
        %214 = vst.msk [vmem:[#allocation2 + $0x4] sm:$0xf] %vm212, 0
        %vm215 = vcmask 57344
        %216 = vst.msk [vmem:[#allocation2 + $0x8] sm:$0x1] %vm215, 0
        %217 = vst.msk [vmem:[#allocation2 + $0xc] sm:$0xf] %vm212, 0
        %218 = vst.msk [vmem:[#allocation2 + $0x10] sm:$0xf] %vm212, 0
        %219 = vst.msk [vmem:[#allocation2 + $0x14] sm:$0x1] %vm215, 0
        %220 = vst.msk [vmem:[#allocation2 + $0x18] sm:$0xf] %vm212, 0
        %221 = vst.msk [vmem:[#allocation2 + $0x1c] sm:$0xf] %vm212, 0
        %222 = vst.msk [vmem:[#allocation2 + $0x20] sm:$0x1] %vm215, 0
        %223 = vst.msk [vmem:[#allocation2 + $0x24] sm:$0xf] %vm212, 0
        %224 = vst.msk [vmem:[#allocation2 + $0x28] sm:$0xf] %vm212, 0
        %225 = vst.msk [vmem:[#allocation2 + $0x2c] sm:$0x1] %vm215, 0
        %226 = vst.msk [vmem:[#allocation2 + $0x30] sm:$0xf] %vm212, 0
        %227 = vst.msk [vmem:[#allocation2 + $0x34] sm:$0xf] %vm212, 0
        %228 = vst.msk [vmem:[#allocation2 + $0x38] sm:$0x1] %vm215, 0
        %229 = vst.msk [vmem:[#allocation2 + $0x3c] sm:$0xf] %vm212, 0
        %230 = vst.msk [vmem:[#allocation2 + $0x40] sm:$0xf] %vm212, 0
        %231 = vst.msk [vmem:[#allocation2 + $0x44] sm:$0x1] %vm215, 0
        %232 = vst.msk [vmem:[#allocation2 + $0x48] sm:$0xf] %vm212, 0
        %233 = vst.msk [vmem:[#allocation2 + $0x4c] sm:$0xf] %vm212, 0
        %234 = vst.msk [vmem:[#allocation2 + $0x50] sm:$0x1] %vm215, 0
        %235 = vst.msk [vmem:[#allocation2 + $0x54] sm:$0xf] %vm212, 0
        %236 = vst.msk [vmem:[#allocation2 + $0x58] sm:$0xf] %vm212, 0
        %237 = vst.msk [vmem:[#allocation2 + $0x5c] sm:$0x1] %vm215, 0
        %238 = vst.msk [vmem:[#allocation2 + $0x60] sm:$0xf] %vm212, 0
        %239 = vst.msk [vmem:[#allocation2 + $0x64] sm:$0xf] %vm212, 0
        %240 = vst.msk [vmem:[#allocation2 + $0x68] sm:$0x1] %vm215, 0
        %241 = vst.msk [vmem:[#allocation2 + $0x6c] sm:$0xf] %vm212, 0
        %242 = vst.msk [vmem:[#allocation2 + $0x70] sm:$0xf] %vm212, 0
        %243 = vst.msk [vmem:[#allocation2 + $0x74] sm:$0x1] %vm215, 0
        %244 = vst.msk [vmem:[#allocation2 + $0x78] sm:$0xf] %vm212, 0
        %245 = vst.msk [vmem:[#allocation2 + $0x7c] sm:$0xf] %vm212, 0
        %246 = vst.msk [vmem:[#allocation2 + $0x80] sm:$0x1] %vm215, 0
        %247 = vst.msk [vmem:[#allocation2 + $0x84] sm:$0xf] %vm212, 0
        %248 = vst.msk [vmem:[#allocation2 + $0x88] sm:$0xf] %vm212, 0
        %249 = vst.msk [vmem:[#allocation2 + $0x8c] sm:$0x1] %vm215, 0
        %250 = vst.msk [vmem:[#allocation2 + $0x90] sm:$0xf] %vm212, 0
        %251 = vst.msk [vmem:[#allocation2 + $0x94] sm:$0xf] %vm212, 0
        %252 = vst.msk [vmem:[#allocation2 + $0x98] sm:$0x1] %vm215, 0
        %253 = vst.msk [vmem:[#allocation2 + $0x9c] sm:$0xf] %vm212, 0
        %254 = vst.msk [vmem:[#allocation2 + $0xa0] sm:$0xf] %vm212, 0
        %255 = vst.msk [vmem:[#allocation2 + $0xa4] sm:$0x1] %vm215, 0
        %256 = vst.msk [vmem:[#allocation2 + $0xa8] sm:$0xf] %vm212, 0
        %257 = vst.msk [vmem:[#allocation2 + $0xac] sm:$0xf] %vm212, 0
        %258 = vst.msk [vmem:[#allocation2 + $0xb0] sm:$0x1] %vm215, 0
        %259 = vst.msk [vmem:[#allocation2 + $0xb4] sm:$0xf] %vm212, 0
        %260 = vst.msk [vmem:[#allocation2 + $0xb8] sm:$0xf] %vm212, 0
        %261 = vst.msk [vmem:[#allocation2 + $0xbc] sm:$0x1] %vm215, 0
        %262 = vst.msk [vmem:[#allocation2 + $0xc0] sm:$0xf] %vm212, 0
        %263 = vst.msk [vmem:[#allocation2 + $0xc4] sm:$0xf] %vm212, 0
        %264 = vst.msk [vmem:[#allocation2 + $0xc8] sm:$0x1] %vm215, 0
        %265 = vst.msk [vmem:[#allocation2 + $0xcc] sm:$0xf] %vm212, 0
        %266 = vst.msk [vmem:[#allocation2 + $0xd0] sm:$0xf] %vm212, 0
        %267 = vst.msk [vmem:[#allocation2 + $0xd4] sm:$0x1] %vm215, 0
        %s268 = smul.u32 %s23, 16
        %s269 = smul.u32 %s268, 2
        %s270 = smul.addr %s269, 4
        %s271 = scalar_lea.vmem %s209, %s270
        %v272 = vld [vmem:[%s271] sm:$0xf]
        %v273 = vld [vmem:[%s271 + $0x4] sm:$0xf]
        %v274 = vld [vmem:[%s271 + $0x8] sm:$0xf]
        %v275 = vld [vmem:[%s271 + $0xc] sm:$0xf]
        %v276 = vld [vmem:[%s271 + $0x10] sm:$0xf]
        %v277 = vld [vmem:[%s271 + $0x14] sm:$0xf]
        %v278 = vld [vmem:[%s271 + $0x18] sm:$0xf]
        %v279 = vld [vmem:[%s271 + $0x1c] sm:$0xf]
        %v280 = vld [vmem:[%s271 + $0x20] sm:$0xf]
        %v281 = vld [vmem:[%s271 + $0x24] sm:$0xf]
        %v282 = vld [vmem:[%s271 + $0x28] sm:$0xf]
        %v283 = vld [vmem:[%s271 + $0x2c] sm:$0xf]
        %v284 = vld [vmem:[%s271 + $0x30] sm:$0xf]
        %v285 = vld [vmem:[%s271 + $0x34] sm:$0xf]
        %v286 = vld [vmem:[%s271 + $0x38] sm:$0xf]
        %v287 = vld [vmem:[%s271 + $0x3c] sm:$0xf]
        %v288 = vld [vmem:[%s271 + $0x40] sm:$0xf]
        %v289 = vld [vmem:[%s271 + $0x44] sm:$0xf]
        %v290 = vld [vmem:[%s271 + $0x48] sm:$0xf]
        %v291 = vld [vmem:[%s271 + $0x4c] sm:$0xf]
        %v292 = vld [vmem:[%s271 + $0x50] sm:$0xf]
        %v293 = vld [vmem:[%s271 + $0x54] sm:$0xf]
        %v294 = vld [vmem:[%s271 + $0x58] sm:$0xf]
        %v295 = vld [vmem:[%s271 + $0x5c] sm:$0xf]
        %v296 = vld [vmem:[%s271 + $0x60] sm:$0xf]
        %v297 = vld [vmem:[%s271 + $0x64] sm:$0xf]
        %v298 = vld [vmem:[%s271 + $0x68] sm:$0xf]
        %v299 = vld [vmem:[%s271 + $0x6c] sm:$0xf]
        %v300 = vld [vmem:[%s271 + $0x70] sm:$0xf]
        %v301 = vld [vmem:[%s271 + $0x74] sm:$0xf]
        %v302 = vld [vmem:[%s271 + $0x78] sm:$0xf]
        %v303 = vld [vmem:[%s271 + $0x7c] sm:$0xf]
        %vm304 = vsmask.f32 256
        %vm305 = vsmask.f32 4368
        %vm306 = vmor %vm304, %vm305
        %v308 = vshrl.u32 %v272, 16
        %v310 = vrot.slane %v308, 7
        %v311 = vshll.u32 %v272, 16
        %v313 = vor.u32 %v310, %v311
        %v314 = vrot.slane %v310, 4
        %v316 = vshrl.u32 %v273, 16
        %v318 = vrot.slane %v316, 7
        %v319 = vshll.u32 %v273, 16
        %v321 = vor.u32 %v318, %v319
        %v322 = vsel %vm306, %v314, %v321
        %v323 = vrot.slane %v318, 4
        %v325 = vshrl.u32 %v274, 16
        %v327 = vrot.slane %v325, 7
        %v328 = vshll.u32 %v274, 16
        %v330 = vor.u32 %v327, %v328
        %v331 = vrot.slane %v327, 4
        %v333 = vshrl.u32 %v275, 16
        %v335 = vrot.slane %v333, 7
        %v336 = vshll.u32 %v275, 16
        %v338 = vor.u32 %v335, %v336
        %v339 = vsel %vm306, %v331, %v338
        %v340 = vrot.slane %v335, 4
        %v342 = vshrl.u32 %v276, 16
        %v344 = vrot.slane %v342, 7
        %v345 = vshll.u32 %v276, 16
        %v347 = vor.u32 %v344, %v345
        %v348 = vrot.slane %v344, 4
        %v350 = vshrl.u32 %v277, 16
        %v352 = vrot.slane %v350, 7
        %v353 = vshll.u32 %v277, 16
        %v355 = vor.u32 %v352, %v353
        %v356 = vsel %vm306, %v348, %v355
        %v357 = vrot.slane %v352, 4
        %v359 = vshrl.u32 %v278, 16
        %v361 = vrot.slane %v359, 7
        %v362 = vshll.u32 %v278, 16
        %v364 = vor.u32 %v361, %v362
        %v365 = vrot.slane %v361, 4
        %v367 = vshrl.u32 %v279, 16
        %v369 = vrot.slane %v367, 7
        %v370 = vshll.u32 %v279, 16
        %v372 = vor.u32 %v369, %v370
        %v373 = vsel %vm306, %v365, %v372
        %v374 = vrot.slane %v369, 4
        %v376 = vshrl.u32 %v280, 16
        %v378 = vrot.slane %v376, 7
        %v379 = vshll.u32 %v280, 16
        %v381 = vor.u32 %v378, %v379
        %v382 = vrot.slane %v378, 4
        %v384 = vshrl.u32 %v281, 16
        %v386 = vrot.slane %v384, 7
        %v387 = vshll.u32 %v281, 16
        %v389 = vor.u32 %v386, %v387
        %v390 = vsel %vm306, %v382, %v389
        %v391 = vrot.slane %v386, 4
        %v393 = vshrl.u32 %v282, 16
        %v395 = vrot.slane %v393, 7
        %v396 = vshll.u32 %v282, 16
        %v398 = vor.u32 %v395, %v396
        %v399 = vrot.slane %v395, 4
        %v401 = vshrl.u32 %v283, 16
        %v403 = vrot.slane %v401, 7
        %v404 = vshll.u32 %v283, 16
        %v406 = vor.u32 %v403, %v404
        %v407 = vsel %vm306, %v399, %v406
        %v408 = vrot.slane %v403, 4
        %v410 = vshrl.u32 %v284, 16
        %v412 = vrot.slane %v410, 7
        %v413 = vshll.u32 %v284, 16
        %v415 = vor.u32 %v412, %v413
        %v416 = vrot.slane %v412, 4
        %v418 = vshrl.u32 %v285, 16
        %v420 = vrot.slane %v418, 7
        %v421 = vshll.u32 %v285, 16
        %v423 = vor.u32 %v420, %v421
        %v424 = vsel %vm306, %v416, %v423
        %v425 = vrot.slane %v420, 4
        %v427 = vshrl.u32 %v286, 16
        %v429 = vrot.slane %v427, 7
        %v430 = vshll.u32 %v286, 16
        %v432 = vor.u32 %v429, %v430
        %v433 = vrot.slane %v429, 4
        %v435 = vshrl.u32 %v287, 16
        %v437 = vrot.slane %v435, 7
        %v438 = vshll.u32 %v287, 16
        %v440 = vor.u32 %v437, %v438
        %v441 = vsel %vm306, %v433, %v440
        %v442 = vrot.slane %v437, 4
        %v444 = vshrl.u32 %v288, 16
        %v446 = vrot.slane %v444, 7
        %v447 = vshll.u32 %v288, 16
        %v449 = vor.u32 %v446, %v447
        %v450 = vrot.slane %v446, 4
        %v452 = vshrl.u32 %v289, 16
        %v454 = vrot.slane %v452, 7
        %v455 = vshll.u32 %v289, 16
        %v457 = vor.u32 %v454, %v455
        %v458 = vsel %vm306, %v450, %v457
        %v459 = vrot.slane %v454, 4
        %v461 = vshrl.u32 %v290, 16
        %v463 = vrot.slane %v461, 7
        %v464 = vshll.u32 %v290, 16
        %v466 = vor.u32 %v463, %v464
        %v467 = vrot.slane %v463, 4
        %v469 = vshrl.u32 %v291, 16
        %v471 = vrot.slane %v469, 7
        %v472 = vshll.u32 %v291, 16
        %v474 = vor.u32 %v471, %v472
        %v475 = vsel %vm306, %v467, %v474
        %v476 = vrot.slane %v471, 4
        %v478 = vshrl.u32 %v292, 16
        %v480 = vrot.slane %v478, 7
        %v481 = vshll.u32 %v292, 16
        %v483 = vor.u32 %v480, %v481
        %v484 = vrot.slane %v480, 4
        %v486 = vshrl.u32 %v293, 16
        %v488 = vrot.slane %v486, 7
        %v489 = vshll.u32 %v293, 16
        %v491 = vor.u32 %v488, %v489
        %v492 = vsel %vm306, %v484, %v491
        %v493 = vrot.slane %v488, 4
        %v495 = vshrl.u32 %v294, 16
        %v497 = vrot.slane %v495, 7
        %v498 = vshll.u32 %v294, 16
        %v500 = vor.u32 %v497, %v498
        %v501 = vrot.slane %v497, 4
        %v503 = vshrl.u32 %v295, 16
        %v505 = vrot.slane %v503, 7
        %v506 = vshll.u32 %v295, 16
        %v508 = vor.u32 %v505, %v506
        %v509 = vsel %vm306, %v501, %v508
        %v510 = vrot.slane %v505, 4
        %v512 = vshrl.u32 %v296, 16
        %v514 = vrot.slane %v512, 7
        %v515 = vshll.u32 %v296, 16
        %v517 = vor.u32 %v514, %v515
        %v518 = vrot.slane %v514, 4
        %v520 = vshrl.u32 %v297, 16
        %v522 = vrot.slane %v520, 7
        %v523 = vshll.u32 %v297, 16
        %v525 = vor.u32 %v522, %v523
        %v526 = vsel %vm306, %v518, %v525
        %v527 = vrot.slane %v522, 4
        %v529 = vshrl.u32 %v298, 16
        %v531 = vrot.slane %v529, 7
        %v532 = vshll.u32 %v298, 16
        %v534 = vor.u32 %v531, %v532
        %v535 = vrot.slane %v531, 4
        %v537 = vshrl.u32 %v299, 16
        %v539 = vrot.slane %v537, 7
        %v540 = vshll.u32 %v299, 16
        %v542 = vor.u32 %v539, %v540
        %v543 = vsel %vm306, %v535, %v542
        %v544 = vrot.slane %v539, 4
        %v546 = vshrl.u32 %v300, 16
        %v548 = vrot.slane %v546, 7
        %v549 = vshll.u32 %v300, 16
        %v551 = vor.u32 %v548, %v549
        %v552 = vrot.slane %v548, 4
        %v554 = vshrl.u32 %v301, 16
        %v556 = vrot.slane %v554, 7
        %v557 = vshll.u32 %v301, 16
        %v559 = vor.u32 %v556, %v557
        %v560 = vsel %vm306, %v552, %v559
        %v561 = vrot.slane %v556, 4
        %v563 = vshrl.u32 %v302, 16
        %v565 = vrot.slane %v563, 7
        %v566 = vshll.u32 %v302, 16
        %v568 = vor.u32 %v565, %v566
        %v569 = vrot.slane %v565, 4
        %v571 = vshrl.u32 %v303, 16
        %v573 = vrot.slane %v571, 7
        %v574 = vshll.u32 %v303, 16
        %v576 = vor.u32 %v573, %v574
        %v577 = vsel %vm306, %v569, %v576
        %v578 = vrot.slane %v573, 4
        %s627 = scalar_lea.vmem [#allocation2], 12
        %vm628 = vcmask 60416
        %vm629 = vsmask.f32 7938
        %vm630 = vmand %vm628, %vm629
        %v631 = vld [vmem:[%s627] sm:$0xf]
        %v632 = vsel %vm630, %v313, %v631
        %633 = vst [vmem:[%s627] sm:$0xf] %v632
        %634 = vst.msk [vmem:[%s627 + $0x4] sm:$0xf] %vm212, %v322
        %vm635 = vcmask 57344
        %vm636 = vmand %vm635, %vm304
        %v637 = vld [vmem:[%s627 + $0x8] sm:$0x1]
        %v638 = vsel %vm636, %v323, %v637
        %639 = vst [vmem:[%s627 + $0x8] sm:$0x1] %v638
        %v640 = vld [vmem:[%s627 + $0xc] sm:$0xf]
        %v641 = vsel %vm630, %v330, %v640
        %642 = vst [vmem:[%s627 + $0xc] sm:$0xf] %v641
        %643 = vst.msk [vmem:[%s627 + $0x10] sm:$0xf] %vm212, %v339
        %v644 = vld [vmem:[%s627 + $0x14] sm:$0x1]
        %v645 = vsel %vm636, %v340, %v644
        %646 = vst [vmem:[%s627 + $0x14] sm:$0x1] %v645
        %v647 = vld [vmem:[%s627 + $0x18] sm:$0xf]
        %v648 = vsel %vm630, %v347, %v647
        %649 = vst [vmem:[%s627 + $0x18] sm:$0xf] %v648
        %650 = vst.msk [vmem:[%s627 + $0x1c] sm:$0xf] %vm212, %v356
        %v651 = vld [vmem:[%s627 + $0x20] sm:$0x1]
        %v652 = vsel %vm636, %v357, %v651
        %653 = vst [vmem:[%s627 + $0x20] sm:$0x1] %v652
        %v654 = vld [vmem:[%s627 + $0x24] sm:$0xf]
        %v655 = vsel %vm630, %v364, %v654
        %656 = vst [vmem:[%s627 + $0x24] sm:$0xf] %v655
        %657 = vst.msk [vmem:[%s627 + $0x28] sm:$0xf] %vm212, %v373
        %v658 = vld [vmem:[%s627 + $0x2c] sm:$0x1]
        %v659 = vsel %vm636, %v374, %v658
        %660 = vst [vmem:[%s627 + $0x2c] sm:$0x1] %v659
        %v661 = vld [vmem:[%s627 + $0x30] sm:$0xf]
        %v662 = vsel %vm630, %v381, %v661
        %663 = vst [vmem:[%s627 + $0x30] sm:$0xf] %v662
        %664 = vst.msk [vmem:[%s627 + $0x34] sm:$0xf] %vm212, %v390
        %v665 = vld [vmem:[%s627 + $0x38] sm:$0x1]
        %v666 = vsel %vm636, %v391, %v665
        %667 = vst [vmem:[%s627 + $0x38] sm:$0x1] %v666
        %v668 = vld [vmem:[%s627 + $0x3c] sm:$0xf]
        %v669 = vsel %vm630, %v398, %v668
        %670 = vst [vmem:[%s627 + $0x3c] sm:$0xf] %v669
        %671 = vst.msk [vmem:[%s627 + $0x40] sm:$0xf] %vm212, %v407
        %v672 = vld [vmem:[%s627 + $0x44] sm:$0x1]
        %v673 = vsel %vm636, %v408, %v672
        %674 = vst [vmem:[%s627 + $0x44] sm:$0x1] %v673
        %v675 = vld [vmem:[%s627 + $0x48] sm:$0xf]
        %v676 = vsel %vm630, %v415, %v675
        %677 = vst [vmem:[%s627 + $0x48] sm:$0xf] %v676
        %678 = vst.msk [vmem:[%s627 + $0x4c] sm:$0xf] %vm212, %v424
        %v679 = vld [vmem:[%s627 + $0x50] sm:$0x1]
        %v680 = vsel %vm636, %v425, %v679
        %681 = vst [vmem:[%s627 + $0x50] sm:$0x1] %v680
        %v682 = vld [vmem:[%s627 + $0x54] sm:$0xf]
        %v683 = vsel %vm630, %v432, %v682
        %684 = vst [vmem:[%s627 + $0x54] sm:$0xf] %v683
        %685 = vst.msk [vmem:[%s627 + $0x58] sm:$0xf] %vm212, %v441
        %v686 = vld [vmem:[%s627 + $0x5c] sm:$0x1]
        %v687 = vsel %vm636, %v442, %v686
        %688 = vst [vmem:[%s627 + $0x5c] sm:$0x1] %v687
        %v689 = vld [vmem:[%s627 + $0x60] sm:$0xf]
        %v690 = vsel %vm630, %v449, %v689
        %691 = vst [vmem:[%s627 + $0x60] sm:$0xf] %v690
        %692 = vst.msk [vmem:[%s627 + $0x64] sm:$0xf] %vm212, %v458
        %v693 = vld [vmem:[%s627 + $0x68] sm:$0x1]
        %v694 = vsel %vm636, %v459, %v693
        %695 = vst [vmem:[%s627 + $0x68] sm:$0x1] %v694
        %v696 = vld [vmem:[%s627 + $0x6c] sm:$0xf]
        %v697 = vsel %vm630, %v466, %v696
        %698 = vst [vmem:[%s627 + $0x6c] sm:$0xf] %v697
        %699 = vst.msk [vmem:[%s627 + $0x70] sm:$0xf] %vm212, %v475
        %v700 = vld [vmem:[%s627 + $0x74] sm:$0x1]
        %v701 = vsel %vm636, %v476, %v700
        %702 = vst [vmem:[%s627 + $0x74] sm:$0x1] %v701
        %v703 = vld [vmem:[%s627 + $0x78] sm:$0xf]
        %v704 = vsel %vm630, %v483, %v703
        %705 = vst [vmem:[%s627 + $0x78] sm:$0xf] %v704
        %706 = vst.msk [vmem:[%s627 + $0x7c] sm:$0xf] %vm212, %v492
        %v707 = vld [vmem:[%s627 + $0x80] sm:$0x1]
        %v708 = vsel %vm636, %v493, %v707
        %709 = vst [vmem:[%s627 + $0x80] sm:$0x1] %v708
        %v710 = vld [vmem:[%s627 + $0x84] sm:$0xf]
        %v711 = vsel %vm630, %v500, %v710
        %712 = vst [vmem:[%s627 + $0x84] sm:$0xf] %v711
        %713 = vst.msk [vmem:[%s627 + $0x88] sm:$0xf] %vm212, %v509
        %v714 = vld [vmem:[%s627 + $0x8c] sm:$0x1]
        %v715 = vsel %vm636, %v510, %v714
        %716 = vst [vmem:[%s627 + $0x8c] sm:$0x1] %v715
        %v717 = vld [vmem:[%s627 + $0x90] sm:$0xf]
        %v718 = vsel %vm630, %v517, %v717
        %719 = vst [vmem:[%s627 + $0x90] sm:$0xf] %v718
        %720 = vst.msk [vmem:[%s627 + $0x94] sm:$0xf] %vm212, %v526
        %v721 = vld [vmem:[%s627 + $0x98] sm:$0x1]
        %v722 = vsel %vm636, %v527, %v721
        %723 = vst [vmem:[%s627 + $0x98] sm:$0x1] %v722
        %v724 = vld [vmem:[%s627 + $0x9c] sm:$0xf]
        %v725 = vsel %vm630, %v534, %v724
        %726 = vst [vmem:[%s627 + $0x9c] sm:$0xf] %v725
        %727 = vst.msk [vmem:[%s627 + $0xa0] sm:$0xf] %vm212, %v543
        %v728 = vld [vmem:[%s627 + $0xa4] sm:$0x1]
        %v729 = vsel %vm636, %v544, %v728
        %730 = vst [vmem:[%s627 + $0xa4] sm:$0x1] %v729
        %v731 = vld [vmem:[%s627 + $0xa8] sm:$0xf]
        %v732 = vsel %vm630, %v551, %v731
        %733 = vst [vmem:[%s627 + $0xa8] sm:$0xf] %v732
        %734 = vst.msk [vmem:[%s627 + $0xac] sm:$0xf] %vm212, %v560
        %v735 = vld [vmem:[%s627 + $0xb0] sm:$0x1]
        %v736 = vsel %vm636, %v561, %v735
        %737 = vst [vmem:[%s627 + $0xb0] sm:$0x1] %v736
        %v738 = vld [vmem:[%s627 + $0xb4] sm:$0xf]
        %v739 = vsel %vm630, %v568, %v738
        %740 = vst [vmem:[%s627 + $0xb4] sm:$0xf] %v739
        %741 = vst.msk [vmem:[%s627 + $0xb8] sm:$0xf] %vm212, %v577
        %v742 = vld [vmem:[%s627 + $0xbc] sm:$0x1]
        %v743 = vsel %vm636, %v578, %v742
        %744 = vst [vmem:[%s627 + $0xbc] sm:$0x1] %v743
        %p745 = scmp.gt.s32.totalorder %s23, 0
        // Predicated region
        $region37: #{tpu_custom_call.1} parent=35 // pred_check
          %p746 = pneg %p745
        $region38: #{tpu_custom_call.1} parent=35 // pred_check_branch
          %748 = sbr.rel (%p746) target = $region40
        $region39: #{tpu_custom_call.1} parent=35 // pred_region
          %s749 = ssub.s32 %s268, 1
          %s750 = smul.u32 %s749, 2
          %s751 = smul.addr %s750, 4
          %s752 = scalar_lea.vmem %s209, %s751
          %v753 = vld [vmem:[%s752] sm:$0xf]
          %v754 = vld [vmem:[%s752 + $0x4] sm:$0xf]
          %v756 = vshrl.u32 %v753, 16
          %v758 = vrot.slane %v756, 7
          %v759 = vshll.u32 %v753, 16
          %v761 = vor.u32 %v758, %v759
          %v762 = vrot.slane %v758, 4
          %v764 = vshrl.u32 %v754, 16
          %v766 = vrot.slane %v764, 7
          %v767 = vshll.u32 %v754, 16
          %v769 = vor.u32 %v766, %v767
          %v770 = vsel %vm306, %v762, %v769
          %v771 = vrot.slane %v766, 4
          %v775 = vld [vmem:[#allocation2] sm:$0xf]
          %v776 = vsel %vm630, %v761, %v775
          %777 = vst [vmem:[#allocation2] sm:$0xf] %v776
          %778 = vst.msk [vmem:[#allocation2 + $0x4] sm:$0xf] %vm212, %v770
          %v779 = vld [vmem:[#allocation2 + $0x8] sm:$0x1]
          %v780 = vsel %vm636, %v771, %v779
          %781 = vst [vmem:[#allocation2 + $0x8] sm:$0x1] %v780
        $region40: #{tpu_custom_call.1} parent=35 // pred_fallthru
          _
        %s782 = sadd.s32 %s268, 16
        %p783 = scmp.lt.s32.totalorder %s782, 16
        // Predicated region
        $region41: #{tpu_custom_call.1} parent=35 // pred_check
          %p784 = pneg %p783
        $region42: #{tpu_custom_call.1} parent=35 // pred_check_branch
          %786 = sbr.rel (%p784) target = $region44
        $region43: #{tpu_custom_call.1} parent=35 // pred_region
          %s787 = smul.u32 %s782, 2
          %s788 = smul.addr %s787, 4
          %s789 = scalar_lea.vmem %s209, %s788
          %v790 = vld [vmem:[%s789] sm:$0xf]
          %v791 = vld [vmem:[%s789 + $0x4] sm:$0xf]
          %v793 = vshrl.u32 %v790, 16
          %v795 = vrot.slane %v793, 7
          %v796 = vshll.u32 %v790, 16
          %v798 = vor.u32 %v795, %v796
          %v799 = vrot.slane %v795, 4
          %v801 = vshrl.u32 %v791, 16
          %v803 = vrot.slane %v801, 7
          %v804 = vshll.u32 %v791, 16
          %v806 = vor.u32 %v803, %v804
          %v807 = vsel %vm306, %v799, %v806
          %v808 = vrot.slane %v803, 4
          %s812 = scalar_lea.vmem [#allocation2], 204
          %v813 = vld [vmem:[%s812] sm:$0xf]
          %v814 = vsel %vm630, %v798, %v813
          %815 = vst [vmem:[%s812] sm:$0xf] %v814
          %816 = vst.msk [vmem:[%s812 + $0x4] sm:$0xf] %vm212, %v807
          %v817 = vld [vmem:[%s812 + $0x8] sm:$0x1]
          %v818 = vsel %vm636, %v808, %v817
          %819 = vst [vmem:[%s812 + $0x8] sm:$0x1] %v818
        $region44: #{tpu_custom_call.1} parent=35 // pred_fallthru
          _
        %v820 = vld [vmem:[#allocation2] sm:$0xf]
        %v821 = vld [vmem:[#allocation2 + $0x4] sm:$0xf]
        %v822 = vld [vmem:[#allocation2 + $0xc] sm:$0xf]
        %v823 = vld [vmem:[#allocation2 + $0x10] sm:$0xf]
        %v824 = vld [vmem:[#allocation2 + $0x18] sm:$0xf]
        %v825 = vld [vmem:[#allocation2 + $0x1c] sm:$0xf]
        %v826 = vld [vmem:[#allocation2 + $0x24] sm:$0xf]
        %v827 = vld [vmem:[#allocation2 + $0x28] sm:$0xf]
        %v828 = vld [vmem:[#allocation2 + $0x30] sm:$0xf]
        %v829 = vld [vmem:[#allocation2 + $0x34] sm:$0xf]
        %v830 = vld [vmem:[#allocation2 + $0x3c] sm:$0xf]
        %v831 = vld [vmem:[#allocation2 + $0x40] sm:$0xf]
        %v832 = vld [vmem:[#allocation2 + $0x48] sm:$0xf]
        %v833 = vld [vmem:[#allocation2 + $0x4c] sm:$0xf]
        %v834 = vld [vmem:[#allocation2 + $0x54] sm:$0xf]
        %v835 = vld [vmem:[#allocation2 + $0x58] sm:$0xf]
        %v836 = vld [vmem:[#allocation2 + $0x60] sm:$0xf]
        %v837 = vld [vmem:[#allocation2 + $0x64] sm:$0xf]
        %v838 = vld [vmem:[#allocation2 + $0x6c] sm:$0xf]
        %v839 = vld [vmem:[#allocation2 + $0x70] sm:$0xf]
        %v840 = vld [vmem:[#allocation2 + $0x78] sm:$0xf]
        %v841 = vld [vmem:[#allocation2 + $0x7c] sm:$0xf]
        %v842 = vld [vmem:[#allocation2 + $0x84] sm:$0xf]
        %v843 = vld [vmem:[#allocation2 + $0x88] sm:$0xf]
        %v844 = vld [vmem:[#allocation2 + $0x90] sm:$0xf]
        %v845 = vld [vmem:[#allocation2 + $0x94] sm:$0xf]
        %v846 = vld [vmem:[#allocation2 + $0x9c] sm:$0xf]
        %v847 = vld [vmem:[#allocation2 + $0xa0] sm:$0xf]
        %v848 = vld [vmem:[#allocation2 + $0xa8] sm:$0xf]
        %v849 = vld [vmem:[#allocation2 + $0xac] sm:$0xf]
        %v850 = vld [vmem:[#allocation2 + $0xb4] sm:$0xf]
        %v851 = vld [vmem:[#allocation2 + $0xb8] sm:$0xf]
        %v852 = vld [vmem:[%s1] sm:$0xf]
        %v885 = vunpack.c.l.b16 %v820
        %v886 = vunpack.c.l.b16 %v821
        %v887 = vunpack.c.l.b16 %v822
        %v888 = vunpack.c.l.b16 %v823
        %v889 = vunpack.c.l.b16 %v824
        %v890 = vunpack.c.l.b16 %v825
        %v891 = vunpack.c.l.b16 %v826
        %v892 = vunpack.c.l.b16 %v827
        %v893 = vunpack.c.l.b16 %v828
        %v894 = vunpack.c.l.b16 %v829
        %v895 = vunpack.c.l.b16 %v830
        %v896 = vunpack.c.l.b16 %v831
        %v897 = vunpack.c.l.b16 %v832
        %v898 = vunpack.c.l.b16 %v833
        %v899 = vunpack.c.l.b16 %v834
        %v900 = vunpack.c.l.b16 %v835
        %v901 = vunpack.c.l.b16 %v836
        %v902 = vunpack.c.l.b16 %v837
        %v903 = vunpack.c.l.b16 %v838
        %v904 = vunpack.c.l.b16 %v839
        %v905 = vunpack.c.l.b16 %v840
        %v906 = vunpack.c.l.b16 %v841
        %v907 = vunpack.c.l.b16 %v842
        %v908 = vunpack.c.l.b16 %v843
        %v909 = vunpack.c.l.b16 %v844
        %v910 = vunpack.c.l.b16 %v845
        %v911 = vunpack.c.l.b16 %v846
        %v912 = vunpack.c.l.b16 %v847
        %v913 = vunpack.c.l.b16 %v848
        %v914 = vunpack.c.l.b16 %v849
        %v915 = vunpack.c.l.b16 %v850
        %v916 = vunpack.c.l.b16 %v851
        %v917 = vpack.c.b16 %v886, %v885
        %v918 = vpack.c.b16 %v888, %v887
        %v919 = vpack.c.b16 %v890, %v889
        %v920 = vpack.c.b16 %v892, %v891
        %v921 = vpack.c.b16 %v894, %v893
        %v922 = vpack.c.b16 %v896, %v895
        %v923 = vpack.c.b16 %v898, %v897
        %v924 = vpack.c.b16 %v900, %v899
        %v925 = vpack.c.b16 %v902, %v901
        %v926 = vpack.c.b16 %v904, %v903
        %v927 = vpack.c.b16 %v906, %v905
        %v928 = vpack.c.b16 %v908, %v907
        %v929 = vpack.c.b16 %v910, %v909
        %v930 = vpack.c.b16 %v912, %v911
        %v931 = vpack.c.b16 %v914, %v913
        %v932 = vpack.c.b16 %v916, %v915
        %vm933 = vcmask 64512
        %v935 = vsel %vm933, %v917, 0
        %v938 = vsel %vm933, %v918, 0
        %v941 = vsel %vm933, %v919, 0
        %v944 = vsel %vm933, %v920, 0
        %v947 = vsel %vm933, %v921, 0
        %v950 = vsel %vm933, %v922, 0
        %v953 = vsel %vm933, %v923, 0
        %v956 = vsel %vm933, %v924, 0
        %v959 = vsel %vm933, %v925, 0
        %v962 = vsel %vm933, %v926, 0
        %v965 = vsel %vm933, %v927, 0
        %v968 = vsel %vm933, %v928, 0
        %v971 = vsel %vm933, %v929, 0
        %v974 = vsel %vm933, %v930, 0
        %v977 = vsel %vm933, %v931, 0
        %v980 = vsel %vm933, %v932, 0
        %vm982 = vcmask 1043456
        %v984 = vsel %vm982, %v852, 0
        %986 = vmatpush.bf16.msra.mxu0 0
        %987 = vmatpush.bf16.msra.mxu0 0
        %988 = vmatpush.bf16.msra.mxu0 0
        %989 = vmatpush.bf16.msra.mxu0 0
        %990 = vmatpush.bf16.msra.mxu0 0
        %991 = vmatpush.bf16.msra.mxu0 0
        %992 = vmatpush.bf16.msra.mxu0 0
        %993 = vmatpush.bf16.msra.mxu0 %v984
        %994 = vmatmul.bf16.gmra.mxu0 %v935
        %v995 = vpop.f32.mrf.mxu0
        %v996 = vadd.f32 0.0, %v995
        %v997 = vpop.f32.mrf.mxu0
        %v998 = vadd.f32 0.0, %v997
        %999 = vmatmul.bf16.gmra.mxu0 %v938
        %v1000 = vpop.f32.mrf.mxu0
        %v1001 = vadd.f32 0.0, %v1000
        %v1002 = vpop.f32.mrf.mxu0
        %v1003 = vadd.f32 0.0, %v1002
        %1004 = vmatmul.bf16.gmra.mxu0 %v941
        %v1005 = vpop.f32.mrf.mxu0
        %v1006 = vadd.f32 0.0, %v1005
        %v1007 = vpop.f32.mrf.mxu0
        %v1008 = vadd.f32 0.0, %v1007
        %1009 = vmatmul.bf16.gmra.mxu0 %v944
        %v1010 = vpop.f32.mrf.mxu0
        %v1011 = vadd.f32 0.0, %v1010
        %v1012 = vpop.f32.mrf.mxu0
        %v1013 = vadd.f32 0.0, %v1012
        %1014 = vmatmul.bf16.gmra.mxu0 %v947
        %v1015 = vpop.f32.mrf.mxu0
        %v1016 = vadd.f32 0.0, %v1015
        %v1017 = vpop.f32.mrf.mxu0
        %v1018 = vadd.f32 0.0, %v1017
        %1019 = vmatmul.bf16.gmra.mxu0 %v950
        %v1020 = vpop.f32.mrf.mxu0
        %v1021 = vadd.f32 0.0, %v1020
        %v1022 = vpop.f32.mrf.mxu0
        %v1023 = vadd.f32 0.0, %v1022
        %1024 = vmatmul.bf16.gmra.mxu0 %v953
        %v1025 = vpop.f32.mrf.mxu0
        %v1026 = vadd.f32 0.0, %v1025
        %v1027 = vpop.f32.mrf.mxu0
        %v1028 = vadd.f32 0.0, %v1027
        %1029 = vmatmul.bf16.gmra.mxu0 %v956
        %v1030 = vpop.f32.mrf.mxu0
        %v1031 = vadd.f32 0.0, %v1030
        %v1032 = vpop.f32.mrf.mxu0
        %v1033 = vadd.f32 0.0, %v1032
        %1034 = vmatmul.bf16.gmra.mxu0 %v959
        %v1035 = vpop.f32.mrf.mxu0
        %v1036 = vadd.f32 0.0, %v1035
        %v1037 = vpop.f32.mrf.mxu0
        %v1038 = vadd.f32 0.0, %v1037
        %1039 = vmatmul.bf16.gmra.mxu0 %v962
        %v1040 = vpop.f32.mrf.mxu0
        %v1041 = vadd.f32 0.0, %v1040
        %v1042 = vpop.f32.mrf.mxu0
        %v1043 = vadd.f32 0.0, %v1042
        %1044 = vmatmul.bf16.gmra.mxu0 %v965
        %v1045 = vpop.f32.mrf.mxu0
        %v1046 = vadd.f32 0.0, %v1045
        %v1047 = vpop.f32.mrf.mxu0
        %v1048 = vadd.f32 0.0, %v1047
        %1049 = vmatmul.bf16.gmra.mxu0 %v968
        %v1050 = vpop.f32.mrf.mxu0
        %v1051 = vadd.f32 0.0, %v1050
        %v1052 = vpop.f32.mrf.mxu0
        %v1053 = vadd.f32 0.0, %v1052
        %1054 = vmatmul.bf16.gmra.mxu0 %v971
        %v1055 = vpop.f32.mrf.mxu0
        %v1056 = vadd.f32 0.0, %v1055
        %v1057 = vpop.f32.mrf.mxu0
        %v1058 = vadd.f32 0.0, %v1057
        %1059 = vmatmul.bf16.gmra.mxu0 %v974
        %v1060 = vpop.f32.mrf.mxu0
        %v1061 = vadd.f32 0.0, %v1060
        %v1062 = vpop.f32.mrf.mxu0
        %v1063 = vadd.f32 0.0, %v1062
        %1064 = vmatmul.bf16.gmra.mxu0 %v977
        %v1065 = vpop.f32.mrf.mxu0
        %v1066 = vadd.f32 0.0, %v1065
        %v1067 = vpop.f32.mrf.mxu0
        %v1068 = vadd.f32 0.0, %v1067
        %1069 = vmatmul.bf16.gmra.mxu0 %v980
        %v1070 = vpop.f32.mrf.mxu0
        %v1071 = vadd.f32 0.0, %v1070
        %v1072 = vpop.f32.mrf.mxu0
        %v1073 = vadd.f32 0.0, %v1072
        %1074 = vdwg.mxu0
        %vm1075 = vcmask 523264
        %1076 = vst.msk [vmem:[#allocation3] sm:$0xff] %vm1075, %v996
        %1077 = vst.msk [vmem:[#allocation3 + $0x8] sm:$0xff] %vm1075, %v998
        %1078 = vst.msk [vmem:[#allocation3 + $0x10] sm:$0xff] %vm1075, %v1001
        %1079 = vst.msk [vmem:[#allocation3 + $0x18] sm:$0xff] %vm1075, %v1003
        %1080 = vst.msk [vmem:[#allocation3 + $0x20] sm:$0xff] %vm1075, %v1006
        %1081 = vst.msk [vmem:[#allocation3 + $0x28] sm:$0xff] %vm1075, %v1008
        %1082 = vst.msk [vmem:[#allocation3 + $0x30] sm:$0xff] %vm1075, %v1011
        %1083 = vst.msk [vmem:[#allocation3 + $0x38] sm:$0xff] %vm1075, %v1013
        %1084 = vst.msk [vmem:[#allocation3 + $0x40] sm:$0xff] %vm1075, %v1016
        %1085 = vst.msk [vmem:[#allocation3 + $0x48] sm:$0xff] %vm1075, %v1018
        %1086 = vst.msk [vmem:[#allocation3 + $0x50] sm:$0xff] %vm1075, %v1021
        %1087 = vst.msk [vmem:[#allocation3 + $0x58] sm:$0xff] %vm1075, %v1023
        %1088 = vst.msk [vmem:[#allocation3 + $0x60] sm:$0xff] %vm1075, %v1026
        %1089 = vst.msk [vmem:[#allocation3 + $0x68] sm:$0xff] %vm1075, %v1028
        %1090 = vst.msk [vmem:[#allocation3 + $0x70] sm:$0xff] %vm1075, %v1031
        %1091 = vst.msk [vmem:[#allocation3 + $0x78] sm:$0xff] %vm1075, %v1033
        %1092 = vst.msk [vmem:[#allocation3 + $0x80] sm:$0xff] %vm1075, %v1036
        %1093 = vst.msk [vmem:[#allocation3 + $0x88] sm:$0xff] %vm1075, %v1038
        %1094 = vst.msk [vmem:[#allocation3 + $0x90] sm:$0xff] %vm1075, %v1041
        %1095 = vst.msk [vmem:[#allocation3 + $0x98] sm:$0xff] %vm1075, %v1043
        %1096 = vst.msk [vmem:[#allocation3 + $0xa0] sm:$0xff] %vm1075, %v1046
        %1097 = vst.msk [vmem:[#allocation3 + $0xa8] sm:$0xff] %vm1075, %v1048
        %1098 = vst.msk [vmem:[#allocation3 + $0xb0] sm:$0xff] %vm1075, %v1051
        %1099 = vst.msk [vmem:[#allocation3 + $0xb8] sm:$0xff] %vm1075, %v1053
        %1100 = vst.msk [vmem:[#allocation3 + $0xc0] sm:$0xff] %vm1075, %v1056
        %1101 = vst.msk [vmem:[#allocation3 + $0xc8] sm:$0xff] %vm1075, %v1058
        %1102 = vst.msk [vmem:[#allocation3 + $0xd0] sm:$0xff] %vm1075, %v1061
        %1103 = vst.msk [vmem:[#allocation3 + $0xd8] sm:$0xff] %vm1075, %v1063
        %1104 = vst.msk [vmem:[#allocation3 + $0xe0] sm:$0xff] %vm1075, %v1066
        %1105 = vst.msk [vmem:[#allocation3 + $0xe8] sm:$0xff] %vm1075, %v1068
        %1106 = vst.msk [vmem:[#allocation3 + $0xf0] sm:$0xff] %vm1075, %v1071
        %1107 = vst.msk [vmem:[#allocation3 + $0xf8] sm:$0xff] %vm1075, %v1073
        %v1108 = vld [vmem:[#allocation2] sm:$0xf]
        %v1109 = vld [vmem:[#allocation2 + $0x4] sm:$0xf]
        %v1110 = vld [vmem:[#allocation2 + $0x8] sm:$0x1]
        %v1111 = vld [vmem:[#allocation2 + $0xc] sm:$0xf]
        %v1112 = vld [vmem:[#allocation2 + $0x10] sm:$0xf]
        %v1113 = vld [vmem:[#allocation2 + $0x14] sm:$0x1]
        %v1114 = vld [vmem:[#allocation2 + $0x18] sm:$0xf]
        %v1115 = vld [vmem:[#allocation2 + $0x1c] sm:$0xf]
        %v1116 = vld [vmem:[#allocation2 + $0x20] sm:$0x1]
        %v1117 = vld [vmem:[#allocation2 + $0x24] sm:$0xf]
        %v1118 = vld [vmem:[#allocation2 + $0x28] sm:$0xf]
        %v1119 = vld [vmem:[#allocation2 + $0x2c] sm:$0x1]
        %v1120 = vld [vmem:[#allocation2 + $0x30] sm:$0xf]
        %v1121 = vld [vmem:[#allocation2 + $0x34] sm:$0xf]
        %v1122 = vld [vmem:[#allocation2 + $0x38] sm:$0x1]
        %v1123 = vld [vmem:[#allocation2 + $0x3c] sm:$0xf]
        %v1124 = vld [vmem:[#allocation2 + $0x40] sm:$0xf]
        %v1125 = vld [vmem:[#allocation2 + $0x44] sm:$0x1]
        %v1126 = vld [vmem:[#allocation2 + $0x48] sm:$0xf]
        %v1127 = vld [vmem:[#allocation2 + $0x4c] sm:$0xf]
        %v1128 = vld [vmem:[#allocation2 + $0x50] sm:$0x1]
        %v1129 = vld [vmem:[#allocation2 + $0x54] sm:$0xf]
        %v1130 = vld [vmem:[#allocation2 + $0x58] sm:$0xf]
        %v1131 = vld [vmem:[#allocation2 + $0x5c] sm:$0x1]
        %v1132 = vld [vmem:[#allocation2 + $0x60] sm:$0xf]
        %v1133 = vld [vmem:[#allocation2 + $0x64] sm:$0xf]
        %v1134 = vld [vmem:[#allocation2 + $0x68] sm:$0x1]
        %v1135 = vld [vmem:[#allocation2 + $0x6c] sm:$0xf]
        %v1136 = vld [vmem:[#allocation2 + $0x70] sm:$0xf]
        %v1137 = vld [vmem:[#allocation2 + $0x74] sm:$0x1]
        %v1138 = vld [vmem:[#allocation2 + $0x78] sm:$0xf]
        %v1139 = vld [vmem:[#allocation2 + $0x7c] sm:$0xf]
        %v1140 = vld [vmem:[#allocation2 + $0x80] sm:$0x1]
        %v1141 = vld [vmem:[#allocation2 + $0x84] sm:$0xf]
        %v1142 = vld [vmem:[#allocation2 + $0x88] sm:$0xf]
        %v1143 = vld [vmem:[#allocation2 + $0x8c] sm:$0x1]
        %v1144 = vld [vmem:[#allocation2 + $0x90] sm:$0xf]
        %v1145 = vld [vmem:[#allocation2 + $0x94] sm:$0xf]
        %v1146 = vld [vmem:[#allocation2 + $0x98] sm:$0x1]
        %v1147 = vld [vmem:[#allocation2 + $0x9c] sm:$0xf]
        %v1148 = vld [vmem:[#allocation2 + $0xa0] sm:$0xf]
        %v1149 = vld [vmem:[#allocation2 + $0xa4] sm:$0x1]
        %v1150 = vld [vmem:[#allocation2 + $0xa8] sm:$0xf]
        %v1151 = vld [vmem:[#allocation2 + $0xac] sm:$0xf]
        %v1152 = vld [vmem:[#allocation2 + $0xb0] sm:$0x1]
        %v1153 = vld [vmem:[#allocation2 + $0xb4] sm:$0xf]
        %v1154 = vld [vmem:[#allocation2 + $0xb8] sm:$0xf]
        %v1155 = vld [vmem:[#allocation2 + $0xbc] sm:$0x1]
        %vm1156 = vsmask.f32 3328
        %vm1157 = vsmask.f32 7440
        %vm1158 = vmor %vm1156, %vm1157
        %v1160 = vshrl.u32 %v1108, 16
        %v1162 = vrot.slane %v1160, 4
        %v1163 = vshll.u32 %v1108, 16
        %v1165 = vrot.slane %v1163, 5
        %v1166 = vor.u32 %v1162, %v1165
        %v1167 = vrot.slane %v1166, 4
        %v1169 = vshll.u32 %v1109, 16
        %v1171 = vrot.slane %v1169, 5
        %v1172 = vsel %vm1158, %v1167, %v1171
        %v1173 = vshrl.u32 %v1109, 16
        %v1175 = vrot.slane %v1173, 4
        %v1176 = vor.u32 %v1175, %v1171
        %v1177 = vrot.slane %v1176, 4
        %v1179 = vshll.u32 %v1110, 16
        %v1181 = vrot.slane %v1179, 5
        %v1182 = vsel %vm1158, %v1177, %v1181
        %v1184 = vshrl.u32 %v1111, 16
        %v1186 = vrot.slane %v1184, 4
        %v1187 = vshll.u32 %v1111, 16
        %v1189 = vrot.slane %v1187, 5
        %v1190 = vor.u32 %v1186, %v1189
        %v1191 = vrot.slane %v1190, 4
        %v1193 = vshll.u32 %v1112, 16
        %v1195 = vrot.slane %v1193, 5
        %v1196 = vsel %vm1158, %v1191, %v1195
        %v1197 = vshrl.u32 %v1112, 16
        %v1199 = vrot.slane %v1197, 4
        %v1200 = vor.u32 %v1199, %v1195
        %v1201 = vrot.slane %v1200, 4
        %v1203 = vshll.u32 %v1113, 16
        %v1205 = vrot.slane %v1203, 5
        %v1206 = vsel %vm1158, %v1201, %v1205
        %v1208 = vshrl.u32 %v1114, 16
        %v1210 = vrot.slane %v1208, 4
        %v1211 = vshll.u32 %v1114, 16
        %v1213 = vrot.slane %v1211, 5
        %v1214 = vor.u32 %v1210, %v1213
        %v1215 = vrot.slane %v1214, 4
        %v1217 = vshll.u32 %v1115, 16
        %v1219 = vrot.slane %v1217, 5
        %v1220 = vsel %vm1158, %v1215, %v1219
        %v1221 = vshrl.u32 %v1115, 16
        %v1223 = vrot.slane %v1221, 4
        %v1224 = vor.u32 %v1223, %v1219
        %v1225 = vrot.slane %v1224, 4
        %v1227 = vshll.u32 %v1116, 16
        %v1229 = vrot.slane %v1227, 5
        %v1230 = vsel %vm1158, %v1225, %v1229
        %v1232 = vshrl.u32 %v1117, 16
        %v1234 = vrot.slane %v1232, 4
        %v1235 = vshll.u32 %v1117, 16
        %v1237 = vrot.slane %v1235, 5
        %v1238 = vor.u32 %v1234, %v1237
        %v1239 = vrot.slane %v1238, 4
        %v1241 = vshll.u32 %v1118, 16
        %v1243 = vrot.slane %v1241, 5
        %v1244 = vsel %vm1158, %v1239, %v1243
        %v1245 = vshrl.u32 %v1118, 16
        %v1247 = vrot.slane %v1245, 4
        %v1248 = vor.u32 %v1247, %v1243
        %v1249 = vrot.slane %v1248, 4
        %v1251 = vshll.u32 %v1119, 16
        %v1253 = vrot.slane %v1251, 5
        %v1254 = vsel %vm1158, %v1249, %v1253
        %v1256 = vshrl.u32 %v1120, 16
        %v1258 = vrot.slane %v1256, 4
        %v1259 = vshll.u32 %v1120, 16
        %v1261 = vrot.slane %v1259, 5
        %v1262 = vor.u32 %v1258, %v1261
        %v1263 = vrot.slane %v1262, 4
        %v1265 = vshll.u32 %v1121, 16
        %v1267 = vrot.slane %v1265, 5
        %v1268 = vsel %vm1158, %v1263, %v1267
        %v1269 = vshrl.u32 %v1121, 16
        %v1271 = vrot.slane %v1269, 4
        %v1272 = vor.u32 %v1271, %v1267
        %v1273 = vrot.slane %v1272, 4
        %v1275 = vshll.u32 %v1122, 16
        %v1277 = vrot.slane %v1275, 5
        %v1278 = vsel %vm1158, %v1273, %v1277
        %v1280 = vshrl.u32 %v1123, 16
        %v1282 = vrot.slane %v1280, 4
        %v1283 = vshll.u32 %v1123, 16
        %v1285 = vrot.slane %v1283, 5
        %v1286 = vor.u32 %v1282, %v1285
        %v1287 = vrot.slane %v1286, 4
        %v1289 = vshll.u32 %v1124, 16
        %v1291 = vrot.slane %v1289, 5
        %v1292 = vsel %vm1158, %v1287, %v1291
        %v1293 = vshrl.u32 %v1124, 16
        %v1295 = vrot.slane %v1293, 4
        %v1296 = vor.u32 %v1295, %v1291
        %v1297 = vrot.slane %v1296, 4
        %v1299 = vshll.u32 %v1125, 16
        %v1301 = vrot.slane %v1299, 5
        %v1302 = vsel %vm1158, %v1297, %v1301
        %v1304 = vshrl.u32 %v1126, 16
        %v1306 = vrot.slane %v1304, 4
        %v1307 = vshll.u32 %v1126, 16
        %v1309 = vrot.slane %v1307, 5
        %v1310 = vor.u32 %v1306, %v1309
        %v1311 = vrot.slane %v1310, 4
        %v1313 = vshll.u32 %v1127, 16
        %v1315 = vrot.slane %v1313, 5
        %v1316 = vsel %vm1158, %v1311, %v1315
        %v1317 = vshrl.u32 %v1127, 16
        %v1319 = vrot.slane %v1317, 4
        %v1320 = vor.u32 %v1319, %v1315
        %v1321 = vrot.slane %v1320, 4
        %v1323 = vshll.u32 %v1128, 16
        %v1325 = vrot.slane %v1323, 5
        %v1326 = vsel %vm1158, %v1321, %v1325
        %v1328 = vshrl.u32 %v1129, 16
        %v1330 = vrot.slane %v1328, 4
        %v1331 = vshll.u32 %v1129, 16
        %v1333 = vrot.slane %v1331, 5
        %v1334 = vor.u32 %v1330, %v1333
        %v1335 = vrot.slane %v1334, 4
        %v1337 = vshll.u32 %v1130, 16
        %v1339 = vrot.slane %v1337, 5
        %v1340 = vsel %vm1158, %v1335, %v1339
        %v1341 = vshrl.u32 %v1130, 16
        %v1343 = vrot.slane %v1341, 4
        %v1344 = vor.u32 %v1343, %v1339
        %v1345 = vrot.slane %v1344, 4
        %v1347 = vshll.u32 %v1131, 16
        %v1349 = vrot.slane %v1347, 5
        %v1350 = vsel %vm1158, %v1345, %v1349
        %v1352 = vshrl.u32 %v1132, 16
        %v1354 = vrot.slane %v1352, 4
        %v1355 = vshll.u32 %v1132, 16
        %v1357 = vrot.slane %v1355, 5
        %v1358 = vor.u32 %v1354, %v1357
        %v1359 = vrot.slane %v1358, 4
        %v1361 = vshll.u32 %v1133, 16
        %v1363 = vrot.slane %v1361, 5
        %v1364 = vsel %vm1158, %v1359, %v1363
        %v1365 = vshrl.u32 %v1133, 16
        %v1367 = vrot.slane %v1365, 4
        %v1368 = vor.u32 %v1367, %v1363
        %v1369 = vrot.slane %v1368, 4
        %v1371 = vshll.u32 %v1134, 16
        %v1373 = vrot.slane %v1371, 5
        %v1374 = vsel %vm1158, %v1369, %v1373
        %v1376 = vshrl.u32 %v1135, 16
        %v1378 = vrot.slane %v1376, 4
        %v1379 = vshll.u32 %v1135, 16
        %v1381 = vrot.slane %v1379, 5
        %v1382 = vor.u32 %v1378, %v1381
        %v1383 = vrot.slane %v1382, 4
        %v1385 = vshll.u32 %v1136, 16
        %v1387 = vrot.slane %v1385, 5
        %v1388 = vsel %vm1158, %v1383, %v1387
        %v1389 = vshrl.u32 %v1136, 16
        %v1391 = vrot.slane %v1389, 4
        %v1392 = vor.u32 %v1391, %v1387
        %v1393 = vrot.slane %v1392, 4
        %v1395 = vshll.u32 %v1137, 16
        %v1397 = vrot.slane %v1395, 5
        %v1398 = vsel %vm1158, %v1393, %v1397
        %v1400 = vshrl.u32 %v1138, 16
        %v1402 = vrot.slane %v1400, 4
        %v1403 = vshll.u32 %v1138, 16
        %v1405 = vrot.slane %v1403, 5
        %v1406 = vor.u32 %v1402, %v1405
        %v1407 = vrot.slane %v1406, 4
        %v1409 = vshll.u32 %v1139, 16
        %v1411 = vrot.slane %v1409, 5
        %v1412 = vsel %vm1158, %v1407, %v1411
        %v1413 = vshrl.u32 %v1139, 16
        %v1415 = vrot.slane %v1413, 4
        %v1416 = vor.u32 %v1415, %v1411
        %v1417 = vrot.slane %v1416, 4
        %v1419 = vshll.u32 %v1140, 16
        %v1421 = vrot.slane %v1419, 5
        %v1422 = vsel %vm1158, %v1417, %v1421
        %v1424 = vshrl.u32 %v1141, 16
        %v1426 = vrot.slane %v1424, 4
        %v1427 = vshll.u32 %v1141, 16
        %v1429 = vrot.slane %v1427, 5
        %v1430 = vor.u32 %v1426, %v1429
        %v1431 = vrot.slane %v1430, 4
        %v1433 = vshll.u32 %v1142, 16
        %v1435 = vrot.slane %v1433, 5
        %v1436 = vsel %vm1158, %v1431, %v1435
        %v1437 = vshrl.u32 %v1142, 16
        %v1439 = vrot.slane %v1437, 4
        %v1440 = vor.u32 %v1439, %v1435
        %v1441 = vrot.slane %v1440, 4
        %v1443 = vshll.u32 %v1143, 16
        %v1445 = vrot.slane %v1443, 5
        %v1446 = vsel %vm1158, %v1441, %v1445
        %v1448 = vshrl.u32 %v1144, 16
        %v1450 = vrot.slane %v1448, 4
        %v1451 = vshll.u32 %v1144, 16
        %v1453 = vrot.slane %v1451, 5
        %v1454 = vor.u32 %v1450, %v1453
        %v1455 = vrot.slane %v1454, 4
        %v1457 = vshll.u32 %v1145, 16
        %v1459 = vrot.slane %v1457, 5
        %v1460 = vsel %vm1158, %v1455, %v1459
        %v1461 = vshrl.u32 %v1145, 16
        %v1463 = vrot.slane %v1461, 4
        %v1464 = vor.u32 %v1463, %v1459
        %v1465 = vrot.slane %v1464, 4
        %v1467 = vshll.u32 %v1146, 16
        %v1469 = vrot.slane %v1467, 5
        %v1470 = vsel %vm1158, %v1465, %v1469
        %v1472 = vshrl.u32 %v1147, 16
        %v1474 = vrot.slane %v1472, 4
        %v1475 = vshll.u32 %v1147, 16
        %v1477 = vrot.slane %v1475, 5
        %v1478 = vor.u32 %v1474, %v1477
        %v1479 = vrot.slane %v1478, 4
        %v1481 = vshll.u32 %v1148, 16
        %v1483 = vrot.slane %v1481, 5
        %v1484 = vsel %vm1158, %v1479, %v1483
        %v1485 = vshrl.u32 %v1148, 16
        %v1487 = vrot.slane %v1485, 4
        %v1488 = vor.u32 %v1487, %v1483
        %v1489 = vrot.slane %v1488, 4
        %v1491 = vshll.u32 %v1149, 16
        %v1493 = vrot.slane %v1491, 5
        %v1494 = vsel %vm1158, %v1489, %v1493
        %v1496 = vshrl.u32 %v1150, 16
        %v1498 = vrot.slane %v1496, 4
        %v1499 = vshll.u32 %v1150, 16
        %v1501 = vrot.slane %v1499, 5
        %v1502 = vor.u32 %v1498, %v1501
        %v1503 = vrot.slane %v1502, 4
        %v1505 = vshll.u32 %v1151, 16
        %v1507 = vrot.slane %v1505, 5
        %v1508 = vsel %vm1158, %v1503, %v1507
        %v1509 = vshrl.u32 %v1151, 16
        %v1511 = vrot.slane %v1509, 4
        %v1512 = vor.u32 %v1511, %v1507
        %v1513 = vrot.slane %v1512, 4
        %v1515 = vshll.u32 %v1152, 16
        %v1517 = vrot.slane %v1515, 5
        %v1518 = vsel %vm1158, %v1513, %v1517
        %v1520 = vshrl.u32 %v1153, 16
        %v1522 = vrot.slane %v1520, 4
        %v1523 = vshll.u32 %v1153, 16
        %v1525 = vrot.slane %v1523, 5
        %v1526 = vor.u32 %v1522, %v1525
        %v1527 = vrot.slane %v1526, 4
        %v1529 = vshll.u32 %v1154, 16
        %v1531 = vrot.slane %v1529, 5
        %v1532 = vsel %vm1158, %v1527, %v1531
        %v1533 = vshrl.u32 %v1154, 16
        %v1535 = vrot.slane %v1533, 4
        %v1536 = vor.u32 %v1535, %v1531
        %v1537 = vrot.slane %v1536, 4
        %v1539 = vshll.u32 %v1155, 16
        %v1541 = vrot.slane %v1539, 5
        %v1542 = vsel %vm1158, %v1537, %v1541
        %s1543 = scalar_lea.vmem %s1, 4
        %v1544 = vld [vmem:[%s1543] sm:$0xf]
        %v1545 = vunpack.c.l.b16 %v1172
        %v1546 = vunpack.c.l.b16 %v1182
        %v1547 = vunpack.c.l.b16 %v1196
        %v1548 = vunpack.c.l.b16 %v1206
        %v1549 = vunpack.c.l.b16 %v1220
        %v1550 = vunpack.c.l.b16 %v1230
        %v1551 = vunpack.c.l.b16 %v1244
        %v1552 = vunpack.c.l.b16 %v1254
        %v1553 = vunpack.c.l.b16 %v1268
        %v1554 = vunpack.c.l.b16 %v1278
        %v1555 = vunpack.c.l.b16 %v1292
        %v1556 = vunpack.c.l.b16 %v1302
        %v1557 = vunpack.c.l.b16 %v1316
        %v1558 = vunpack.c.l.b16 %v1326
        %v1559 = vunpack.c.l.b16 %v1340
        %v1560 = vunpack.c.l.b16 %v1350
        %v1561 = vunpack.c.l.b16 %v1364
        %v1562 = vunpack.c.l.b16 %v1374
        %v1563 = vunpack.c.l.b16 %v1388
        %v1564 = vunpack.c.l.b16 %v1398
        %v1565 = vunpack.c.l.b16 %v1412
        %v1566 = vunpack.c.l.b16 %v1422
        %v1567 = vunpack.c.l.b16 %v1436
        %v1568 = vunpack.c.l.b16 %v1446
        %v1569 = vunpack.c.l.b16 %v1460
        %v1570 = vunpack.c.l.b16 %v1470
        %v1571 = vunpack.c.l.b16 %v1484
        %v1572 = vunpack.c.l.b16 %v1494
        %v1573 = vunpack.c.l.b16 %v1508
        %v1574 = vunpack.c.l.b16 %v1518
        %v1575 = vunpack.c.l.b16 %v1532
        %v1576 = vunpack.c.l.b16 %v1542
        %v1577 = vpack.c.b16 %v1546, %v1545
        %v1578 = vpack.c.b16 %v1548, %v1547
        %v1579 = vpack.c.b16 %v1550, %v1549
        %v1580 = vpack.c.b16 %v1552, %v1551
        %v1581 = vpack.c.b16 %v1554, %v1553
        %v1582 = vpack.c.b16 %v1556, %v1555
        %v1583 = vpack.c.b16 %v1558, %v1557
        %v1584 = vpack.c.b16 %v1560, %v1559
        %v1585 = vpack.c.b16 %v1562, %v1561
        %v1586 = vpack.c.b16 %v1564, %v1563
        %v1587 = vpack.c.b16 %v1566, %v1565
        %v1588 = vpack.c.b16 %v1568, %v1567
        %v1589 = vpack.c.b16 %v1570, %v1569
        %v1590 = vpack.c.b16 %v1572, %v1571
        %v1591 = vpack.c.b16 %v1574, %v1573
        %v1592 = vpack.c.b16 %v1576, %v1575
        %v1594 = vsel %vm933, %v1577, 0
        %v1597 = vsel %vm933, %v1578, 0
        %v1600 = vsel %vm933, %v1579, 0
        %v1603 = vsel %vm933, %v1580, 0
        %v1606 = vsel %vm933, %v1581, 0
        %v1609 = vsel %vm933, %v1582, 0
        %v1612 = vsel %vm933, %v1583, 0
        %v1615 = vsel %vm933, %v1584, 0
        %v1618 = vsel %vm933, %v1585, 0
        %v1621 = vsel %vm933, %v1586, 0
        %v1624 = vsel %vm933, %v1587, 0
        %v1627 = vsel %vm933, %v1588, 0
        %v1630 = vsel %vm933, %v1589, 0
        %v1633 = vsel %vm933, %v1590, 0
        %v1636 = vsel %vm933, %v1591, 0
        %v1639 = vsel %vm933, %v1592, 0
        %v1642 = vsel %vm982, %v1544, 0
        %1644 = vmatpush.bf16.msra.mxu0 0
        %1645 = vmatpush.bf16.msra.mxu0 0
        %1646 = vmatpush.bf16.msra.mxu0 0
        %1647 = vmatpush.bf16.msra.mxu0 0
        %1648 = vmatpush.bf16.msra.mxu0 0
        %1649 = vmatpush.bf16.msra.mxu0 0
        %1650 = vmatpush.bf16.msra.mxu0 0
        %1651 = vmatpush.bf16.msra.mxu0 %v1642
        %1652 = vmatmul.bf16.gmra.mxu0 %v1594
        %v1653 = vpop.f32.mrf.mxu0
        %v1654 = vadd.f32 0.0, %v1653
        %v1655 = vpop.f32.mrf.mxu0
        %v1656 = vadd.f32 0.0, %v1655
        %1657 = vmatmul.bf16.gmra.mxu0 %v1597
        %v1658 = vpop.f32.mrf.mxu0
        %v1659 = vadd.f32 0.0, %v1658
        %v1660 = vpop.f32.mrf.mxu0
        %v1661 = vadd.f32 0.0, %v1660
        %1662 = vmatmul.bf16.gmra.mxu0 %v1600
        %v1663 = vpop.f32.mrf.mxu0
        %v1664 = vadd.f32 0.0, %v1663
        %v1665 = vpop.f32.mrf.mxu0
        %v1666 = vadd.f32 0.0, %v1665
        %1667 = vmatmul.bf16.gmra.mxu0 %v1603
        %v1668 = vpop.f32.mrf.mxu0
        %v1669 = vadd.f32 0.0, %v1668
        %v1670 = vpop.f32.mrf.mxu0
        %v1671 = vadd.f32 0.0, %v1670
        %1672 = vmatmul.bf16.gmra.mxu0 %v1606
        %v1673 = vpop.f32.mrf.mxu0
        %v1674 = vadd.f32 0.0, %v1673
        %v1675 = vpop.f32.mrf.mxu0
        %v1676 = vadd.f32 0.0, %v1675
        %1677 = vmatmul.bf16.gmra.mxu0 %v1609
        %v1678 = vpop.f32.mrf.mxu0
        %v1679 = vadd.f32 0.0, %v1678
        %v1680 = vpop.f32.mrf.mxu0
        %v1681 = vadd.f32 0.0, %v1680
        %1682 = vmatmul.bf16.gmra.mxu0 %v1612
        %v1683 = vpop.f32.mrf.mxu0
        %v1684 = vadd.f32 0.0, %v1683
        %v1685 = vpop.f32.mrf.mxu0
        %v1686 = vadd.f32 0.0, %v1685
        %1687 = vmatmul.bf16.gmra.mxu0 %v1615
        %v1688 = vpop.f32.mrf.mxu0
        %v1689 = vadd.f32 0.0, %v1688
        %v1690 = vpop.f32.mrf.mxu0
        %v1691 = vadd.f32 0.0, %v1690
        %1692 = vmatmul.bf16.gmra.mxu0 %v1618
        %v1693 = vpop.f32.mrf.mxu0
        %v1694 = vadd.f32 0.0, %v1693
        %v1695 = vpop.f32.mrf.mxu0
        %v1696 = vadd.f32 0.0, %v1695
        %1697 = vmatmul.bf16.gmra.mxu0 %v1621
        %v1698 = vpop.f32.mrf.mxu0
        %v1699 = vadd.f32 0.0, %v1698
        %v1700 = vpop.f32.mrf.mxu0
        %v1701 = vadd.f32 0.0, %v1700
        %1702 = vmatmul.bf16.gmra.mxu0 %v1624
        %v1703 = vpop.f32.mrf.mxu0
        %v1704 = vadd.f32 0.0, %v1703
        %v1705 = vpop.f32.mrf.mxu0
        %v1706 = vadd.f32 0.0, %v1705
        %1707 = vmatmul.bf16.gmra.mxu0 %v1627
        %v1708 = vpop.f32.mrf.mxu0
        %v1709 = vadd.f32 0.0, %v1708
        %v1710 = vpop.f32.mrf.mxu0
        %v1711 = vadd.f32 0.0, %v1710
        %1712 = vmatmul.bf16.gmra.mxu0 %v1630
        %v1713 = vpop.f32.mrf.mxu0
        %v1714 = vadd.f32 0.0, %v1713
        %v1715 = vpop.f32.mrf.mxu0
        %v1716 = vadd.f32 0.0, %v1715
        %1717 = vmatmul.bf16.gmra.mxu0 %v1633
        %v1718 = vpop.f32.mrf.mxu0
        %v1719 = vadd.f32 0.0, %v1718
        %v1720 = vpop.f32.mrf.mxu0
        %v1721 = vadd.f32 0.0, %v1720
        %1722 = vmatmul.bf16.gmra.mxu0 %v1636
        %v1723 = vpop.f32.mrf.mxu0
        %v1724 = vadd.f32 0.0, %v1723
        %v1725 = vpop.f32.mrf.mxu0
        %v1726 = vadd.f32 0.0, %v1725
        %1727 = vmatmul.bf16.gmra.mxu0 %v1639
        %v1728 = vpop.f32.mrf.mxu0
        %v1729 = vadd.f32 0.0, %v1728
        %v1730 = vpop.f32.mrf.mxu0
        %v1731 = vadd.f32 0.0, %v1730
        %1732 = vdwg.mxu0
        %v1733 = vld [vmem:[#allocation3] sm:$0xff]
        %v1734 = vld [vmem:[#allocation3 + $0x8] sm:$0xff]
        %v1735 = vld [vmem:[#allocation3 + $0x10] sm:$0xff]
        %v1736 = vld [vmem:[#allocation3 + $0x18] sm:$0xff]
        %v1737 = vld [vmem:[#allocation3 + $0x20] sm:$0xff]
        %v1738 = vld [vmem:[#allocation3 + $0x28] sm:$0xff]
        %v1739 = vld [vmem:[#allocation3 + $0x30] sm:$0xff]
        %v1740 = vld [vmem:[#allocation3 + $0x38] sm:$0xff]
        %v1741 = vld [vmem:[#allocation3 + $0x40] sm:$0xff]
        %v1742 = vld [vmem:[#allocation3 + $0x48] sm:$0xff]
        %v1743 = vld [vmem:[#allocation3 + $0x50] sm:$0xff]
        %v1744 = vld [vmem:[#allocation3 + $0x58] sm:$0xff]
        %v1745 = vld [vmem:[#allocation3 + $0x60] sm:$0xff]
        %v1746 = vld [vmem:[#allocation3 + $0x68] sm:$0xff]
        %v1747 = vld [vmem:[#allocation3 + $0x70] sm:$0xff]
        %v1748 = vld [vmem:[#allocation3 + $0x78] sm:$0xff]
        %v1749 = vld [vmem:[#allocation3 + $0x80] sm:$0xff]
        %v1750 = vld [vmem:[#allocation3 + $0x88] sm:$0xff]
        %v1751 = vld [vmem:[#allocation3 + $0x90] sm:$0xff]
        %v1752 = vld [vmem:[#allocation3 + $0x98] sm:$0xff]
        %v1753 = vld [vmem:[#allocation3 + $0xa0] sm:$0xff]
        %v1754 = vld [vmem:[#allocation3 + $0xa8] sm:$0xff]
        %v1755 = vld [vmem:[#allocation3 + $0xb0] sm:$0xff]
        %v1756 = vld [vmem:[#allocation3 + $0xb8] sm:$0xff]
        %v1757 = vld [vmem:[#allocation3 + $0xc0] sm:$0xff]
        %v1758 = vld [vmem:[#allocation3 + $0xc8] sm:$0xff]
        %v1759 = vld [vmem:[#allocation3 + $0xd0] sm:$0xff]
        %v1760 = vld [vmem:[#allocation3 + $0xd8] sm:$0xff]
        %v1761 = vld [vmem:[#allocation3 + $0xe0] sm:$0xff]
        %v1762 = vld [vmem:[#allocation3 + $0xe8] sm:$0xff]
        %v1763 = vld [vmem:[#allocation3 + $0xf0] sm:$0xff]
        %v1764 = vld [vmem:[#allocation3 + $0xf8] sm:$0xff]
        %v1765 = vadd.f32 %v1733, %v1654
        %v1766 = vadd.f32 %v1734, %v1656
        %v1767 = vadd.f32 %v1735, %v1659
        %v1768 = vadd.f32 %v1736, %v1661
        %v1769 = vadd.f32 %v1737, %v1664
        %v1770 = vadd.f32 %v1738, %v1666
        %v1771 = vadd.f32 %v1739, %v1669
        %v1772 = vadd.f32 %v1740, %v1671
        %v1773 = vadd.f32 %v1741, %v1674
        %v1774 = vadd.f32 %v1742, %v1676
        %v1775 = vadd.f32 %v1743, %v1679
        %v1776 = vadd.f32 %v1744, %v1681
        %v1777 = vadd.f32 %v1745, %v1684
        %v1778 = vadd.f32 %v1746, %v1686
        %v1779 = vadd.f32 %v1747, %v1689
        %v1780 = vadd.f32 %v1748, %v1691
        %v1781 = vadd.f32 %v1749, %v1694
        %v1782 = vadd.f32 %v1750, %v1696
        %v1783 = vadd.f32 %v1751, %v1699
        %v1784 = vadd.f32 %v1752, %v1701
        %v1785 = vadd.f32 %v1753, %v1704
        %v1786 = vadd.f32 %v1754, %v1706
        %v1787 = vadd.f32 %v1755, %v1709
        %v1788 = vadd.f32 %v1756, %v1711
        %v1789 = vadd.f32 %v1757, %v1714
        %v1790 = vadd.f32 %v1758, %v1716
        %v1791 = vadd.f32 %v1759, %v1719
        %v1792 = vadd.f32 %v1760, %v1721
        %v1793 = vadd.f32 %v1761, %v1724
        %v1794 = vadd.f32 %v1762, %v1726
        %v1795 = vadd.f32 %v1763, %v1729
        %v1796 = vadd.f32 %v1764, %v1731
        %1797 = vst.msk [vmem:[#allocation3] sm:$0xff] %vm1075, %v1765
        %1798 = vst.msk [vmem:[#allocation3 + $0x8] sm:$0xff] %vm1075, %v1766
        %1799 = vst.msk [vmem:[#allocation3 + $0x10] sm:$0xff] %vm1075, %v1767
        %1800 = vst.msk [vmem:[#allocation3 + $0x18] sm:$0xff] %vm1075, %v1768
        %1801 = vst.msk [vmem:[#allocation3 + $0x20] sm:$0xff] %vm1075, %v1769
        %1802 = vst.msk [vmem:[#allocation3 + $0x28] sm:$0xff] %vm1075, %v1770
        %1803 = vst.msk [vmem:[#allocation3 + $0x30] sm:$0xff] %vm1075, %v1771
        %1804 = vst.msk [vmem:[#allocation3 + $0x38] sm:$0xff] %vm1075, %v1772
        %1805 = vst.msk [vmem:[#allocation3 + $0x40] sm:$0xff] %vm1075, %v1773
        %1806 = vst.msk [vmem:[#allocation3 + $0x48] sm:$0xff] %vm1075, %v1774
        %1807 = vst.msk [vmem:[#allocation3 + $0x50] sm:$0xff] %vm1075, %v1775
        %1808 = vst.msk [vmem:[#allocation3 + $0x58] sm:$0xff] %vm1075, %v1776
        %1809 = vst.msk [vmem:[#allocation3 + $0x60] sm:$0xff] %vm1075, %v1777
        %1810 = vst.msk [vmem:[#allocation3 + $0x68] sm:$0xff] %vm1075, %v1778
        %1811 = vst.msk [vmem:[#allocation3 + $0x70] sm:$0xff] %vm1075, %v1779
        %1812 = vst.msk [vmem:[#allocation3 + $0x78] sm:$0xff] %vm1075, %v1780
        %1813 = vst.msk [vmem:[#allocation3 + $0x80] sm:$0xff] %vm1075, %v1781
        %1814 = vst.msk [vmem:[#allocation3 + $0x88] sm:$0xff] %vm1075, %v1782
        %1815 = vst.msk [vmem:[#allocation3 + $0x90] sm:$0xff] %vm1075, %v1783
        %1816 = vst.msk [vmem:[#allocation3 + $0x98] sm:$0xff] %vm1075, %v1784
        %1817 = vst.msk [vmem:[#allocation3 + $0xa0] sm:$0xff] %vm1075, %v1785
        %1818 = vst.msk [vmem:[#allocation3 + $0xa8] sm:$0xff] %vm1075, %v1786
        %1819 = vst.msk [vmem:[#allocation3 + $0xb0] sm:$0xff] %vm1075, %v1787
        %1820 = vst.msk [vmem:[#allocation3 + $0xb8] sm:$0xff] %vm1075, %v1788
        %1821 = vst.msk [vmem:[#allocation3 + $0xc0] sm:$0xff] %vm1075, %v1789
        %1822 = vst.msk [vmem:[#allocation3 + $0xc8] sm:$0xff] %vm1075, %v1790
        %1823 = vst.msk [vmem:[#allocation3 + $0xd0] sm:$0xff] %vm1075, %v1791
        %1824 = vst.msk [vmem:[#allocation3 + $0xd8] sm:$0xff] %vm1075, %v1792
        %1825 = vst.msk [vmem:[#allocation3 + $0xe0] sm:$0xff] %vm1075, %v1793
        %1826 = vst.msk [vmem:[#allocation3 + $0xe8] sm:$0xff] %vm1075, %v1794
        %1827 = vst.msk [vmem:[#allocation3 + $0xf0] sm:$0xff] %vm1075, %v1795
        %1828 = vst.msk [vmem:[#allocation3 + $0xf8] sm:$0xff] %vm1075, %v1796
        %v1829 = vld [vmem:[#allocation2] sm:$0xe]
        %v1830 = vld [vmem:[#allocation2 + $0x4] sm:$0xf]
        %v1831 = vld [vmem:[#allocation2 + $0x8] sm:$0x1]
        %v1832 = vld [vmem:[#allocation2 + $0xc] sm:$0xe]
        %v1833 = vld [vmem:[#allocation2 + $0x10] sm:$0xf]
        %v1834 = vld [vmem:[#allocation2 + $0x14] sm:$0x1]
        %v1835 = vld [vmem:[#allocation2 + $0x18] sm:$0xe]
        %v1836 = vld [vmem:[#allocation2 + $0x1c] sm:$0xf]
        %v1837 = vld [vmem:[#allocation2 + $0x20] sm:$0x1]
        %v1838 = vld [vmem:[#allocation2 + $0x24] sm:$0xe]
        %v1839 = vld [vmem:[#allocation2 + $0x28] sm:$0xf]
        %v1840 = vld [vmem:[#allocation2 + $0x2c] sm:$0x1]
        %v1841 = vld [vmem:[#allocation2 + $0x30] sm:$0xe]
        %v1842 = vld [vmem:[#allocation2 + $0x34] sm:$0xf]
        %v1843 = vld [vmem:[#allocation2 + $0x38] sm:$0x1]
        %v1844 = vld [vmem:[#allocation2 + $0x3c] sm:$0xe]
        %v1845 = vld [vmem:[#allocation2 + $0x40] sm:$0xf]
        %v1846 = vld [vmem:[#allocation2 + $0x44] sm:$0x1]
        %v1847 = vld [vmem:[#allocation2 + $0x48] sm:$0xe]
        %v1848 = vld [vmem:[#allocation2 + $0x4c] sm:$0xf]
        %v1849 = vld [vmem:[#allocation2 + $0x50] sm:$0x1]
        %v1850 = vld [vmem:[#allocation2 + $0x54] sm:$0xe]
        %v1851 = vld [vmem:[#allocation2 + $0x58] sm:$0xf]
        %v1852 = vld [vmem:[#allocation2 + $0x5c] sm:$0x1]
        %v1853 = vld [vmem:[#allocation2 + $0x60] sm:$0xe]
        %v1854 = vld [vmem:[#allocation2 + $0x64] sm:$0xf]
        %v1855 = vld [vmem:[#allocation2 + $0x68] sm:$0x1]
        %v1856 = vld [vmem:[#allocation2 + $0x6c] sm:$0xe]
        %v1857 = vld [vmem:[#allocation2 + $0x70] sm:$0xf]
        %v1858 = vld [vmem:[#allocation2 + $0x74] sm:$0x1]
        %v1859 = vld [vmem:[#allocation2 + $0x78] sm:$0xe]
        %v1860 = vld [vmem:[#allocation2 + $0x7c] sm:$0xf]
        %v1861 = vld [vmem:[#allocation2 + $0x80] sm:$0x1]
        %v1862 = vld [vmem:[#allocation2 + $0x84] sm:$0xe]
        %v1863 = vld [vmem:[#allocation2 + $0x88] sm:$0xf]
        %v1864 = vld [vmem:[#allocation2 + $0x8c] sm:$0x1]
        %v1865 = vld [vmem:[#allocation2 + $0x90] sm:$0xe]
        %v1866 = vld [vmem:[#allocation2 + $0x94] sm:$0xf]
        %v1867 = vld [vmem:[#allocation2 + $0x98] sm:$0x1]
        %v1868 = vld [vmem:[#allocation2 + $0x9c] sm:$0xe]
        %v1869 = vld [vmem:[#allocation2 + $0xa0] sm:$0xf]
        %v1870 = vld [vmem:[#allocation2 + $0xa4] sm:$0x1]
        %v1871 = vld [vmem:[#allocation2 + $0xa8] sm:$0xe]
        %v1872 = vld [vmem:[#allocation2 + $0xac] sm:$0xf]
        %v1873 = vld [vmem:[#allocation2 + $0xb0] sm:$0x1]
        %v1874 = vld [vmem:[#allocation2 + $0xb4] sm:$0xe]
        %v1875 = vld [vmem:[#allocation2 + $0xb8] sm:$0xf]
        %v1876 = vld [vmem:[#allocation2 + $0xbc] sm:$0x1]
        %vm1925 = vcmask 1042432
        %vm1926 = vcmask 1046532
        %vm1927 = vmor %vm1925, %vm1926
        %v1928 = vrot.slane %v1829, 5
        %v1929 = vrot.slane %v1928, 4
        %v1930 = vrot.slane %v1830, 5
        %v1931 = vsel %vm1927, %v1929, %v1930
        %v1932 = vrot.slane %v1930, 4
        %v1933 = vrot.slane %v1831, 5
        %v1934 = vsel %vm1927, %v1932, %v1933
        %v1935 = vrot.slane %v1832, 5
        %v1936 = vrot.slane %v1935, 4
        %v1937 = vrot.slane %v1833, 5
        %v1938 = vsel %vm1927, %v1936, %v1937
        %v1939 = vrot.slane %v1937, 4
        %v1940 = vrot.slane %v1834, 5
        %v1941 = vsel %vm1927, %v1939, %v1940
        %v1942 = vrot.slane %v1835, 5
        %v1943 = vrot.slane %v1942, 4
        %v1944 = vrot.slane %v1836, 5
        %v1945 = vsel %vm1927, %v1943, %v1944
        %v1946 = vrot.slane %v1944, 4
        %v1947 = vrot.slane %v1837, 5
        %v1948 = vsel %vm1927, %v1946, %v1947
        %v1949 = vrot.slane %v1838, 5
        %v1950 = vrot.slane %v1949, 4
        %v1951 = vrot.slane %v1839, 5
        %v1952 = vsel %vm1927, %v1950, %v1951
        %v1953 = vrot.slane %v1951, 4
        %v1954 = vrot.slane %v1840, 5
        %v1955 = vsel %vm1927, %v1953, %v1954
        %v1956 = vrot.slane %v1841, 5
        %v1957 = vrot.slane %v1956, 4
        %v1958 = vrot.slane %v1842, 5
        %v1959 = vsel %vm1927, %v1957, %v1958
        %v1960 = vrot.slane %v1958, 4
        %v1961 = vrot.slane %v1843, 5
        %v1962 = vsel %vm1927, %v1960, %v1961
        %v1963 = vrot.slane %v1844, 5
        %v1964 = vrot.slane %v1963, 4
        %v1965 = vrot.slane %v1845, 5
        %v1966 = vsel %vm1927, %v1964, %v1965
        %v1967 = vrot.slane %v1965, 4
        %v1968 = vrot.slane %v1846, 5
        %v1969 = vsel %vm1927, %v1967, %v1968
        %v1970 = vrot.slane %v1847, 5
        %v1971 = vrot.slane %v1970, 4
        %v1972 = vrot.slane %v1848, 5
        %v1973 = vsel %vm1927, %v1971, %v1972
        %v1974 = vrot.slane %v1972, 4
        %v1975 = vrot.slane %v1849, 5
        %v1976 = vsel %vm1927, %v1974, %v1975
        %v1977 = vrot.slane %v1850, 5
        %v1978 = vrot.slane %v1977, 4
        %v1979 = vrot.slane %v1851, 5
        %v1980 = vsel %vm1927, %v1978, %v1979
        %v1981 = vrot.slane %v1979, 4
        %v1982 = vrot.slane %v1852, 5
        %v1983 = vsel %vm1927, %v1981, %v1982
        %v1984 = vrot.slane %v1853, 5
        %v1985 = vrot.slane %v1984, 4
        %v1986 = vrot.slane %v1854, 5
        %v1987 = vsel %vm1927, %v1985, %v1986
        %v1988 = vrot.slane %v1986, 4
        %v1989 = vrot.slane %v1855, 5
        %v1990 = vsel %vm1927, %v1988, %v1989
        %v1991 = vrot.slane %v1856, 5
        %v1992 = vrot.slane %v1991, 4
        %v1993 = vrot.slane %v1857, 5
        %v1994 = vsel %vm1927, %v1992, %v1993
        %v1995 = vrot.slane %v1993, 4
        %v1996 = vrot.slane %v1858, 5
        %v1997 = vsel %vm1927, %v1995, %v1996
        %v1998 = vrot.slane %v1859, 5
        %v1999 = vrot.slane %v1998, 4
        %v2000 = vrot.slane %v1860, 5
        %v2001 = vsel %vm1927, %v1999, %v2000
        %v2002 = vrot.slane %v2000, 4
        %v2003 = vrot.slane %v1861, 5
        %v2004 = vsel %vm1927, %v2002, %v2003
        %v2005 = vrot.slane %v1862, 5
        %v2006 = vrot.slane %v2005, 4
        %v2007 = vrot.slane %v1863, 5
        %v2008 = vsel %vm1927, %v2006, %v2007
        %v2009 = vrot.slane %v2007, 4
        %v2010 = vrot.slane %v1864, 5
        %v2011 = vsel %vm1927, %v2009, %v2010
        %v2012 = vrot.slane %v1865, 5
        %v2013 = vrot.slane %v2012, 4
        %v2014 = vrot.slane %v1866, 5
        %v2015 = vsel %vm1927, %v2013, %v2014
        %v2016 = vrot.slane %v2014, 4
        %v2017 = vrot.slane %v1867, 5
        %v2018 = vsel %vm1927, %v2016, %v2017
        %v2019 = vrot.slane %v1868, 5
        %v2020 = vrot.slane %v2019, 4
        %v2021 = vrot.slane %v1869, 5
        %v2022 = vsel %vm1927, %v2020, %v2021
        %v2023 = vrot.slane %v2021, 4
        %v2024 = vrot.slane %v1870, 5
        %v2025 = vsel %vm1927, %v2023, %v2024
        %v2026 = vrot.slane %v1871, 5
        %v2027 = vrot.slane %v2026, 4
        %v2028 = vrot.slane %v1872, 5
        %v2029 = vsel %vm1927, %v2027, %v2028
        %v2030 = vrot.slane %v2028, 4
        %v2031 = vrot.slane %v1873, 5
        %v2032 = vsel %vm1927, %v2030, %v2031
        %v2033 = vrot.slane %v1874, 5
        %v2034 = vrot.slane %v2033, 4
        %v2035 = vrot.slane %v1875, 5
        %v2036 = vsel %vm1927, %v2034, %v2035
        %v2037 = vrot.slane %v2035, 4
        %v2038 = vrot.slane %v1876, 5
        %v2039 = vsel %vm1927, %v2037, %v2038
        %s2040 = scalar_lea.vmem %s1, 8
        %v2041 = vld [vmem:[%s2040] sm:$0xf]
        %v2042 = vunpack.c.l.b16 %v1931
        %v2043 = vunpack.c.l.b16 %v1934
        %v2044 = vunpack.c.l.b16 %v1938
        %v2045 = vunpack.c.l.b16 %v1941
        %v2046 = vunpack.c.l.b16 %v1945
        %v2047 = vunpack.c.l.b16 %v1948
        %v2048 = vunpack.c.l.b16 %v1952
        %v2049 = vunpack.c.l.b16 %v1955
        %v2050 = vunpack.c.l.b16 %v1959
        %v2051 = vunpack.c.l.b16 %v1962
        %v2052 = vunpack.c.l.b16 %v1966
        %v2053 = vunpack.c.l.b16 %v1969
        %v2054 = vunpack.c.l.b16 %v1973
        %v2055 = vunpack.c.l.b16 %v1976
        %v2056 = vunpack.c.l.b16 %v1980
        %v2057 = vunpack.c.l.b16 %v1983
        %v2058 = vunpack.c.l.b16 %v1987
        %v2059 = vunpack.c.l.b16 %v1990
        %v2060 = vunpack.c.l.b16 %v1994
        %v2061 = vunpack.c.l.b16 %v1997
        %v2062 = vunpack.c.l.b16 %v2001
        %v2063 = vunpack.c.l.b16 %v2004
        %v2064 = vunpack.c.l.b16 %v2008
        %v2065 = vunpack.c.l.b16 %v2011
        %v2066 = vunpack.c.l.b16 %v2015
        %v2067 = vunpack.c.l.b16 %v2018
        %v2068 = vunpack.c.l.b16 %v2022
        %v2069 = vunpack.c.l.b16 %v2025
        %v2070 = vunpack.c.l.b16 %v2029
        %v2071 = vunpack.c.l.b16 %v2032
        %v2072 = vunpack.c.l.b16 %v2036
        %v2073 = vunpack.c.l.b16 %v2039
        %v2074 = vpack.c.b16 %v2043, %v2042
        %v2075 = vpack.c.b16 %v2045, %v2044
        %v2076 = vpack.c.b16 %v2047, %v2046
        %v2077 = vpack.c.b16 %v2049, %v2048
        %v2078 = vpack.c.b16 %v2051, %v2050
        %v2079 = vpack.c.b16 %v2053, %v2052
        %v2080 = vpack.c.b16 %v2055, %v2054
        %v2081 = vpack.c.b16 %v2057, %v2056
        %v2082 = vpack.c.b16 %v2059, %v2058
        %v2083 = vpack.c.b16 %v2061, %v2060
        %v2084 = vpack.c.b16 %v2063, %v2062
        %v2085 = vpack.c.b16 %v2065, %v2064
        %v2086 = vpack.c.b16 %v2067, %v2066
        %v2087 = vpack.c.b16 %v2069, %v2068
        %v2088 = vpack.c.b16 %v2071, %v2070
        %v2089 = vpack.c.b16 %v2073, %v2072
        %v2091 = vsel %vm933, %v2074, 0
        %v2094 = vsel %vm933, %v2075, 0
        %v2097 = vsel %vm933, %v2076, 0
        %v2100 = vsel %vm933, %v2077, 0
        %v2103 = vsel %vm933, %v2078, 0
        %v2106 = vsel %vm933, %v2079, 0
        %v2109 = vsel %vm933, %v2080, 0
        %v2112 = vsel %vm933, %v2081, 0
        %v2115 = vsel %vm933, %v2082, 0
        %v2118 = vsel %vm933, %v2083, 0
        %v2121 = vsel %vm933, %v2084, 0
        %v2124 = vsel %vm933, %v2085, 0
        %v2127 = vsel %vm933, %v2086, 0
        %v2130 = vsel %vm933, %v2087, 0
        %v2133 = vsel %vm933, %v2088, 0
        %v2136 = vsel %vm933, %v2089, 0
        %v2139 = vsel %vm982, %v2041, 0
        %2141 = vmatpush.bf16.msra.mxu0 0
        %2142 = vmatpush.bf16.msra.mxu0 0
        %2143 = vmatpush.bf16.msra.mxu0 0
        %2144 = vmatpush.bf16.msra.mxu0 0
        %2145 = vmatpush.bf16.msra.mxu0 0
        %2146 = vmatpush.bf16.msra.mxu0 0
        %2147 = vmatpush.bf16.msra.mxu0 0
        %2148 = vmatpush.bf16.msra.mxu0 %v2139
        %2149 = vmatmul.bf16.gmra.mxu0 %v2091
        %v2150 = vpop.f32.mrf.mxu0
        %v2151 = vadd.f32 0.0, %v2150
        %v2152 = vpop.f32.mrf.mxu0
        %v2153 = vadd.f32 0.0, %v2152
        %2154 = vmatmul.bf16.gmra.mxu0 %v2094
        %v2155 = vpop.f32.mrf.mxu0
        %v2156 = vadd.f32 0.0, %v2155
        %v2157 = vpop.f32.mrf.mxu0
        %v2158 = vadd.f32 0.0, %v2157
        %2159 = vmatmul.bf16.gmra.mxu0 %v2097
        %v2160 = vpop.f32.mrf.mxu0
        %v2161 = vadd.f32 0.0, %v2160
        %v2162 = vpop.f32.mrf.mxu0
        %v2163 = vadd.f32 0.0, %v2162
        %2164 = vmatmul.bf16.gmra.mxu0 %v2100
        %v2165 = vpop.f32.mrf.mxu0
        %v2166 = vadd.f32 0.0, %v2165
        %v2167 = vpop.f32.mrf.mxu0
        %v2168 = vadd.f32 0.0, %v2167
        %2169 = vmatmul.bf16.gmra.mxu0 %v2103
        %v2170 = vpop.f32.mrf.mxu0
        %v2171 = vadd.f32 0.0, %v2170
        %v2172 = vpop.f32.mrf.mxu0
        %v2173 = vadd.f32 0.0, %v2172
        %2174 = vmatmul.bf16.gmra.mxu0 %v2106
        %v2175 = vpop.f32.mrf.mxu0
        %v2176 = vadd.f32 0.0, %v2175
        %v2177 = vpop.f32.mrf.mxu0
        %v2178 = vadd.f32 0.0, %v2177
        %2179 = vmatmul.bf16.gmra.mxu0 %v2109
        %v2180 = vpop.f32.mrf.mxu0
        %v2181 = vadd.f32 0.0, %v2180
        %v2182 = vpop.f32.mrf.mxu0
        %v2183 = vadd.f32 0.0, %v2182
        %2184 = vmatmul.bf16.gmra.mxu0 %v2112
        %v2185 = vpop.f32.mrf.mxu0
        %v2186 = vadd.f32 0.0, %v2185
        %v2187 = vpop.f32.mrf.mxu0
        %v2188 = vadd.f32 0.0, %v2187
        %2189 = vmatmul.bf16.gmra.mxu0 %v2115
        %v2190 = vpop.f32.mrf.mxu0
        %v2191 = vadd.f32 0.0, %v2190
        %v2192 = vpop.f32.mrf.mxu0
        %v2193 = vadd.f32 0.0, %v2192
        %2194 = vmatmul.bf16.gmra.mxu0 %v2118
        %v2195 = vpop.f32.mrf.mxu0
        %v2196 = vadd.f32 0.0, %v2195
        %v2197 = vpop.f32.mrf.mxu0
        %v2198 = vadd.f32 0.0, %v2197
        %2199 = vmatmul.bf16.gmra.mxu0 %v2121
        %v2200 = vpop.f32.mrf.mxu0
        %v2201 = vadd.f32 0.0, %v2200
        %v2202 = vpop.f32.mrf.mxu0
        %v2203 = vadd.f32 0.0, %v2202
        %2204 = vmatmul.bf16.gmra.mxu0 %v2124
        %v2205 = vpop.f32.mrf.mxu0
        %v2206 = vadd.f32 0.0, %v2205
        %v2207 = vpop.f32.mrf.mxu0
        %v2208 = vadd.f32 0.0, %v2207
        %2209 = vmatmul.bf16.gmra.mxu0 %v2127
        %v2210 = vpop.f32.mrf.mxu0
        %v2211 = vadd.f32 0.0, %v2210
        %v2212 = vpop.f32.mrf.mxu0
        %v2213 = vadd.f32 0.0, %v2212
        %2214 = vmatmul.bf16.gmra.mxu0 %v2130
        %v2215 = vpop.f32.mrf.mxu0
        %v2216 = vadd.f32 0.0, %v2215
        %v2217 = vpop.f32.mrf.mxu0
        %v2218 = vadd.f32 0.0, %v2217
        %2219 = vmatmul.bf16.gmra.mxu0 %v2133
        %v2220 = vpop.f32.mrf.mxu0
        %v2221 = vadd.f32 0.0, %v2220
        %v2222 = vpop.f32.mrf.mxu0
        %v2223 = vadd.f32 0.0, %v2222
        %2224 = vmatmul.bf16.gmra.mxu0 %v2136
        %v2225 = vpop.f32.mrf.mxu0
        %v2226 = vadd.f32 0.0, %v2225
        %v2227 = vpop.f32.mrf.mxu0
        %v2228 = vadd.f32 0.0, %v2227
        %2229 = vdwg.mxu0
        %v2230 = vld [vmem:[#allocation3] sm:$0xff]
        %v2231 = vld [vmem:[#allocation3 + $0x8] sm:$0xff]
        %v2232 = vld [vmem:[#allocation3 + $0x10] sm:$0xff]
        %v2233 = vld [vmem:[#allocation3 + $0x18] sm:$0xff]
        %v2234 = vld [vmem:[#allocation3 + $0x20] sm:$0xff]
        %v2235 = vld [vmem:[#allocation3 + $0x28] sm:$0xff]
        %v2236 = vld [vmem:[#allocation3 + $0x30] sm:$0xff]
        %v2237 = vld [vmem:[#allocation3 + $0x38] sm:$0xff]
        %v2238 = vld [vmem:[#allocation3 + $0x40] sm:$0xff]
        %v2239 = vld [vmem:[#allocation3 + $0x48] sm:$0xff]
        %v2240 = vld [vmem:[#allocation3 + $0x50] sm:$0xff]
        %v2241 = vld [vmem:[#allocation3 + $0x58] sm:$0xff]
        %v2242 = vld [vmem:[#allocation3 + $0x60] sm:$0xff]
        %v2243 = vld [vmem:[#allocation3 + $0x68] sm:$0xff]
        %v2244 = vld [vmem:[#allocation3 + $0x70] sm:$0xff]
        %v2245 = vld [vmem:[#allocation3 + $0x78] sm:$0xff]
        %v2246 = vld [vmem:[#allocation3 + $0x80] sm:$0xff]
        %v2247 = vld [vmem:[#allocation3 + $0x88] sm:$0xff]
        %v2248 = vld [vmem:[#allocation3 + $0x90] sm:$0xff]
        %v2249 = vld [vmem:[#allocation3 + $0x98] sm:$0xff]
        %v2250 = vld [vmem:[#allocation3 + $0xa0] sm:$0xff]
        %v2251 = vld [vmem:[#allocation3 + $0xa8] sm:$0xff]
        %v2252 = vld [vmem:[#allocation3 + $0xb0] sm:$0xff]
        %v2253 = vld [vmem:[#allocation3 + $0xb8] sm:$0xff]
        %v2254 = vld [vmem:[#allocation3 + $0xc0] sm:$0xff]
        %v2255 = vld [vmem:[#allocation3 + $0xc8] sm:$0xff]
        %v2256 = vld [vmem:[#allocation3 + $0xd0] sm:$0xff]
        %v2257 = vld [vmem:[#allocation3 + $0xd8] sm:$0xff]
        %v2258 = vld [vmem:[#allocation3 + $0xe0] sm:$0xff]
        %v2259 = vld [vmem:[#allocation3 + $0xe8] sm:$0xff]
        %v2260 = vld [vmem:[#allocation3 + $0xf0] sm:$0xff]
        %v2261 = vld [vmem:[#allocation3 + $0xf8] sm:$0xff]
        %v2262 = vadd.f32 %v2230, %v2151
        %v2263 = vadd.f32 %v2231, %v2153
        %v2264 = vadd.f32 %v2232, %v2156
        %v2265 = vadd.f32 %v2233, %v2158
        %v2266 = vadd.f32 %v2234, %v2161
        %v2267 = vadd.f32 %v2235, %v2163
        %v2268 = vadd.f32 %v2236, %v2166
        %v2269 = vadd.f32 %v2237, %v2168
        %v2270 = vadd.f32 %v2238, %v2171
        %v2271 = vadd.f32 %v2239, %v2173
        %v2272 = vadd.f32 %v2240, %v2176
        %v2273 = vadd.f32 %v2241, %v2178
        %v2274 = vadd.f32 %v2242, %v2181
        %v2275 = vadd.f32 %v2243, %v2183
        %v2276 = vadd.f32 %v2244, %v2186
        %v2277 = vadd.f32 %v2245, %v2188
        %v2278 = vadd.f32 %v2246, %v2191
        %v2279 = vadd.f32 %v2247, %v2193
        %v2280 = vadd.f32 %v2248, %v2196
        %v2281 = vadd.f32 %v2249, %v2198
        %v2282 = vadd.f32 %v2250, %v2201
        %v2283 = vadd.f32 %v2251, %v2203
        %v2284 = vadd.f32 %v2252, %v2206
        %v2285 = vadd.f32 %v2253, %v2208
        %v2286 = vadd.f32 %v2254, %v2211
        %v2287 = vadd.f32 %v2255, %v2213
        %v2288 = vadd.f32 %v2256, %v2216
        %v2289 = vadd.f32 %v2257, %v2218
        %v2290 = vadd.f32 %v2258, %v2221
        %v2291 = vadd.f32 %v2259, %v2223
        %v2292 = vadd.f32 %v2260, %v2226
        %v2293 = vadd.f32 %v2261, %v2228
        %2294 = vst.msk [vmem:[#allocation3] sm:$0xff] %vm1075, %v2262
        %2295 = vst.msk [vmem:[#allocation3 + $0x8] sm:$0xff] %vm1075, %v2263
        %2296 = vst.msk [vmem:[#allocation3 + $0x10] sm:$0xff] %vm1075, %v2264
        %2297 = vst.msk [vmem:[#allocation3 + $0x18] sm:$0xff] %vm1075, %v2265
        %2298 = vst.msk [vmem:[#allocation3 + $0x20] sm:$0xff] %vm1075, %v2266
        %2299 = vst.msk [vmem:[#allocation3 + $0x28] sm:$0xff] %vm1075, %v2267
        %2300 = vst.msk [vmem:[#allocation3 + $0x30] sm:$0xff] %vm1075, %v2268
        %2301 = vst.msk [vmem:[#allocation3 + $0x38] sm:$0xff] %vm1075, %v2269
        %2302 = vst.msk [vmem:[#allocation3 + $0x40] sm:$0xff] %vm1075, %v2270
        %2303 = vst.msk [vmem:[#allocation3 + $0x48] sm:$0xff] %vm1075, %v2271
        %2304 = vst.msk [vmem:[#allocation3 + $0x50] sm:$0xff] %vm1075, %v2272
        %2305 = vst.msk [vmem:[#allocation3 + $0x58] sm:$0xff] %vm1075, %v2273
        %2306 = vst.msk [vmem:[#allocation3 + $0x60] sm:$0xff] %vm1075, %v2274
        %2307 = vst.msk [vmem:[#allocation3 + $0x68] sm:$0xff] %vm1075, %v2275
        %2308 = vst.msk [vmem:[#allocation3 + $0x70] sm:$0xff] %vm1075, %v2276
        %2309 = vst.msk [vmem:[#allocation3 + $0x78] sm:$0xff] %vm1075, %v2277
        %2310 = vst.msk [vmem:[#allocation3 + $0x80] sm:$0xff] %vm1075, %v2278
        %2311 = vst.msk [vmem:[#allocation3 + $0x88] sm:$0xff] %vm1075, %v2279
        %2312 = vst.msk [vmem:[#allocation3 + $0x90] sm:$0xff] %vm1075, %v2280
        %2313 = vst.msk [vmem:[#allocation3 + $0x98] sm:$0xff] %vm1075, %v2281
        %2314 = vst.msk [vmem:[#allocation3 + $0xa0] sm:$0xff] %vm1075, %v2282
        %2315 = vst.msk [vmem:[#allocation3 + $0xa8] sm:$0xff] %vm1075, %v2283
        %2316 = vst.msk [vmem:[#allocation3 + $0xb0] sm:$0xff] %vm1075, %v2284
        %2317 = vst.msk [vmem:[#allocation3 + $0xb8] sm:$0xff] %vm1075, %v2285
        %2318 = vst.msk [vmem:[#allocation3 + $0xc0] sm:$0xff] %vm1075, %v2286
        %2319 = vst.msk [vmem:[#allocation3 + $0xc8] sm:$0xff] %vm1075, %v2287
        %2320 = vst.msk [vmem:[#allocation3 + $0xd0] sm:$0xff] %vm1075, %v2288
        %2321 = vst.msk [vmem:[#allocation3 + $0xd8] sm:$0xff] %vm1075, %v2289
        %2322 = vst.msk [vmem:[#allocation3 + $0xe0] sm:$0xff] %vm1075, %v2290
        %2323 = vst.msk [vmem:[#allocation3 + $0xe8] sm:$0xff] %vm1075, %v2291
        %2324 = vst.msk [vmem:[#allocation3 + $0xf0] sm:$0xff] %vm1075, %v2292
        %2325 = vst.msk [vmem:[#allocation3 + $0xf8] sm:$0xff] %vm1075, %v2293
        %v2326 = vld [vmem:[%s627] sm:$0xf]
        %v2327 = vld [vmem:[%s627 + $0x4] sm:$0xf]
        %v2328 = vld [vmem:[%s627 + $0xc] sm:$0xf]
        %v2329 = vld [vmem:[%s627 + $0x10] sm:$0xf]
        %v2330 = vld [vmem:[%s627 + $0x18] sm:$0xf]
        %v2331 = vld [vmem:[%s627 + $0x1c] sm:$0xf]
        %v2332 = vld [vmem:[%s627 + $0x24] sm:$0xf]
        %v2333 = vld [vmem:[%s627 + $0x28] sm:$0xf]
        %v2334 = vld [vmem:[%s627 + $0x30] sm:$0xf]
        %v2335 = vld [vmem:[%s627 + $0x34] sm:$0xf]
        %v2336 = vld [vmem:[%s627 + $0x3c] sm:$0xf]
        %v2337 = vld [vmem:[%s627 + $0x40] sm:$0xf]
        %v2338 = vld [vmem:[%s627 + $0x48] sm:$0xf]
        %v2339 = vld [vmem:[%s627 + $0x4c] sm:$0xf]
        %v2340 = vld [vmem:[%s627 + $0x54] sm:$0xf]
        %v2341 = vld [vmem:[%s627 + $0x58] sm:$0xf]
        %v2342 = vld [vmem:[%s627 + $0x60] sm:$0xf]
        %v2343 = vld [vmem:[%s627 + $0x64] sm:$0xf]
        %v2344 = vld [vmem:[%s627 + $0x6c] sm:$0xf]
        %v2345 = vld [vmem:[%s627 + $0x70] sm:$0xf]
        %v2346 = vld [vmem:[%s627 + $0x78] sm:$0xf]
        %v2347 = vld [vmem:[%s627 + $0x7c] sm:$0xf]
        %v2348 = vld [vmem:[%s627 + $0x84] sm:$0xf]
        %v2349 = vld [vmem:[%s627 + $0x88] sm:$0xf]
        %v2350 = vld [vmem:[%s627 + $0x90] sm:$0xf]
        %v2351 = vld [vmem:[%s627 + $0x94] sm:$0xf]
        %v2352 = vld [vmem:[%s627 + $0x9c] sm:$0xf]
        %v2353 = vld [vmem:[%s627 + $0xa0] sm:$0xf]
        %v2354 = vld [vmem:[%s627 + $0xa8] sm:$0xf]
        %v2355 = vld [vmem:[%s627 + $0xac] sm:$0xf]
        %v2356 = vld [vmem:[%s627 + $0xb4] sm:$0xf]
        %v2357 = vld [vmem:[%s627 + $0xb8] sm:$0xf]
        %s2358 = scalar_lea.vmem %s1, 12
        %v2359 = vld [vmem:[%s2358] sm:$0xf]
        %v2392 = vunpack.c.l.b16 %v2326
        %v2393 = vunpack.c.l.b16 %v2327
        %v2394 = vunpack.c.l.b16 %v2328
        %v2395 = vunpack.c.l.b16 %v2329
        %v2396 = vunpack.c.l.b16 %v2330
        %v2397 = vunpack.c.l.b16 %v2331
        %v2398 = vunpack.c.l.b16 %v2332
        %v2399 = vunpack.c.l.b16 %v2333
        %v2400 = vunpack.c.l.b16 %v2334
        %v2401 = vunpack.c.l.b16 %v2335
        %v2402 = vunpack.c.l.b16 %v2336
        %v2403 = vunpack.c.l.b16 %v2337
        %v2404 = vunpack.c.l.b16 %v2338
        %v2405 = vunpack.c.l.b16 %v2339
        %v2406 = vunpack.c.l.b16 %v2340
        %v2407 = vunpack.c.l.b16 %v2341
        %v2408 = vunpack.c.l.b16 %v2342
        %v2409 = vunpack.c.l.b16 %v2343
        %v2410 = vunpack.c.l.b16 %v2344
        %v2411 = vunpack.c.l.b16 %v2345
        %v2412 = vunpack.c.l.b16 %v2346
        %v2413 = vunpack.c.l.b16 %v2347
        %v2414 = vunpack.c.l.b16 %v2348
        %v2415 = vunpack.c.l.b16 %v2349
        %v2416 = vunpack.c.l.b16 %v2350
        %v2417 = vunpack.c.l.b16 %v2351
        %v2418 = vunpack.c.l.b16 %v2352
        %v2419 = vunpack.c.l.b16 %v2353
        %v2420 = vunpack.c.l.b16 %v2354
        %v2421 = vunpack.c.l.b16 %v2355
        %v2422 = vunpack.c.l.b16 %v2356
        %v2423 = vunpack.c.l.b16 %v2357
        %v2424 = vpack.c.b16 %v2393, %v2392
        %v2425 = vpack.c.b16 %v2395, %v2394
        %v2426 = vpack.c.b16 %v2397, %v2396
        %v2427 = vpack.c.b16 %v2399, %v2398
        %v2428 = vpack.c.b16 %v2401, %v2400
        %v2429 = vpack.c.b16 %v2403, %v2402
        %v2430 = vpack.c.b16 %v2405, %v2404
        %v2431 = vpack.c.b16 %v2407, %v2406
        %v2432 = vpack.c.b16 %v2409, %v2408
        %v2433 = vpack.c.b16 %v2411, %v2410
        %v2434 = vpack.c.b16 %v2413, %v2412
        %v2435 = vpack.c.b16 %v2415, %v2414
        %v2436 = vpack.c.b16 %v2417, %v2416
        %v2437 = vpack.c.b16 %v2419, %v2418
        %v2438 = vpack.c.b16 %v2421, %v2420
        %v2439 = vpack.c.b16 %v2423, %v2422
        %v2441 = vsel %vm933, %v2424, 0
        %v2444 = vsel %vm933, %v2425, 0
        %v2447 = vsel %vm933, %v2426, 0
        %v2450 = vsel %vm933, %v2427, 0
        %v2453 = vsel %vm933, %v2428, 0
        %v2456 = vsel %vm933, %v2429, 0
        %v2459 = vsel %vm933, %v2430, 0
        %v2462 = vsel %vm933, %v2431, 0
        %v2465 = vsel %vm933, %v2432, 0
        %v2468 = vsel %vm933, %v2433, 0
        %v2471 = vsel %vm933, %v2434, 0
        %v2474 = vsel %vm933, %v2435, 0
        %v2477 = vsel %vm933, %v2436, 0
        %v2480 = vsel %vm933, %v2437, 0
        %v2483 = vsel %vm933, %v2438, 0
        %v2486 = vsel %vm933, %v2439, 0
        %v2489 = vsel %vm982, %v2359, 0
        %2491 = vmatpush.bf16.msra.mxu0 0
        %2492 = vmatpush.bf16.msra.mxu0 0
        %2493 = vmatpush.bf16.msra.mxu0 0
        %2494 = vmatpush.bf16.msra.mxu0 0
        %2495 = vmatpush.bf16.msra.mxu0 0
        %2496 = vmatpush.bf16.msra.mxu0 0
        %2497 = vmatpush.bf16.msra.mxu0 0
        %2498 = vmatpush.bf16.msra.mxu0 %v2489
        %2499 = vmatmul.bf16.gmra.mxu0 %v2441
        %v2500 = vpop.f32.mrf.mxu0
        %v2501 = vadd.f32 0.0, %v2500
        %v2502 = vpop.f32.mrf.mxu0
        %v2503 = vadd.f32 0.0, %v2502
        %2504 = vmatmul.bf16.gmra.mxu0 %v2444
        %v2505 = vpop.f32.mrf.mxu0
        %v2506 = vadd.f32 0.0, %v2505
        %v2507 = vpop.f32.mrf.mxu0
        %v2508 = vadd.f32 0.0, %v2507
        %2509 = vmatmul.bf16.gmra.mxu0 %v2447
        %v2510 = vpop.f32.mrf.mxu0
        %v2511 = vadd.f32 0.0, %v2510
        %v2512 = vpop.f32.mrf.mxu0
        %v2513 = vadd.f32 0.0, %v2512
        %2514 = vmatmul.bf16.gmra.mxu0 %v2450
        %v2515 = vpop.f32.mrf.mxu0
        %v2516 = vadd.f32 0.0, %v2515
        %v2517 = vpop.f32.mrf.mxu0
        %v2518 = vadd.f32 0.0, %v2517
        %2519 = vmatmul.bf16.gmra.mxu0 %v2453
        %v2520 = vpop.f32.mrf.mxu0
        %v2521 = vadd.f32 0.0, %v2520
        %v2522 = vpop.f32.mrf.mxu0
        %v2523 = vadd.f32 0.0, %v2522
        %2524 = vmatmul.bf16.gmra.mxu0 %v2456
        %v2525 = vpop.f32.mrf.mxu0
        %v2526 = vadd.f32 0.0, %v2525
        %v2527 = vpop.f32.mrf.mxu0
        %v2528 = vadd.f32 0.0, %v2527
        %2529 = vmatmul.bf16.gmra.mxu0 %v2459
        %v2530 = vpop.f32.mrf.mxu0
        %v2531 = vadd.f32 0.0, %v2530
        %v2532 = vpop.f32.mrf.mxu0
        %v2533 = vadd.f32 0.0, %v2532
        %2534 = vmatmul.bf16.gmra.mxu0 %v2462
        %v2535 = vpop.f32.mrf.mxu0
        %v2536 = vadd.f32 0.0, %v2535
        %v2537 = vpop.f32.mrf.mxu0
        %v2538 = vadd.f32 0.0, %v2537
        %2539 = vmatmul.bf16.gmra.mxu0 %v2465
        %v2540 = vpop.f32.mrf.mxu0
        %v2541 = vadd.f32 0.0, %v2540
        %v2542 = vpop.f32.mrf.mxu0
        %v2543 = vadd.f32 0.0, %v2542
        %2544 = vmatmul.bf16.gmra.mxu0 %v2468
        %v2545 = vpop.f32.mrf.mxu0
        %v2546 = vadd.f32 0.0, %v2545
        %v2547 = vpop.f32.mrf.mxu0
        %v2548 = vadd.f32 0.0, %v2547
        %2549 = vmatmul.bf16.gmra.mxu0 %v2471
        %v2550 = vpop.f32.mrf.mxu0
        %v2551 = vadd.f32 0.0, %v2550
        %v2552 = vpop.f32.mrf.mxu0
        %v2553 = vadd.f32 0.0, %v2552
        %2554 = vmatmul.bf16.gmra.mxu0 %v2474
        %v2555 = vpop.f32.mrf.mxu0
        %v2556 = vadd.f32 0.0, %v2555
        %v2557 = vpop.f32.mrf.mxu0
        %v2558 = vadd.f32 0.0, %v2557
        %2559 = vmatmul.bf16.gmra.mxu0 %v2477
        %v2560 = vpop.f32.mrf.mxu0
        %v2561 = vadd.f32 0.0, %v2560
        %v2562 = vpop.f32.mrf.mxu0
        %v2563 = vadd.f32 0.0, %v2562
        %2564 = vmatmul.bf16.gmra.mxu0 %v2480
        %v2565 = vpop.f32.mrf.mxu0
        %v2566 = vadd.f32 0.0, %v2565
        %v2567 = vpop.f32.mrf.mxu0
        %v2568 = vadd.f32 0.0, %v2567
        %2569 = vmatmul.bf16.gmra.mxu0 %v2483
        %v2570 = vpop.f32.mrf.mxu0
        %v2571 = vadd.f32 0.0, %v2570
        %v2572 = vpop.f32.mrf.mxu0
        %v2573 = vadd.f32 0.0, %v2572
        %2574 = vmatmul.bf16.gmra.mxu0 %v2486
        %v2575 = vpop.f32.mrf.mxu0
        %v2576 = vadd.f32 0.0, %v2575
        %v2577 = vpop.f32.mrf.mxu0
        %v2578 = vadd.f32 0.0, %v2577
        %2579 = vdwg.mxu0
        %v2580 = vld [vmem:[#allocation3] sm:$0xff]
        %v2581 = vld [vmem:[#allocation3 + $0x8] sm:$0xff]
        %v2582 = vld [vmem:[#allocation3 + $0x10] sm:$0xff]
        %v2583 = vld [vmem:[#allocation3 + $0x18] sm:$0xff]
        %v2584 = vld [vmem:[#allocation3 + $0x20] sm:$0xff]
        %v2585 = vld [vmem:[#allocation3 + $0x28] sm:$0xff]
        %v2586 = vld [vmem:[#allocation3 + $0x30] sm:$0xff]
        %v2587 = vld [vmem:[#allocation3 + $0x38] sm:$0xff]
        %v2588 = vld [vmem:[#allocation3 + $0x40] sm:$0xff]
        %v2589 = vld [vmem:[#allocation3 + $0x48] sm:$0xff]
        %v2590 = vld [vmem:[#allocation3 + $0x50] sm:$0xff]
        %v2591 = vld [vmem:[#allocation3 + $0x58] sm:$0xff]
        %v2592 = vld [vmem:[#allocation3 + $0x60] sm:$0xff]
        %v2593 = vld [vmem:[#allocation3 + $0x68] sm:$0xff]
        %v2594 = vld [vmem:[#allocation3 + $0x70] sm:$0xff]
        %v2595 = vld [vmem:[#allocation3 + $0x78] sm:$0xff]
        %v2596 = vld [vmem:[#allocation3 + $0x80] sm:$0xff]
        %v2597 = vld [vmem:[#allocation3 + $0x88] sm:$0xff]
        %v2598 = vld [vmem:[#allocation3 + $0x90] sm:$0xff]
        %v2599 = vld [vmem:[#allocation3 + $0x98] sm:$0xff]
        %v2600 = vld [vmem:[#allocation3 + $0xa0] sm:$0xff]
        %v2601 = vld [vmem:[#allocation3 + $0xa8] sm:$0xff]
        %v2602 = vld [vmem:[#allocation3 + $0xb0] sm:$0xff]
        %v2603 = vld [vmem:[#allocation3 + $0xb8] sm:$0xff]
        %v2604 = vld [vmem:[#allocation3 + $0xc0] sm:$0xff]
        %v2605 = vld [vmem:[#allocation3 + $0xc8] sm:$0xff]
        %v2606 = vld [vmem:[#allocation3 + $0xd0] sm:$0xff]
        %v2607 = vld [vmem:[#allocation3 + $0xd8] sm:$0xff]
        %v2608 = vld [vmem:[#allocation3 + $0xe0] sm:$0xff]
        %v2609 = vld [vmem:[#allocation3 + $0xe8] sm:$0xff]
        %v2610 = vld [vmem:[#allocation3 + $0xf0] sm:$0xff]
        %v2611 = vld [vmem:[#allocation3 + $0xf8] sm:$0xff]
        %v2612 = vadd.f32 %v2580, %v2501
        %v2613 = vadd.f32 %v2581, %v2503
        %v2614 = vadd.f32 %v2582, %v2506
        %v2615 = vadd.f32 %v2583, %v2508
        %v2616 = vadd.f32 %v2584, %v2511
        %v2617 = vadd.f32 %v2585, %v2513
        %v2618 = vadd.f32 %v2586, %v2516
        %v2619 = vadd.f32 %v2587, %v2518
        %v2620 = vadd.f32 %v2588, %v2521
        %v2621 = vadd.f32 %v2589, %v2523
        %v2622 = vadd.f32 %v2590, %v2526
        %v2623 = vadd.f32 %v2591, %v2528
        %v2624 = vadd.f32 %v2592, %v2531
        %v2625 = vadd.f32 %v2593, %v2533
        %v2626 = vadd.f32 %v2594, %v2536
        %v2627 = vadd.f32 %v2595, %v2538
        %v2628 = vadd.f32 %v2596, %v2541
        %v2629 = vadd.f32 %v2597, %v2543
        %v2630 = vadd.f32 %v2598, %v2546
        %v2631 = vadd.f32 %v2599, %v2548
        %v2632 = vadd.f32 %v2600, %v2551
        %v2633 = vadd.f32 %v2601, %v2553
        %v2634 = vadd.f32 %v2602, %v2556
        %v2635 = vadd.f32 %v2603, %v2558
        %v2636 = vadd.f32 %v2604, %v2561
        %v2637 = vadd.f32 %v2605, %v2563
        %v2638 = vadd.f32 %v2606, %v2566
        %v2639 = vadd.f32 %v2607, %v2568
        %v2640 = vadd.f32 %v2608, %v2571
        %v2641 = vadd.f32 %v2609, %v2573
        %v2642 = vadd.f32 %v2610, %v2576
        %v2643 = vadd.f32 %v2611, %v2578
        %2644 = vst.msk [vmem:[#allocation3] sm:$0xff] %vm1075, %v2612
        %2645 = vst.msk [vmem:[#allocation3 + $0x8] sm:$0xff] %vm1075, %v2613
        %2646 = vst.msk [vmem:[#allocation3 + $0x10] sm:$0xff] %vm1075, %v2614
        %2647 = vst.msk [vmem:[#allocation3 + $0x18] sm:$0xff] %vm1075, %v2615
        %2648 = vst.msk [vmem:[#allocation3 + $0x20] sm:$0xff] %vm1075, %v2616
        %2649 = vst.msk [vmem:[#allocation3 + $0x28] sm:$0xff] %vm1075, %v2617
        %2650 = vst.msk [vmem:[#allocation3 + $0x30] sm:$0xff] %vm1075, %v2618
        %2651 = vst.msk [vmem:[#allocation3 + $0x38] sm:$0xff] %vm1075, %v2619
        %2652 = vst.msk [vmem:[#allocation3 + $0x40] sm:$0xff] %vm1075, %v2620
        %2653 = vst.msk [vmem:[#allocation3 + $0x48] sm:$0xff] %vm1075, %v2621
        %2654 = vst.msk [vmem:[#allocation3 + $0x50] sm:$0xff] %vm1075, %v2622
        %2655 = vst.msk [vmem:[#allocation3 + $0x58] sm:$0xff] %vm1075, %v2623
        %2656 = vst.msk [vmem:[#allocation3 + $0x60] sm:$0xff] %vm1075, %v2624
        %2657 = vst.msk [vmem:[#allocation3 + $0x68] sm:$0xff] %vm1075, %v2625
        %2658 = vst.msk [vmem:[#allocation3 + $0x70] sm:$0xff] %vm1075, %v2626
        %2659 = vst.msk [vmem:[#allocation3 + $0x78] sm:$0xff] %vm1075, %v2627
        %2660 = vst.msk [vmem:[#allocation3 + $0x80] sm:$0xff] %vm1075, %v2628
        %2661 = vst.msk [vmem:[#allocation3 + $0x88] sm:$0xff] %vm1075, %v2629
        %2662 = vst.msk [vmem:[#allocation3 + $0x90] sm:$0xff] %vm1075, %v2630
        %2663 = vst.msk [vmem:[#allocation3 + $0x98] sm:$0xff] %vm1075, %v2631
        %2664 = vst.msk [vmem:[#allocation3 + $0xa0] sm:$0xff] %vm1075, %v2632
        %2665 = vst.msk [vmem:[#allocation3 + $0xa8] sm:$0xff] %vm1075, %v2633
        %2666 = vst.msk [vmem:[#allocation3 + $0xb0] sm:$0xff] %vm1075, %v2634
        %2667 = vst.msk [vmem:[#allocation3 + $0xb8] sm:$0xff] %vm1075, %v2635
        %2668 = vst.msk [vmem:[#allocation3 + $0xc0] sm:$0xff] %vm1075, %v2636
        %2669 = vst.msk [vmem:[#allocation3 + $0xc8] sm:$0xff] %vm1075, %v2637
        %2670 = vst.msk [vmem:[#allocation3 + $0xd0] sm:$0xff] %vm1075, %v2638
        %2671 = vst.msk [vmem:[#allocation3 + $0xd8] sm:$0xff] %vm1075, %v2639
        %2672 = vst.msk [vmem:[#allocation3 + $0xe0] sm:$0xff] %vm1075, %v2640
        %2673 = vst.msk [vmem:[#allocation3 + $0xe8] sm:$0xff] %vm1075, %v2641
        %2674 = vst.msk [vmem:[#allocation3 + $0xf0] sm:$0xff] %vm1075, %v2642
        %2675 = vst.msk [vmem:[#allocation3 + $0xf8] sm:$0xff] %vm1075, %v2643
        %v2676 = vld [vmem:[%s627] sm:$0xf]
        %v2677 = vld [vmem:[%s627 + $0x4] sm:$0xf]
        %v2678 = vld [vmem:[%s627 + $0x8] sm:$0x1]
        %v2679 = vld [vmem:[%s627 + $0xc] sm:$0xf]
        %v2680 = vld [vmem:[%s627 + $0x10] sm:$0xf]
        %v2681 = vld [vmem:[%s627 + $0x14] sm:$0x1]
        %v2682 = vld [vmem:[%s627 + $0x18] sm:$0xf]
        %v2683 = vld [vmem:[%s627 + $0x1c] sm:$0xf]
        %v2684 = vld [vmem:[%s627 + $0x20] sm:$0x1]
        %v2685 = vld [vmem:[%s627 + $0x24] sm:$0xf]
        %v2686 = vld [vmem:[%s627 + $0x28] sm:$0xf]
        %v2687 = vld [vmem:[%s627 + $0x2c] sm:$0x1]
        %v2688 = vld [vmem:[%s627 + $0x30] sm:$0xf]
        %v2689 = vld [vmem:[%s627 + $0x34] sm:$0xf]
        %v2690 = vld [vmem:[%s627 + $0x38] sm:$0x1]
        %v2691 = vld [vmem:[%s627 + $0x3c] sm:$0xf]
        %v2692 = vld [vmem:[%s627 + $0x40] sm:$0xf]
        %v2693 = vld [vmem:[%s627 + $0x44] sm:$0x1]
        %v2694 = vld [vmem:[%s627 + $0x48] sm:$0xf]
        %v2695 = vld [vmem:[%s627 + $0x4c] sm:$0xf]
        %v2696 = vld [vmem:[%s627 + $0x50] sm:$0x1]
        %v2697 = vld [vmem:[%s627 + $0x54] sm:$0xf]
        %v2698 = vld [vmem:[%s627 + $0x58] sm:$0xf]
        %v2699 = vld [vmem:[%s627 + $0x5c] sm:$0x1]
        %v2700 = vld [vmem:[%s627 + $0x60] sm:$0xf]
        %v2701 = vld [vmem:[%s627 + $0x64] sm:$0xf]
        %v2702 = vld [vmem:[%s627 + $0x68] sm:$0x1]
        %v2703 = vld [vmem:[%s627 + $0x6c] sm:$0xf]
        %v2704 = vld [vmem:[%s627 + $0x70] sm:$0xf]
        %v2705 = vld [vmem:[%s627 + $0x74] sm:$0x1]
        %v2706 = vld [vmem:[%s627 + $0x78] sm:$0xf]
        %v2707 = vld [vmem:[%s627 + $0x7c] sm:$0xf]
        %v2708 = vld [vmem:[%s627 + $0x80] sm:$0x1]
        %v2709 = vld [vmem:[%s627 + $0x84] sm:$0xf]
        %v2710 = vld [vmem:[%s627 + $0x88] sm:$0xf]
        %v2711 = vld [vmem:[%s627 + $0x8c] sm:$0x1]
        %v2712 = vld [vmem:[%s627 + $0x90] sm:$0xf]
        %v2713 = vld [vmem:[%s627 + $0x94] sm:$0xf]
        %v2714 = vld [vmem:[%s627 + $0x98] sm:$0x1]
        %v2715 = vld [vmem:[%s627 + $0x9c] sm:$0xf]
        %v2716 = vld [vmem:[%s627 + $0xa0] sm:$0xf]
        %v2717 = vld [vmem:[%s627 + $0xa4] sm:$0x1]
        %v2718 = vld [vmem:[%s627 + $0xa8] sm:$0xf]
        %v2719 = vld [vmem:[%s627 + $0xac] sm:$0xf]
        %v2720 = vld [vmem:[%s627 + $0xb0] sm:$0x1]
        %v2721 = vld [vmem:[%s627 + $0xb4] sm:$0xf]
        %v2722 = vld [vmem:[%s627 + $0xb8] sm:$0xf]
        %v2723 = vld [vmem:[%s627 + $0xbc] sm:$0x1]
        %v2725 = vshrl.u32 %v2676, 16
        %v2727 = vrot.slane %v2725, 4
        %v2728 = vshll.u32 %v2676, 16
        %v2730 = vrot.slane %v2728, 5
        %v2731 = vor.u32 %v2727, %v2730
        %v2732 = vrot.slane %v2731, 4
        %v2734 = vshll.u32 %v2677, 16
        %v2736 = vrot.slane %v2734, 5
        %v2737 = vsel %vm1158, %v2732, %v2736
        %v2738 = vshrl.u32 %v2677, 16
        %v2740 = vrot.slane %v2738, 4
        %v2741 = vor.u32 %v2740, %v2736
        %v2742 = vrot.slane %v2741, 4
        %v2744 = vshll.u32 %v2678, 16
        %v2746 = vrot.slane %v2744, 5
        %v2747 = vsel %vm1158, %v2742, %v2746
        %v2749 = vshrl.u32 %v2679, 16
        %v2751 = vrot.slane %v2749, 4
        %v2752 = vshll.u32 %v2679, 16
        %v2754 = vrot.slane %v2752, 5
        %v2755 = vor.u32 %v2751, %v2754
        %v2756 = vrot.slane %v2755, 4
        %v2758 = vshll.u32 %v2680, 16
        %v2760 = vrot.slane %v2758, 5
        %v2761 = vsel %vm1158, %v2756, %v2760
        %v2762 = vshrl.u32 %v2680, 16
        %v2764 = vrot.slane %v2762, 4
        %v2765 = vor.u32 %v2764, %v2760
        %v2766 = vrot.slane %v2765, 4
        %v2768 = vshll.u32 %v2681, 16
        %v2770 = vrot.slane %v2768, 5
        %v2771 = vsel %vm1158, %v2766, %v2770
        %v2773 = vshrl.u32 %v2682, 16
        %v2775 = vrot.slane %v2773, 4
        %v2776 = vshll.u32 %v2682, 16
        %v2778 = vrot.slane %v2776, 5
        %v2779 = vor.u32 %v2775, %v2778
        %v2780 = vrot.slane %v2779, 4
        %v2782 = vshll.u32 %v2683, 16
        %v2784 = vrot.slane %v2782, 5
        %v2785 = vsel %vm1158, %v2780, %v2784
        %v2786 = vshrl.u32 %v2683, 16
        %v2788 = vrot.slane %v2786, 4
        %v2789 = vor.u32 %v2788, %v2784
        %v2790 = vrot.slane %v2789, 4
        %v2792 = vshll.u32 %v2684, 16
        %v2794 = vrot.slane %v2792, 5
        %v2795 = vsel %vm1158, %v2790, %v2794
        %v2797 = vshrl.u32 %v2685, 16
        %v2799 = vrot.slane %v2797, 4
        %v2800 = vshll.u32 %v2685, 16
        %v2802 = vrot.slane %v2800, 5
        %v2803 = vor.u32 %v2799, %v2802
        %v2804 = vrot.slane %v2803, 4
        %v2806 = vshll.u32 %v2686, 16
        %v2808 = vrot.slane %v2806, 5
        %v2809 = vsel %vm1158, %v2804, %v2808
        %v2810 = vshrl.u32 %v2686, 16
        %v2812 = vrot.slane %v2810, 4
        %v2813 = vor.u32 %v2812, %v2808
        %v2814 = vrot.slane %v2813, 4
        %v2816 = vshll.u32 %v2687, 16
        %v2818 = vrot.slane %v2816, 5
        %v2819 = vsel %vm1158, %v2814, %v2818
        %v2821 = vshrl.u32 %v2688, 16
        %v2823 = vrot.slane %v2821, 4
        %v2824 = vshll.u32 %v2688, 16
        %v2826 = vrot.slane %v2824, 5
        %v2827 = vor.u32 %v2823, %v2826
        %v2828 = vrot.slane %v2827, 4
        %v2830 = vshll.u32 %v2689, 16
        %v2832 = vrot.slane %v2830, 5
        %v2833 = vsel %vm1158, %v2828, %v2832
        %v2834 = vshrl.u32 %v2689, 16
        %v2836 = vrot.slane %v2834, 4
        %v2837 = vor.u32 %v2836, %v2832
        %v2838 = vrot.slane %v2837, 4
        %v2840 = vshll.u32 %v2690, 16
        %v2842 = vrot.slane %v2840, 5
        %v2843 = vsel %vm1158, %v2838, %v2842
        %v2845 = vshrl.u32 %v2691, 16
        %v2847 = vrot.slane %v2845, 4
        %v2848 = vshll.u32 %v2691, 16
        %v2850 = vrot.slane %v2848, 5
        %v2851 = vor.u32 %v2847, %v2850
        %v2852 = vrot.slane %v2851, 4
        %v2854 = vshll.u32 %v2692, 16
        %v2856 = vrot.slane %v2854, 5
        %v2857 = vsel %vm1158, %v2852, %v2856
        %v2858 = vshrl.u32 %v2692, 16
        %v2860 = vrot.slane %v2858, 4
        %v2861 = vor.u32 %v2860, %v2856
        %v2862 = vrot.slane %v2861, 4
        %v2864 = vshll.u32 %v2693, 16
        %v2866 = vrot.slane %v2864, 5
        %v2867 = vsel %vm1158, %v2862, %v2866
        %v2869 = vshrl.u32 %v2694, 16
        %v2871 = vrot.slane %v2869, 4
        %v2872 = vshll.u32 %v2694, 16
        %v2874 = vrot.slane %v2872, 5
        %v2875 = vor.u32 %v2871, %v2874
        %v2876 = vrot.slane %v2875, 4
        %v2878 = vshll.u32 %v2695, 16
        %v2880 = vrot.slane %v2878, 5
        %v2881 = vsel %vm1158, %v2876, %v2880
        %v2882 = vshrl.u32 %v2695, 16
        %v2884 = vrot.slane %v2882, 4
        %v2885 = vor.u32 %v2884, %v2880
        %v2886 = vrot.slane %v2885, 4
        %v2888 = vshll.u32 %v2696, 16
        %v2890 = vrot.slane %v2888, 5
        %v2891 = vsel %vm1158, %v2886, %v2890
        %v2893 = vshrl.u32 %v2697, 16
        %v2895 = vrot.slane %v2893, 4
        %v2896 = vshll.u32 %v2697, 16
        %v2898 = vrot.slane %v2896, 5
        %v2899 = vor.u32 %v2895, %v2898
        %v2900 = vrot.slane %v2899, 4
        %v2902 = vshll.u32 %v2698, 16
        %v2904 = vrot.slane %v2902, 5
        %v2905 = vsel %vm1158, %v2900, %v2904
        %v2906 = vshrl.u32 %v2698, 16
        %v2908 = vrot.slane %v2906, 4
        %v2909 = vor.u32 %v2908, %v2904
        %v2910 = vrot.slane %v2909, 4
        %v2912 = vshll.u32 %v2699, 16
        %v2914 = vrot.slane %v2912, 5
        %v2915 = vsel %vm1158, %v2910, %v2914
        %v2917 = vshrl.u32 %v2700, 16
        %v2919 = vrot.slane %v2917, 4
        %v2920 = vshll.u32 %v2700, 16
        %v2922 = vrot.slane %v2920, 5
        %v2923 = vor.u32 %v2919, %v2922
        %v2924 = vrot.slane %v2923, 4
        %v2926 = vshll.u32 %v2701, 16
        %v2928 = vrot.slane %v2926, 5
        %v2929 = vsel %vm1158, %v2924, %v2928
        %v2930 = vshrl.u32 %v2701, 16
        %v2932 = vrot.slane %v2930, 4
        %v2933 = vor.u32 %v2932, %v2928
        %v2934 = vrot.slane %v2933, 4
        %v2936 = vshll.u32 %v2702, 16
        %v2938 = vrot.slane %v2936, 5
        %v2939 = vsel %vm1158, %v2934, %v2938
        %v2941 = vshrl.u32 %v2703, 16
        %v2943 = vrot.slane %v2941, 4
        %v2944 = vshll.u32 %v2703, 16
        %v2946 = vrot.slane %v2944, 5
        %v2947 = vor.u32 %v2943, %v2946
        %v2948 = vrot.slane %v2947, 4
        %v2950 = vshll.u32 %v2704, 16
        %v2952 = vrot.slane %v2950, 5
        %v2953 = vsel %vm1158, %v2948, %v2952
        %v2954 = vshrl.u32 %v2704, 16
        %v2956 = vrot.slane %v2954, 4
        %v2957 = vor.u32 %v2956, %v2952
        %v2958 = vrot.slane %v2957, 4
        %v2960 = vshll.u32 %v2705, 16
        %v2962 = vrot.slane %v2960, 5
        %v2963 = vsel %vm1158, %v2958, %v2962
        %v2965 = vshrl.u32 %v2706, 16
        %v2967 = vrot.slane %v2965, 4
        %v2968 = vshll.u32 %v2706, 16
        %v2970 = vrot.slane %v2968, 5
        %v2971 = vor.u32 %v2967, %v2970
        %v2972 = vrot.slane %v2971, 4
        %v2974 = vshll.u32 %v2707, 16
        %v2976 = vrot.slane %v2974, 5
        %v2977 = vsel %vm1158, %v2972, %v2976
        %v2978 = vshrl.u32 %v2707, 16
        %v2980 = vrot.slane %v2978, 4
        %v2981 = vor.u32 %v2980, %v2976
        %v2982 = vrot.slane %v2981, 4
        %v2984 = vshll.u32 %v2708, 16
        %v2986 = vrot.slane %v2984, 5
        %v2987 = vsel %vm1158, %v2982, %v2986
        %v2989 = vshrl.u32 %v2709, 16
        %v2991 = vrot.slane %v2989, 4
        %v2992 = vshll.u32 %v2709, 16
        %v2994 = vrot.slane %v2992, 5
        %v2995 = vor.u32 %v2991, %v2994
        %v2996 = vrot.slane %v2995, 4
        %v2998 = vshll.u32 %v2710, 16
        %v3000 = vrot.slane %v2998, 5
        %v3001 = vsel %vm1158, %v2996, %v3000
        %v3002 = vshrl.u32 %v2710, 16
        %v3004 = vrot.slane %v3002, 4
        %v3005 = vor.u32 %v3004, %v3000
        %v3006 = vrot.slane %v3005, 4
        %v3008 = vshll.u32 %v2711, 16
        %v3010 = vrot.slane %v3008, 5
        %v3011 = vsel %vm1158, %v3006, %v3010
        %v3013 = vshrl.u32 %v2712, 16
        %v3015 = vrot.slane %v3013, 4
        %v3016 = vshll.u32 %v2712, 16
        %v3018 = vrot.slane %v3016, 5
        %v3019 = vor.u32 %v3015, %v3018
        %v3020 = vrot.slane %v3019, 4
        %v3022 = vshll.u32 %v2713, 16
        %v3024 = vrot.slane %v3022, 5
        %v3025 = vsel %vm1158, %v3020, %v3024
        %v3026 = vshrl.u32 %v2713, 16
        %v3028 = vrot.slane %v3026, 4
        %v3029 = vor.u32 %v3028, %v3024
        %v3030 = vrot.slane %v3029, 4
        %v3032 = vshll.u32 %v2714, 16
        %v3034 = vrot.slane %v3032, 5
        %v3035 = vsel %vm1158, %v3030, %v3034
        %v3037 = vshrl.u32 %v2715, 16
        %v3039 = vrot.slane %v3037, 4
        %v3040 = vshll.u32 %v2715, 16
        %v3042 = vrot.slane %v3040, 5
        %v3043 = vor.u32 %v3039, %v3042
        %v3044 = vrot.slane %v3043, 4
        %v3046 = vshll.u32 %v2716, 16
        %v3048 = vrot.slane %v3046, 5
        %v3049 = vsel %vm1158, %v3044, %v3048
        %v3050 = vshrl.u32 %v2716, 16
        %v3052 = vrot.slane %v3050, 4
        %v3053 = vor.u32 %v3052, %v3048
        %v3054 = vrot.slane %v3053, 4
        %v3056 = vshll.u32 %v2717, 16
        %v3058 = vrot.slane %v3056, 5
        %v3059 = vsel %vm1158, %v3054, %v3058
        %v3061 = vshrl.u32 %v2718, 16
        %v3063 = vrot.slane %v3061, 4
        %v3064 = vshll.u32 %v2718, 16
        %v3066 = vrot.slane %v3064, 5
        %v3067 = vor.u32 %v3063, %v3066
        %v3068 = vrot.slane %v3067, 4
        %v3070 = vshll.u32 %v2719, 16
        %v3072 = vrot.slane %v3070, 5
        %v3073 = vsel %vm1158, %v3068, %v3072
        %v3074 = vshrl.u32 %v2719, 16
        %v3076 = vrot.slane %v3074, 4
        %v3077 = vor.u32 %v3076, %v3072
        %v3078 = vrot.slane %v3077, 4
        %v3080 = vshll.u32 %v2720, 16
        %v3082 = vrot.slane %v3080, 5
        %v3083 = vsel %vm1158, %v3078, %v3082
        %v3085 = vshrl.u32 %v2721, 16
        %v3087 = vrot.slane %v3085, 4
        %v3088 = vshll.u32 %v2721, 16
        %v3090 = vrot.slane %v3088, 5
        %v3091 = vor.u32 %v3087, %v3090
        %v3092 = vrot.slane %v3091, 4
        %v3094 = vshll.u32 %v2722, 16
        %v3096 = vrot.slane %v3094, 5
        %v3097 = vsel %vm1158, %v3092, %v3096
        %v3098 = vshrl.u32 %v2722, 16
        %v3100 = vrot.slane %v3098, 4
        %v3101 = vor.u32 %v3100, %v3096
        %v3102 = vrot.slane %v3101, 4
        %v3104 = vshll.u32 %v2723, 16
        %v3106 = vrot.slane %v3104, 5
        %v3107 = vsel %vm1158, %v3102, %v3106
        %s3108 = scalar_lea.vmem %s1, 16
        %v3109 = vld [vmem:[%s3108] sm:$0xf]
        %v3110 = vunpack.c.l.b16 %v2737
        %v3111 = vunpack.c.l.b16 %v2747
        %v3112 = vunpack.c.l.b16 %v2761
        %v3113 = vunpack.c.l.b16 %v2771
        %v3114 = vunpack.c.l.b16 %v2785
        %v3115 = vunpack.c.l.b16 %v2795
        %v3116 = vunpack.c.l.b16 %v2809
        %v3117 = vunpack.c.l.b16 %v2819
        %v3118 = vunpack.c.l.b16 %v2833
        %v3119 = vunpack.c.l.b16 %v2843
        %v3120 = vunpack.c.l.b16 %v2857
        %v3121 = vunpack.c.l.b16 %v2867
        %v3122 = vunpack.c.l.b16 %v2881
        %v3123 = vunpack.c.l.b16 %v2891
        %v3124 = vunpack.c.l.b16 %v2905
        %v3125 = vunpack.c.l.b16 %v2915
        %v3126 = vunpack.c.l.b16 %v2929
        %v3127 = vunpack.c.l.b16 %v2939
        %v3128 = vunpack.c.l.b16 %v2953
        %v3129 = vunpack.c.l.b16 %v2963
        %v3130 = vunpack.c.l.b16 %v2977
        %v3131 = vunpack.c.l.b16 %v2987
        %v3132 = vunpack.c.l.b16 %v3001
        %v3133 = vunpack.c.l.b16 %v3011
        %v3134 = vunpack.c.l.b16 %v3025
        %v3135 = vunpack.c.l.b16 %v3035
        %v3136 = vunpack.c.l.b16 %v3049
        %v3137 = vunpack.c.l.b16 %v3059
        %v3138 = vunpack.c.l.b16 %v3073
        %v3139 = vunpack.c.l.b16 %v3083
        %v3140 = vunpack.c.l.b16 %v3097
        %v3141 = vunpack.c.l.b16 %v3107
        %v3142 = vpack.c.b16 %v3111, %v3110
        %v3143 = vpack.c.b16 %v3113, %v3112
        %v3144 = vpack.c.b16 %v3115, %v3114
        %v3145 = vpack.c.b16 %v3117, %v3116
        %v3146 = vpack.c.b16 %v3119, %v3118
        %v3147 = vpack.c.b16 %v3121, %v3120
        %v3148 = vpack.c.b16 %v3123, %v3122
        %v3149 = vpack.c.b16 %v3125, %v3124
        %v3150 = vpack.c.b16 %v3127, %v3126
        %v3151 = vpack.c.b16 %v3129, %v3128
        %v3152 = vpack.c.b16 %v3131, %v3130
        %v3153 = vpack.c.b16 %v3133, %v3132
        %v3154 = vpack.c.b16 %v3135, %v3134
        %v3155 = vpack.c.b16 %v3137, %v3136
        %v3156 = vpack.c.b16 %v3139, %v3138
        %v3157 = vpack.c.b16 %v3141, %v3140
        %v3159 = vsel %vm933, %v3142, 0
        %v3162 = vsel %vm933, %v3143, 0
        %v3165 = vsel %vm933, %v3144, 0
        %v3168 = vsel %vm933, %v3145, 0
        %v3171 = vsel %vm933, %v3146, 0
        %v3174 = vsel %vm933, %v3147, 0
        %v3177 = vsel %vm933, %v3148, 0
        %v3180 = vsel %vm933, %v3149, 0
        %v3183 = vsel %vm933, %v3150, 0
        %v3186 = vsel %vm933, %v3151, 0
        %v3189 = vsel %vm933, %v3152, 0
        %v3192 = vsel %vm933, %v3153, 0
        %v3195 = vsel %vm933, %v3154, 0
        %v3198 = vsel %vm933, %v3155, 0
        %v3201 = vsel %vm933, %v3156, 0
        %v3204 = vsel %vm933, %v3157, 0
        %v3207 = vsel %vm982, %v3109, 0
        %3209 = vmatpush.bf16.msra.mxu0 0
        %3210 = vmatpush.bf16.msra.mxu0 0
        %3211 = vmatpush.bf16.msra.mxu0 0
        %3212 = vmatpush.bf16.msra.mxu0 0
        %3213 = vmatpush.bf16.msra.mxu0 0
        %3214 = vmatpush.bf16.msra.mxu0 0
        %3215 = vmatpush.bf16.msra.mxu0 0
        %3216 = vmatpush.bf16.msra.mxu0 %v3207
        %3217 = vmatmul.bf16.gmra.mxu0 %v3159
        %v3218 = vpop.f32.mrf.mxu0
        %v3219 = vadd.f32 0.0, %v3218
        %v3220 = vpop.f32.mrf.mxu0
        %v3221 = vadd.f32 0.0, %v3220
        %3222 = vmatmul.bf16.gmra.mxu0 %v3162
        %v3223 = vpop.f32.mrf.mxu0
        %v3224 = vadd.f32 0.0, %v3223
        %v3225 = vpop.f32.mrf.mxu0
        %v3226 = vadd.f32 0.0, %v3225
        %3227 = vmatmul.bf16.gmra.mxu0 %v3165
        %v3228 = vpop.f32.mrf.mxu0
        %v3229 = vadd.f32 0.0, %v3228
        %v3230 = vpop.f32.mrf.mxu0
        %v3231 = vadd.f32 0.0, %v3230
        %3232 = vmatmul.bf16.gmra.mxu0 %v3168
        %v3233 = vpop.f32.mrf.mxu0
        %v3234 = vadd.f32 0.0, %v3233
        %v3235 = vpop.f32.mrf.mxu0
        %v3236 = vadd.f32 0.0, %v3235
        %3237 = vmatmul.bf16.gmra.mxu0 %v3171
        %v3238 = vpop.f32.mrf.mxu0
        %v3239 = vadd.f32 0.0, %v3238
        %v3240 = vpop.f32.mrf.mxu0
        %v3241 = vadd.f32 0.0, %v3240
        %3242 = vmatmul.bf16.gmra.mxu0 %v3174
        %v3243 = vpop.f32.mrf.mxu0
        %v3244 = vadd.f32 0.0, %v3243
        %v3245 = vpop.f32.mrf.mxu0
        %v3246 = vadd.f32 0.0, %v3245
        %3247 = vmatmul.bf16.gmra.mxu0 %v3177
        %v3248 = vpop.f32.mrf.mxu0
        %v3249 = vadd.f32 0.0, %v3248
        %v3250 = vpop.f32.mrf.mxu0
        %v3251 = vadd.f32 0.0, %v3250
        %3252 = vmatmul.bf16.gmra.mxu0 %v3180
        %v3253 = vpop.f32.mrf.mxu0
        %v3254 = vadd.f32 0.0, %v3253
        %v3255 = vpop.f32.mrf.mxu0
        %v3256 = vadd.f32 0.0, %v3255
        %3257 = vmatmul.bf16.gmra.mxu0 %v3183
        %v3258 = vpop.f32.mrf.mxu0
        %v3259 = vadd.f32 0.0, %v3258
        %v3260 = vpop.f32.mrf.mxu0
        %v3261 = vadd.f32 0.0, %v3260
        %3262 = vmatmul.bf16.gmra.mxu0 %v3186
        %v3263 = vpop.f32.mrf.mxu0
        %v3264 = vadd.f32 0.0, %v3263
        %v3265 = vpop.f32.mrf.mxu0
        %v3266 = vadd.f32 0.0, %v3265
        %3267 = vmatmul.bf16.gmra.mxu0 %v3189
        %v3268 = vpop.f32.mrf.mxu0
        %v3269 = vadd.f32 0.0, %v3268
        %v3270 = vpop.f32.mrf.mxu0
        %v3271 = vadd.f32 0.0, %v3270
        %3272 = vmatmul.bf16.gmra.mxu0 %v3192
        %v3273 = vpop.f32.mrf.mxu0
        %v3274 = vadd.f32 0.0, %v3273
        %v3275 = vpop.f32.mrf.mxu0
        %v3276 = vadd.f32 0.0, %v3275
        %3277 = vmatmul.bf16.gmra.mxu0 %v3195
        %v3278 = vpop.f32.mrf.mxu0
        %v3279 = vadd.f32 0.0, %v3278
        %v3280 = vpop.f32.mrf.mxu0
        %v3281 = vadd.f32 0.0, %v3280
        %3282 = vmatmul.bf16.gmra.mxu0 %v3198
        %v3283 = vpop.f32.mrf.mxu0
        %v3284 = vadd.f32 0.0, %v3283
        %v3285 = vpop.f32.mrf.mxu0
        %v3286 = vadd.f32 0.0, %v3285
        %3287 = vmatmul.bf16.gmra.mxu0 %v3201
        %v3288 = vpop.f32.mrf.mxu0
        %v3289 = vadd.f32 0.0, %v3288
        %v3290 = vpop.f32.mrf.mxu0
        %v3291 = vadd.f32 0.0, %v3290
        %3292 = vmatmul.bf16.gmra.mxu0 %v3204
        %v3293 = vpop.f32.mrf.mxu0
        %v3294 = vadd.f32 0.0, %v3293
        %v3295 = vpop.f32.mrf.mxu0
        %v3296 = vadd.f32 0.0, %v3295
        %3297 = vdwg.mxu0
        %v3298 = vld [vmem:[#allocation3] sm:$0xff]
        %v3299 = vld [vmem:[#allocation3 + $0x8] sm:$0xff]
        %v3300 = vld [vmem:[#allocation3 + $0x10] sm:$0xff]
        %v3301 = vld [vmem:[#allocation3 + $0x18] sm:$0xff]
        %v3302 = vld [vmem:[#allocation3 + $0x20] sm:$0xff]
        %v3303 = vld [vmem:[#allocation3 + $0x28] sm:$0xff]
        %v3304 = vld [vmem:[#allocation3 + $0x30] sm:$0xff]
        %v3305 = vld [vmem:[#allocation3 + $0x38] sm:$0xff]
        %v3306 = vld [vmem:[#allocation3 + $0x40] sm:$0xff]
        %v3307 = vld [vmem:[#allocation3 + $0x48] sm:$0xff]
        %v3308 = vld [vmem:[#allocation3 + $0x50] sm:$0xff]
        %v3309 = vld [vmem:[#allocation3 + $0x58] sm:$0xff]
        %v3310 = vld [vmem:[#allocation3 + $0x60] sm:$0xff]
        %v3311 = vld [vmem:[#allocation3 + $0x68] sm:$0xff]
        %v3312 = vld [vmem:[#allocation3 + $0x70] sm:$0xff]
        %v3313 = vld [vmem:[#allocation3 + $0x78] sm:$0xff]
        %v3314 = vld [vmem:[#allocation3 + $0x80] sm:$0xff]
        %v3315 = vld [vmem:[#allocation3 + $0x88] sm:$0xff]
        %v3316 = vld [vmem:[#allocation3 + $0x90] sm:$0xff]
        %v3317 = vld [vmem:[#allocation3 + $0x98] sm:$0xff]
        %v3318 = vld [vmem:[#allocation3 + $0xa0] sm:$0xff]
        %v3319 = vld [vmem:[#allocation3 + $0xa8] sm:$0xff]
        %v3320 = vld [vmem:[#allocation3 + $0xb0] sm:$0xff]
        %v3321 = vld [vmem:[#allocation3 + $0xb8] sm:$0xff]
        %v3322 = vld [vmem:[#allocation3 + $0xc0] sm:$0xff]
        %v3323 = vld [vmem:[#allocation3 + $0xc8] sm:$0xff]
        %v3324 = vld [vmem:[#allocation3 + $0xd0] sm:$0xff]
        %v3325 = vld [vmem:[#allocation3 + $0xd8] sm:$0xff]
        %v3326 = vld [vmem:[#allocation3 + $0xe0] sm:$0xff]
        %v3327 = vld [vmem:[#allocation3 + $0xe8] sm:$0xff]
        %v3328 = vld [vmem:[#allocation3 + $0xf0] sm:$0xff]
        %v3329 = vld [vmem:[#allocation3 + $0xf8] sm:$0xff]
        %v3330 = vadd.f32 %v3298, %v3219
        %v3331 = vadd.f32 %v3299, %v3221
        %v3332 = vadd.f32 %v3300, %v3224
        %v3333 = vadd.f32 %v3301, %v3226
        %v3334 = vadd.f32 %v3302, %v3229
        %v3335 = vadd.f32 %v3303, %v3231
        %v3336 = vadd.f32 %v3304, %v3234
        %v3337 = vadd.f32 %v3305, %v3236
        %v3338 = vadd.f32 %v3306, %v3239
        %v3339 = vadd.f32 %v3307, %v3241
        %v3340 = vadd.f32 %v3308, %v3244
        %v3341 = vadd.f32 %v3309, %v3246
        %v3342 = vadd.f32 %v3310, %v3249
        %v3343 = vadd.f32 %v3311, %v3251
        %v3344 = vadd.f32 %v3312, %v3254
        %v3345 = vadd.f32 %v3313, %v3256
        %v3346 = vadd.f32 %v3314, %v3259
        %v3347 = vadd.f32 %v3315, %v3261
        %v3348 = vadd.f32 %v3316, %v3264
        %v3349 = vadd.f32 %v3317, %v3266
        %v3350 = vadd.f32 %v3318, %v3269
        %v3351 = vadd.f32 %v3319, %v3271
        %v3352 = vadd.f32 %v3320, %v3274
        %v3353 = vadd.f32 %v3321, %v3276
        %v3354 = vadd.f32 %v3322, %v3279
        %v3355 = vadd.f32 %v3323, %v3281
        %v3356 = vadd.f32 %v3324, %v3284
        %v3357 = vadd.f32 %v3325, %v3286
        %v3358 = vadd.f32 %v3326, %v3289
        %v3359 = vadd.f32 %v3327, %v3291
        %v3360 = vadd.f32 %v3328, %v3294
        %v3361 = vadd.f32 %v3329, %v3296
        %3362 = vst.msk [vmem:[#allocation3] sm:$0xff] %vm1075, %v3330
        %3363 = vst.msk [vmem:[#allocation3 + $0x8] sm:$0xff] %vm1075, %v3331
        %3364 = vst.msk [vmem:[#allocation3 + $0x10] sm:$0xff] %vm1075, %v3332
        %3365 = vst.msk [vmem:[#allocation3 + $0x18] sm:$0xff] %vm1075, %v3333
        %3366 = vst.msk [vmem:[#allocation3 + $0x20] sm:$0xff] %vm1075, %v3334
        %3367 = vst.msk [vmem:[#allocation3 + $0x28] sm:$0xff] %vm1075, %v3335
        %3368 = vst.msk [vmem:[#allocation3 + $0x30] sm:$0xff] %vm1075, %v3336
        %3369 = vst.msk [vmem:[#allocation3 + $0x38] sm:$0xff] %vm1075, %v3337
        %3370 = vst.msk [vmem:[#allocation3 + $0x40] sm:$0xff] %vm1075, %v3338
        %3371 = vst.msk [vmem:[#allocation3 + $0x48] sm:$0xff] %vm1075, %v3339
        %3372 = vst.msk [vmem:[#allocation3 + $0x50] sm:$0xff] %vm1075, %v3340
        %3373 = vst.msk [vmem:[#allocation3 + $0x58] sm:$0xff] %vm1075, %v3341
        %3374 = vst.msk [vmem:[#allocation3 + $0x60] sm:$0xff] %vm1075, %v3342
        %3375 = vst.msk [vmem:[#allocation3 + $0x68] sm:$0xff] %vm1075, %v3343
        %3376 = vst.msk [vmem:[#allocation3 + $0x70] sm:$0xff] %vm1075, %v3344
        %3377 = vst.msk [vmem:[#allocation3 + $0x78] sm:$0xff] %vm1075, %v3345
        %3378 = vst.msk [vmem:[#allocation3 + $0x80] sm:$0xff] %vm1075, %v3346
        %3379 = vst.msk [vmem:[#allocation3 + $0x88] sm:$0xff] %vm1075, %v3347
        %3380 = vst.msk [vmem:[#allocation3 + $0x90] sm:$0xff] %vm1075, %v3348
        %3381 = vst.msk [vmem:[#allocation3 + $0x98] sm:$0xff] %vm1075, %v3349
        %3382 = vst.msk [vmem:[#allocation3 + $0xa0] sm:$0xff] %vm1075, %v3350
        %3383 = vst.msk [vmem:[#allocation3 + $0xa8] sm:$0xff] %vm1075, %v3351
        %3384 = vst.msk [vmem:[#allocation3 + $0xb0] sm:$0xff] %vm1075, %v3352
        %3385 = vst.msk [vmem:[#allocation3 + $0xb8] sm:$0xff] %vm1075, %v3353
        %3386 = vst.msk [vmem:[#allocation3 + $0xc0] sm:$0xff] %vm1075, %v3354
        %3387 = vst.msk [vmem:[#allocation3 + $0xc8] sm:$0xff] %vm1075, %v3355
        %3388 = vst.msk [vmem:[#allocation3 + $0xd0] sm:$0xff] %vm1075, %v3356
        %3389 = vst.msk [vmem:[#allocation3 + $0xd8] sm:$0xff] %vm1075, %v3357
        %3390 = vst.msk [vmem:[#allocation3 + $0xe0] sm:$0xff] %vm1075, %v3358
        %3391 = vst.msk [vmem:[#allocation3 + $0xe8] sm:$0xff] %vm1075, %v3359
        %3392 = vst.msk [vmem:[#allocation3 + $0xf0] sm:$0xff] %vm1075, %v3360
        %3393 = vst.msk [vmem:[#allocation3 + $0xf8] sm:$0xff] %vm1075, %v3361
        %v3394 = vld [vmem:[%s627] sm:$0xe]
        %v3395 = vld [vmem:[%s627 + $0x4] sm:$0xf]
        %v3396 = vld [vmem:[%s627 + $0x8] sm:$0x1]
        %v3397 = vld [vmem:[%s627 + $0xc] sm:$0xe]
        %v3398 = vld [vmem:[%s627 + $0x10] sm:$0xf]
        %v3399 = vld [vmem:[%s627 + $0x14] sm:$0x1]
        %v3400 = vld [vmem:[%s627 + $0x18] sm:$0xe]
        %v3401 = vld [vmem:[%s627 + $0x1c] sm:$0xf]
        %v3402 = vld [vmem:[%s627 + $0x20] sm:$0x1]
        %v3403 = vld [vmem:[%s627 + $0x24] sm:$0xe]
        %v3404 = vld [vmem:[%s627 + $0x28] sm:$0xf]
        %v3405 = vld [vmem:[%s627 + $0x2c] sm:$0x1]
        %v3406 = vld [vmem:[%s627 + $0x30] sm:$0xe]
        %v3407 = vld [vmem:[%s627 + $0x34] sm:$0xf]
        %v3408 = vld [vmem:[%s627 + $0x38] sm:$0x1]
        %v3409 = vld [vmem:[%s627 + $0x3c] sm:$0xe]
        %v3410 = vld [vmem:[%s627 + $0x40] sm:$0xf]
        %v3411 = vld [vmem:[%s627 + $0x44] sm:$0x1]
        %v3412 = vld [vmem:[%s627 + $0x48] sm:$0xe]
        %v3413 = vld [vmem:[%s627 + $0x4c] sm:$0xf]
        %v3414 = vld [vmem:[%s627 + $0x50] sm:$0x1]
        %v3415 = vld [vmem:[%s627 + $0x54] sm:$0xe]
        %v3416 = vld [vmem:[%s627 + $0x58] sm:$0xf]
        %v3417 = vld [vmem:[%s627 + $0x5c] sm:$0x1]
        %v3418 = vld [vmem:[%s627 + $0x60] sm:$0xe]
        %v3419 = vld [vmem:[%s627 + $0x64] sm:$0xf]
        %v3420 = vld [vmem:[%s627 + $0x68] sm:$0x1]
        %v3421 = vld [vmem:[%s627 + $0x6c] sm:$0xe]
        %v3422 = vld [vmem:[%s627 + $0x70] sm:$0xf]
        %v3423 = vld [vmem:[%s627 + $0x74] sm:$0x1]
        %v3424 = vld [vmem:[%s627 + $0x78] sm:$0xe]
        %v3425 = vld [vmem:[%s627 + $0x7c] sm:$0xf]
        %v3426 = vld [vmem:[%s627 + $0x80] sm:$0x1]
        %v3427 = vld [vmem:[%s627 + $0x84] sm:$0xe]
        %v3428 = vld [vmem:[%s627 + $0x88] sm:$0xf]
        %v3429 = vld [vmem:[%s627 + $0x8c] sm:$0x1]
        %v3430 = vld [vmem:[%s627 + $0x90] sm:$0xe]
        %v3431 = vld [vmem:[%s627 + $0x94] sm:$0xf]
        %v3432 = vld [vmem:[%s627 + $0x98] sm:$0x1]
        %v3433 = vld [vmem:[%s627 + $0x9c] sm:$0xe]
        %v3434 = vld [vmem:[%s627 + $0xa0] sm:$0xf]
        %v3435 = vld [vmem:[%s627 + $0xa4] sm:$0x1]
        %v3436 = vld [vmem:[%s627 + $0xa8] sm:$0xe]
        %v3437 = vld [vmem:[%s627 + $0xac] sm:$0xf]
        %v3438 = vld [vmem:[%s627 + $0xb0] sm:$0x1]
        %v3439 = vld [vmem:[%s627 + $0xb4] sm:$0xe]
        %v3440 = vld [vmem:[%s627 + $0xb8] sm:$0xf]
        %v3441 = vld [vmem:[%s627 + $0xbc] sm:$0x1]
        %v3490 = vrot.slane %v3394, 5
        %v3491 = vrot.slane %v3490, 4
        %v3492 = vrot.slane %v3395, 5
        %v3493 = vsel %vm1927, %v3491, %v3492
        %v3494 = vrot.slane %v3492, 4
        %v3495 = vrot.slane %v3396, 5
        %v3496 = vsel %vm1927, %v3494, %v3495
        %v3497 = vrot.slane %v3397, 5
        %v3498 = vrot.slane %v3497, 4
        %v3499 = vrot.slane %v3398, 5
        %v3500 = vsel %vm1927, %v3498, %v3499
        %v3501 = vrot.slane %v3499, 4
        %v3502 = vrot.slane %v3399, 5
        %v3503 = vsel %vm1927, %v3501, %v3502
        %v3504 = vrot.slane %v3400, 5
        %v3505 = vrot.slane %v3504, 4
        %v3506 = vrot.slane %v3401, 5
        %v3507 = vsel %vm1927, %v3505, %v3506
        %v3508 = vrot.slane %v3506, 4
        %v3509 = vrot.slane %v3402, 5
        %v3510 = vsel %vm1927, %v3508, %v3509
        %v3511 = vrot.slane %v3403, 5
        %v3512 = vrot.slane %v3511, 4
        %v3513 = vrot.slane %v3404, 5
        %v3514 = vsel %vm1927, %v3512, %v3513
        %v3515 = vrot.slane %v3513, 4
        %v3516 = vrot.slane %v3405, 5
        %v3517 = vsel %vm1927, %v3515, %v3516
        %v3518 = vrot.slane %v3406, 5
        %v3519 = vrot.slane %v3518, 4
        %v3520 = vrot.slane %v3407, 5
        %v3521 = vsel %vm1927, %v3519, %v3520
        %v3522 = vrot.slane %v3520, 4
        %v3523 = vrot.slane %v3408, 5
        %v3524 = vsel %vm1927, %v3522, %v3523
        %v3525 = vrot.slane %v3409, 5
        %v3526 = vrot.slane %v3525, 4
        %v3527 = vrot.slane %v3410, 5
        %v3528 = vsel %vm1927, %v3526, %v3527
        %v3529 = vrot.slane %v3527, 4
        %v3530 = vrot.slane %v3411, 5
        %v3531 = vsel %vm1927, %v3529, %v3530
        %v3532 = vrot.slane %v3412, 5
        %v3533 = vrot.slane %v3532, 4
        %v3534 = vrot.slane %v3413, 5
        %v3535 = vsel %vm1927, %v3533, %v3534
        %v3536 = vrot.slane %v3534, 4
        %v3537 = vrot.slane %v3414, 5
        %v3538 = vsel %vm1927, %v3536, %v3537
        %v3539 = vrot.slane %v3415, 5
        %v3540 = vrot.slane %v3539, 4
        %v3541 = vrot.slane %v3416, 5
        %v3542 = vsel %vm1927, %v3540, %v3541
        %v3543 = vrot.slane %v3541, 4
        %v3544 = vrot.slane %v3417, 5
        %v3545 = vsel %vm1927, %v3543, %v3544
        %v3546 = vrot.slane %v3418, 5
        %v3547 = vrot.slane %v3546, 4
        %v3548 = vrot.slane %v3419, 5
        %v3549 = vsel %vm1927, %v3547, %v3548
        %v3550 = vrot.slane %v3548, 4
        %v3551 = vrot.slane %v3420, 5
        %v3552 = vsel %vm1927, %v3550, %v3551
        %v3553 = vrot.slane %v3421, 5
        %v3554 = vrot.slane %v3553, 4
        %v3555 = vrot.slane %v3422, 5
        %v3556 = vsel %vm1927, %v3554, %v3555
        %v3557 = vrot.slane %v3555, 4
        %v3558 = vrot.slane %v3423, 5
        %v3559 = vsel %vm1927, %v3557, %v3558
        %v3560 = vrot.slane %v3424, 5
        %v3561 = vrot.slane %v3560, 4
        %v3562 = vrot.slane %v3425, 5
        %v3563 = vsel %vm1927, %v3561, %v3562
        %v3564 = vrot.slane %v3562, 4
        %v3565 = vrot.slane %v3426, 5
        %v3566 = vsel %vm1927, %v3564, %v3565
        %v3567 = vrot.slane %v3427, 5
        %v3568 = vrot.slane %v3567, 4
        %v3569 = vrot.slane %v3428, 5
        %v3570 = vsel %vm1927, %v3568, %v3569
        %v3571 = vrot.slane %v3569, 4
        %v3572 = vrot.slane %v3429, 5
        %v3573 = vsel %vm1927, %v3571, %v3572
        %v3574 = vrot.slane %v3430, 5
        %v3575 = vrot.slane %v3574, 4
        %v3576 = vrot.slane %v3431, 5
        %v3577 = vsel %vm1927, %v3575, %v3576
        %v3578 = vrot.slane %v3576, 4
        %v3579 = vrot.slane %v3432, 5
        %v3580 = vsel %vm1927, %v3578, %v3579
        %v3581 = vrot.slane %v3433, 5
        %v3582 = vrot.slane %v3581, 4
        %v3583 = vrot.slane %v3434, 5
        %v3584 = vsel %vm1927, %v3582, %v3583
        %v3585 = vrot.slane %v3583, 4
        %v3586 = vrot.slane %v3435, 5
        %v3587 = vsel %vm1927, %v3585, %v3586
        %v3588 = vrot.slane %v3436, 5
        %v3589 = vrot.slane %v3588, 4
        %v3590 = vrot.slane %v3437, 5
        %v3591 = vsel %vm1927, %v3589, %v3590
        %v3592 = vrot.slane %v3590, 4
        %v3593 = vrot.slane %v3438, 5
        %v3594 = vsel %vm1927, %v3592, %v3593
        %v3595 = vrot.slane %v3439, 5
        %v3596 = vrot.slane %v3595, 4
        %v3597 = vrot.slane %v3440, 5
        %v3598 = vsel %vm1927, %v3596, %v3597
        %v3599 = vrot.slane %v3597, 4
        %v3600 = vrot.slane %v3441, 5
        %v3601 = vsel %vm1927, %v3599, %v3600
        %s3602 = scalar_lea.vmem %s1, 20
        %v3603 = vld [vmem:[%s3602] sm:$0xf]
        %v3604 = vunpack.c.l.b16 %v3493
        %v3605 = vunpack.c.l.b16 %v3496
        %v3606 = vunpack.c.l.b16 %v3500
        %v3607 = vunpack.c.l.b16 %v3503
        %v3608 = vunpack.c.l.b16 %v3507
        %v3609 = vunpack.c.l.b16 %v3510
        %v3610 = vunpack.c.l.b16 %v3514
        %v3611 = vunpack.c.l.b16 %v3517
        %v3612 = vunpack.c.l.b16 %v3521
        %v3613 = vunpack.c.l.b16 %v3524
        %v3614 = vunpack.c.l.b16 %v3528
        %v3615 = vunpack.c.l.b16 %v3531
        %v3616 = vunpack.c.l.b16 %v3535
        %v3617 = vunpack.c.l.b16 %v3538
        %v3618 = vunpack.c.l.b16 %v3542
        %v3619 = vunpack.c.l.b16 %v3545
        %v3620 = vunpack.c.l.b16 %v3549
        %v3621 = vunpack.c.l.b16 %v3552
        %v3622 = vunpack.c.l.b16 %v3556
        %v3623 = vunpack.c.l.b16 %v3559
        %v3624 = vunpack.c.l.b16 %v3563
        %v3625 = vunpack.c.l.b16 %v3566
        %v3626 = vunpack.c.l.b16 %v3570
        %v3627 = vunpack.c.l.b16 %v3573
        %v3628 = vunpack.c.l.b16 %v3577
        %v3629 = vunpack.c.l.b16 %v3580
        %v3630 = vunpack.c.l.b16 %v3584
        %v3631 = vunpack.c.l.b16 %v3587
        %v3632 = vunpack.c.l.b16 %v3591
        %v3633 = vunpack.c.l.b16 %v3594
        %v3634 = vunpack.c.l.b16 %v3598
        %v3635 = vunpack.c.l.b16 %v3601
        %v3636 = vpack.c.b16 %v3605, %v3604
        %v3637 = vpack.c.b16 %v3607, %v3606
        %v3638 = vpack.c.b16 %v3609, %v3608
        %v3639 = vpack.c.b16 %v3611, %v3610
        %v3640 = vpack.c.b16 %v3613, %v3612
        %v3641 = vpack.c.b16 %v3615, %v3614
        %v3642 = vpack.c.b16 %v3617, %v3616
        %v3643 = vpack.c.b16 %v3619, %v3618
        %v3644 = vpack.c.b16 %v3621, %v3620
        %v3645 = vpack.c.b16 %v3623, %v3622
        %v3646 = vpack.c.b16 %v3625, %v3624
        %v3647 = vpack.c.b16 %v3627, %v3626
        %v3648 = vpack.c.b16 %v3629, %v3628
        %v3649 = vpack.c.b16 %v3631, %v3630
        %v3650 = vpack.c.b16 %v3633, %v3632
        %v3651 = vpack.c.b16 %v3635, %v3634
        %v3653 = vsel %vm933, %v3636, 0
        %v3656 = vsel %vm933, %v3637, 0
        %v3659 = vsel %vm933, %v3638, 0
        %v3662 = vsel %vm933, %v3639, 0
        %v3665 = vsel %vm933, %v3640, 0
        %v3668 = vsel %vm933, %v3641, 0
        %v3671 = vsel %vm933, %v3642, 0
        %v3674 = vsel %vm933, %v3643, 0
        %v3677 = vsel %vm933, %v3644, 0
        %v3680 = vsel %vm933, %v3645, 0
        %v3683 = vsel %vm933, %v3646, 0
        %v3686 = vsel %vm933, %v3647, 0
        %v3689 = vsel %vm933, %v3648, 0
        %v3692 = vsel %vm933, %v3649, 0
        %v3695 = vsel %vm933, %v3650, 0
        %v3698 = vsel %vm933, %v3651, 0
        %v3701 = vsel %vm982, %v3603, 0
        %3703 = vmatpush.bf16.msra.mxu0 0
        %3704 = vmatpush.bf16.msra.mxu0 0
        %3705 = vmatpush.bf16.msra.mxu0 0
        %3706 = vmatpush.bf16.msra.mxu0 0
        %3707 = vmatpush.bf16.msra.mxu0 0
        %3708 = vmatpush.bf16.msra.mxu0 0
        %3709 = vmatpush.bf16.msra.mxu0 0
        %3710 = vmatpush.bf16.msra.mxu0 %v3701
        %3711 = vmatmul.bf16.gmra.mxu0 %v3653
        %v3712 = vpop.f32.mrf.mxu0
        %v3713 = vadd.f32 0.0, %v3712
        %v3714 = vpop.f32.mrf.mxu0
        %v3715 = vadd.f32 0.0, %v3714
        %3716 = vmatmul.bf16.gmra.mxu0 %v3656
        %v3717 = vpop.f32.mrf.mxu0
        %v3718 = vadd.f32 0.0, %v3717
        %v3719 = vpop.f32.mrf.mxu0
        %v3720 = vadd.f32 0.0, %v3719
        %3721 = vmatmul.bf16.gmra.mxu0 %v3659
        %v3722 = vpop.f32.mrf.mxu0
        %v3723 = vadd.f32 0.0, %v3722
        %v3724 = vpop.f32.mrf.mxu0
        %v3725 = vadd.f32 0.0, %v3724
        %3726 = vmatmul.bf16.gmra.mxu0 %v3662
        %v3727 = vpop.f32.mrf.mxu0
        %v3728 = vadd.f32 0.0, %v3727
        %v3729 = vpop.f32.mrf.mxu0
        %v3730 = vadd.f32 0.0, %v3729
        %3731 = vmatmul.bf16.gmra.mxu0 %v3665
        %v3732 = vpop.f32.mrf.mxu0
        %v3733 = vadd.f32 0.0, %v3732
        %v3734 = vpop.f32.mrf.mxu0
        %v3735 = vadd.f32 0.0, %v3734
        %3736 = vmatmul.bf16.gmra.mxu0 %v3668
        %v3737 = vpop.f32.mrf.mxu0
        %v3738 = vadd.f32 0.0, %v3737
        %v3739 = vpop.f32.mrf.mxu0
        %v3740 = vadd.f32 0.0, %v3739
        %3741 = vmatmul.bf16.gmra.mxu0 %v3671
        %v3742 = vpop.f32.mrf.mxu0
        %v3743 = vadd.f32 0.0, %v3742
        %v3744 = vpop.f32.mrf.mxu0
        %v3745 = vadd.f32 0.0, %v3744
        %3746 = vmatmul.bf16.gmra.mxu0 %v3674
        %v3747 = vpop.f32.mrf.mxu0
        %v3748 = vadd.f32 0.0, %v3747
        %v3749 = vpop.f32.mrf.mxu0
        %v3750 = vadd.f32 0.0, %v3749
        %3751 = vmatmul.bf16.gmra.mxu0 %v3677
        %v3752 = vpop.f32.mrf.mxu0
        %v3753 = vadd.f32 0.0, %v3752
        %v3754 = vpop.f32.mrf.mxu0
        %v3755 = vadd.f32 0.0, %v3754
        %3756 = vmatmul.bf16.gmra.mxu0 %v3680
        %v3757 = vpop.f32.mrf.mxu0
        %v3758 = vadd.f32 0.0, %v3757
        %v3759 = vpop.f32.mrf.mxu0
        %v3760 = vadd.f32 0.0, %v3759
        %3761 = vmatmul.bf16.gmra.mxu0 %v3683
        %v3762 = vpop.f32.mrf.mxu0
        %v3763 = vadd.f32 0.0, %v3762
        %v3764 = vpop.f32.mrf.mxu0
        %v3765 = vadd.f32 0.0, %v3764
        %3766 = vmatmul.bf16.gmra.mxu0 %v3686
        %v3767 = vpop.f32.mrf.mxu0
        %v3768 = vadd.f32 0.0, %v3767
        %v3769 = vpop.f32.mrf.mxu0
        %v3770 = vadd.f32 0.0, %v3769
        %3771 = vmatmul.bf16.gmra.mxu0 %v3689
        %v3772 = vpop.f32.mrf.mxu0
        %v3773 = vadd.f32 0.0, %v3772
        %v3774 = vpop.f32.mrf.mxu0
        %v3775 = vadd.f32 0.0, %v3774
        %3776 = vmatmul.bf16.gmra.mxu0 %v3692
        %v3777 = vpop.f32.mrf.mxu0
        %v3778 = vadd.f32 0.0, %v3777
        %v3779 = vpop.f32.mrf.mxu0
        %v3780 = vadd.f32 0.0, %v3779
        %3781 = vmatmul.bf16.gmra.mxu0 %v3695
        %v3782 = vpop.f32.mrf.mxu0
        %v3783 = vadd.f32 0.0, %v3782
        %v3784 = vpop.f32.mrf.mxu0
        %v3785 = vadd.f32 0.0, %v3784
        %3786 = vmatmul.bf16.gmra.mxu0 %v3698
        %v3787 = vpop.f32.mrf.mxu0
        %v3788 = vadd.f32 0.0, %v3787
        %v3789 = vpop.f32.mrf.mxu0
        %v3790 = vadd.f32 0.0, %v3789
        %3791 = vdwg.mxu0
        %v3792 = vld [vmem:[#allocation3] sm:$0xff]
        %v3793 = vld [vmem:[#allocation3 + $0x8] sm:$0xff]
        %v3794 = vld [vmem:[#allocation3 + $0x10] sm:$0xff]
        %v3795 = vld [vmem:[#allocation3 + $0x18] sm:$0xff]
        %v3796 = vld [vmem:[#allocation3 + $0x20] sm:$0xff]
        %v3797 = vld [vmem:[#allocation3 + $0x28] sm:$0xff]
        %v3798 = vld [vmem:[#allocation3 + $0x30] sm:$0xff]
        %v3799 = vld [vmem:[#allocation3 + $0x38] sm:$0xff]
        %v3800 = vld [vmem:[#allocation3 + $0x40] sm:$0xff]
        %v3801 = vld [vmem:[#allocation3 + $0x48] sm:$0xff]
        %v3802 = vld [vmem:[#allocation3 + $0x50] sm:$0xff]
        %v3803 = vld [vmem:[#allocation3 + $0x58] sm:$0xff]
        %v3804 = vld [vmem:[#allocation3 + $0x60] sm:$0xff]
        %v3805 = vld [vmem:[#allocation3 + $0x68] sm:$0xff]
        %v3806 = vld [vmem:[#allocation3 + $0x70] sm:$0xff]
        %v3807 = vld [vmem:[#allocation3 + $0x78] sm:$0xff]
        %v3808 = vld [vmem:[#allocation3 + $0x80] sm:$0xff]
        %v3809 = vld [vmem:[#allocation3 + $0x88] sm:$0xff]
        %v3810 = vld [vmem:[#allocation3 + $0x90] sm:$0xff]
        %v3811 = vld [vmem:[#allocation3 + $0x98] sm:$0xff]
        %v3812 = vld [vmem:[#allocation3 + $0xa0] sm:$0xff]
        %v3813 = vld [vmem:[#allocation3 + $0xa8] sm:$0xff]
        %v3814 = vld [vmem:[#allocation3 + $0xb0] sm:$0xff]
        %v3815 = vld [vmem:[#allocation3 + $0xb8] sm:$0xff]
        %v3816 = vld [vmem:[#allocation3 + $0xc0] sm:$0xff]
        %v3817 = vld [vmem:[#allocation3 + $0xc8] sm:$0xff]
        %v3818 = vld [vmem:[#allocation3 + $0xd0] sm:$0xff]
        %v3819 = vld [vmem:[#allocation3 + $0xd8] sm:$0xff]
        %v3820 = vld [vmem:[#allocation3 + $0xe0] sm:$0xff]
        %v3821 = vld [vmem:[#allocation3 + $0xe8] sm:$0xff]
        %v3822 = vld [vmem:[#allocation3 + $0xf0] sm:$0xff]
        %v3823 = vld [vmem:[#allocation3 + $0xf8] sm:$0xff]
        %v3824 = vadd.f32 %v3792, %v3713
        %v3825 = vadd.f32 %v3793, %v3715
        %v3826 = vadd.f32 %v3794, %v3718
        %v3827 = vadd.f32 %v3795, %v3720
        %v3828 = vadd.f32 %v3796, %v3723
        %v3829 = vadd.f32 %v3797, %v3725
        %v3830 = vadd.f32 %v3798, %v3728
        %v3831 = vadd.f32 %v3799, %v3730
        %v3832 = vadd.f32 %v3800, %v3733
        %v3833 = vadd.f32 %v3801, %v3735
        %v3834 = vadd.f32 %v3802, %v3738
        %v3835 = vadd.f32 %v3803, %v3740
        %v3836 = vadd.f32 %v3804, %v3743
        %v3837 = vadd.f32 %v3805, %v3745
        %v3838 = vadd.f32 %v3806, %v3748
        %v3839 = vadd.f32 %v3807, %v3750
        %v3840 = vadd.f32 %v3808, %v3753
        %v3841 = vadd.f32 %v3809, %v3755
        %v3842 = vadd.f32 %v3810, %v3758
        %v3843 = vadd.f32 %v3811, %v3760
        %v3844 = vadd.f32 %v3812, %v3763
        %v3845 = vadd.f32 %v3813, %v3765
        %v3846 = vadd.f32 %v3814, %v3768
        %v3847 = vadd.f32 %v3815, %v3770
        %v3848 = vadd.f32 %v3816, %v3773
        %v3849 = vadd.f32 %v3817, %v3775
        %v3850 = vadd.f32 %v3818, %v3778
        %v3851 = vadd.f32 %v3819, %v3780
        %v3852 = vadd.f32 %v3820, %v3783
        %v3853 = vadd.f32 %v3821, %v3785
        %v3854 = vadd.f32 %v3822, %v3788
        %v3855 = vadd.f32 %v3823, %v3790
        %3856 = vst.msk [vmem:[#allocation3] sm:$0xff] %vm1075, %v3824
        %3857 = vst.msk [vmem:[#allocation3 + $0x8] sm:$0xff] %vm1075, %v3825
        %3858 = vst.msk [vmem:[#allocation3 + $0x10] sm:$0xff] %vm1075, %v3826
        %3859 = vst.msk [vmem:[#allocation3 + $0x18] sm:$0xff] %vm1075, %v3827
        %3860 = vst.msk [vmem:[#allocation3 + $0x20] sm:$0xff] %vm1075, %v3828
        %3861 = vst.msk [vmem:[#allocation3 + $0x28] sm:$0xff] %vm1075, %v3829
        %3862 = vst.msk [vmem:[#allocation3 + $0x30] sm:$0xff] %vm1075, %v3830
        %3863 = vst.msk [vmem:[#allocation3 + $0x38] sm:$0xff] %vm1075, %v3831
        %3864 = vst.msk [vmem:[#allocation3 + $0x40] sm:$0xff] %vm1075, %v3832
        %3865 = vst.msk [vmem:[#allocation3 + $0x48] sm:$0xff] %vm1075, %v3833
        %3866 = vst.msk [vmem:[#allocation3 + $0x50] sm:$0xff] %vm1075, %v3834
        %3867 = vst.msk [vmem:[#allocation3 + $0x58] sm:$0xff] %vm1075, %v3835
        %3868 = vst.msk [vmem:[#allocation3 + $0x60] sm:$0xff] %vm1075, %v3836
        %3869 = vst.msk [vmem:[#allocation3 + $0x68] sm:$0xff] %vm1075, %v3837
        %3870 = vst.msk [vmem:[#allocation3 + $0x70] sm:$0xff] %vm1075, %v3838
        %3871 = vst.msk [vmem:[#allocation3 + $0x78] sm:$0xff] %vm1075, %v3839
        %3872 = vst.msk [vmem:[#allocation3 + $0x80] sm:$0xff] %vm1075, %v3840
        %3873 = vst.msk [vmem:[#allocation3 + $0x88] sm:$0xff] %vm1075, %v3841
        %3874 = vst.msk [vmem:[#allocation3 + $0x90] sm:$0xff] %vm1075, %v3842
        %3875 = vst.msk [vmem:[#allocation3 + $0x98] sm:$0xff] %vm1075, %v3843
        %3876 = vst.msk [vmem:[#allocation3 + $0xa0] sm:$0xff] %vm1075, %v3844
        %3877 = vst.msk [vmem:[#allocation3 + $0xa8] sm:$0xff] %vm1075, %v3845
        %3878 = vst.msk [vmem:[#allocation3 + $0xb0] sm:$0xff] %vm1075, %v3846
        %3879 = vst.msk [vmem:[#allocation3 + $0xb8] sm:$0xff] %vm1075, %v3847
        %3880 = vst.msk [vmem:[#allocation3 + $0xc0] sm:$0xff] %vm1075, %v3848
        %3881 = vst.msk [vmem:[#allocation3 + $0xc8] sm:$0xff] %vm1075, %v3849
        %3882 = vst.msk [vmem:[#allocation3 + $0xd0] sm:$0xff] %vm1075, %v3850
        %3883 = vst.msk [vmem:[#allocation3 + $0xd8] sm:$0xff] %vm1075, %v3851
        %3884 = vst.msk [vmem:[#allocation3 + $0xe0] sm:$0xff] %vm1075, %v3852
        %3885 = vst.msk [vmem:[#allocation3 + $0xe8] sm:$0xff] %vm1075, %v3853
        %3886 = vst.msk [vmem:[#allocation3 + $0xf0] sm:$0xff] %vm1075, %v3854
        %3887 = vst.msk [vmem:[#allocation3 + $0xf8] sm:$0xff] %vm1075, %v3855
        %s3888 = scalar_lea.vmem [#allocation2], 24
        %v3889 = vld [vmem:[%s3888] sm:$0xf]
        %v3890 = vld [vmem:[%s3888 + $0x4] sm:$0xf]
        %v3891 = vld [vmem:[%s3888 + $0xc] sm:$0xf]
        %v3892 = vld [vmem:[%s3888 + $0x10] sm:$0xf]
        %v3893 = vld [vmem:[%s3888 + $0x18] sm:$0xf]
        %v3894 = vld [vmem:[%s3888 + $0x1c] sm:$0xf]
        %v3895 = vld [vmem:[%s3888 + $0x24] sm:$0xf]
        %v3896 = vld [vmem:[%s3888 + $0x28] sm:$0xf]
        %v3897 = vld [vmem:[%s3888 + $0x30] sm:$0xf]
        %v3898 = vld [vmem:[%s3888 + $0x34] sm:$0xf]
        %v3899 = vld [vmem:[%s3888 + $0x3c] sm:$0xf]
        %v3900 = vld [vmem:[%s3888 + $0x40] sm:$0xf]
        %v3901 = vld [vmem:[%s3888 + $0x48] sm:$0xf]
        %v3902 = vld [vmem:[%s3888 + $0x4c] sm:$0xf]
        %v3903 = vld [vmem:[%s3888 + $0x54] sm:$0xf]
        %v3904 = vld [vmem:[%s3888 + $0x58] sm:$0xf]
        %v3905 = vld [vmem:[%s3888 + $0x60] sm:$0xf]
        %v3906 = vld [vmem:[%s3888 + $0x64] sm:$0xf]
        %v3907 = vld [vmem:[%s3888 + $0x6c] sm:$0xf]
        %v3908 = vld [vmem:[%s3888 + $0x70] sm:$0xf]
        %v3909 = vld [vmem:[%s3888 + $0x78] sm:$0xf]
        %v3910 = vld [vmem:[%s3888 + $0x7c] sm:$0xf]
        %v3911 = vld [vmem:[%s3888 + $0x84] sm:$0xf]
        %v3912 = vld [vmem:[%s3888 + $0x88] sm:$0xf]
        %v3913 = vld [vmem:[%s3888 + $0x90] sm:$0xf]
        %v3914 = vld [vmem:[%s3888 + $0x94] sm:$0xf]
        %v3915 = vld [vmem:[%s3888 + $0x9c] sm:$0xf]
        %v3916 = vld [vmem:[%s3888 + $0xa0] sm:$0xf]
        %v3917 = vld [vmem:[%s3888 + $0xa8] sm:$0xf]
        %v3918 = vld [vmem:[%s3888 + $0xac] sm:$0xf]
        %v3919 = vld [vmem:[%s3888 + $0xb4] sm:$0xf]
        %v3920 = vld [vmem:[%s3888 + $0xb8] sm:$0xf]
        %s3921 = scalar_lea.vmem %s1, 24
        %v3922 = vld [vmem:[%s3921] sm:$0xf]
        %v3955 = vunpack.c.l.b16 %v3889
        %v3956 = vunpack.c.l.b16 %v3890
        %v3957 = vunpack.c.l.b16 %v3891
        %v3958 = vunpack.c.l.b16 %v3892
        %v3959 = vunpack.c.l.b16 %v3893
        %v3960 = vunpack.c.l.b16 %v3894
        %v3961 = vunpack.c.l.b16 %v3895
        %v3962 = vunpack.c.l.b16 %v3896
        %v3963 = vunpack.c.l.b16 %v3897
        %v3964 = vunpack.c.l.b16 %v3898
        %v3965 = vunpack.c.l.b16 %v3899
        %v3966 = vunpack.c.l.b16 %v3900
        %v3967 = vunpack.c.l.b16 %v3901
        %v3968 = vunpack.c.l.b16 %v3902
        %v3969 = vunpack.c.l.b16 %v3903
        %v3970 = vunpack.c.l.b16 %v3904
        %v3971 = vunpack.c.l.b16 %v3905
        %v3972 = vunpack.c.l.b16 %v3906
        %v3973 = vunpack.c.l.b16 %v3907
        %v3974 = vunpack.c.l.b16 %v3908
        %v3975 = vunpack.c.l.b16 %v3909
        %v3976 = vunpack.c.l.b16 %v3910
        %v3977 = vunpack.c.l.b16 %v3911
        %v3978 = vunpack.c.l.b16 %v3912
        %v3979 = vunpack.c.l.b16 %v3913
        %v3980 = vunpack.c.l.b16 %v3914
        %v3981 = vunpack.c.l.b16 %v3915
        %v3982 = vunpack.c.l.b16 %v3916
        %v3983 = vunpack.c.l.b16 %v3917
        %v3984 = vunpack.c.l.b16 %v3918
        %v3985 = vunpack.c.l.b16 %v3919
        %v3986 = vunpack.c.l.b16 %v3920
        %v3987 = vpack.c.b16 %v3956, %v3955
        %v3988 = vpack.c.b16 %v3958, %v3957
        %v3989 = vpack.c.b16 %v3960, %v3959
        %v3990 = vpack.c.b16 %v3962, %v3961
        %v3991 = vpack.c.b16 %v3964, %v3963
        %v3992 = vpack.c.b16 %v3966, %v3965
        %v3993 = vpack.c.b16 %v3968, %v3967
        %v3994 = vpack.c.b16 %v3970, %v3969
        %v3995 = vpack.c.b16 %v3972, %v3971
        %v3996 = vpack.c.b16 %v3974, %v3973
        %v3997 = vpack.c.b16 %v3976, %v3975
        %v3998 = vpack.c.b16 %v3978, %v3977
        %v3999 = vpack.c.b16 %v3980, %v3979
        %v4000 = vpack.c.b16 %v3982, %v3981
        %v4001 = vpack.c.b16 %v3984, %v3983
        %v4002 = vpack.c.b16 %v3986, %v3985
        %v4004 = vsel %vm933, %v3987, 0
        %v4007 = vsel %vm933, %v3988, 0
        %v4010 = vsel %vm933, %v3989, 0
        %v4013 = vsel %vm933, %v3990, 0
        %v4016 = vsel %vm933, %v3991, 0
        %v4019 = vsel %vm933, %v3992, 0
        %v4022 = vsel %vm933, %v3993, 0
        %v4025 = vsel %vm933, %v3994, 0
        %v4028 = vsel %vm933, %v3995, 0
        %v4031 = vsel %vm933, %v3996, 0
        %v4034 = vsel %vm933, %v3997, 0
        %v4037 = vsel %vm933, %v3998, 0
        %v4040 = vsel %vm933, %v3999, 0
        %v4043 = vsel %vm933, %v4000, 0
        %v4046 = vsel %vm933, %v4001, 0
        %v4049 = vsel %vm933, %v4002, 0
        %v4052 = vsel %vm982, %v3922, 0
        %4054 = vmatpush.bf16.msra.mxu0 0
        %4055 = vmatpush.bf16.msra.mxu0 0
        %4056 = vmatpush.bf16.msra.mxu0 0
        %4057 = vmatpush.bf16.msra.mxu0 0
        %4058 = vmatpush.bf16.msra.mxu0 0
        %4059 = vmatpush.bf16.msra.mxu0 0
        %4060 = vmatpush.bf16.msra.mxu0 0
        %4061 = vmatpush.bf16.msra.mxu0 %v4052
        %4062 = vmatmul.bf16.gmra.mxu0 %v4004
        %v4063 = vpop.f32.mrf.mxu0
        %v4064 = vadd.f32 0.0, %v4063
        %v4065 = vpop.f32.mrf.mxu0
        %v4066 = vadd.f32 0.0, %v4065
        %4067 = vmatmul.bf16.gmra.mxu0 %v4007
        %v4068 = vpop.f32.mrf.mxu0
        %v4069 = vadd.f32 0.0, %v4068
        %v4070 = vpop.f32.mrf.mxu0
        %v4071 = vadd.f32 0.0, %v4070
        %4072 = vmatmul.bf16.gmra.mxu0 %v4010
        %v4073 = vpop.f32.mrf.mxu0
        %v4074 = vadd.f32 0.0, %v4073
        %v4075 = vpop.f32.mrf.mxu0
        %v4076 = vadd.f32 0.0, %v4075
        %4077 = vmatmul.bf16.gmra.mxu0 %v4013
        %v4078 = vpop.f32.mrf.mxu0
        %v4079 = vadd.f32 0.0, %v4078
        %v4080 = vpop.f32.mrf.mxu0
        %v4081 = vadd.f32 0.0, %v4080
        %4082 = vmatmul.bf16.gmra.mxu0 %v4016
        %v4083 = vpop.f32.mrf.mxu0
        %v4084 = vadd.f32 0.0, %v4083
        %v4085 = vpop.f32.mrf.mxu0
        %v4086 = vadd.f32 0.0, %v4085
        %4087 = vmatmul.bf16.gmra.mxu0 %v4019
        %v4088 = vpop.f32.mrf.mxu0
        %v4089 = vadd.f32 0.0, %v4088
        %v4090 = vpop.f32.mrf.mxu0
        %v4091 = vadd.f32 0.0, %v4090
        %4092 = vmatmul.bf16.gmra.mxu0 %v4022
        %v4093 = vpop.f32.mrf.mxu0
        %v4094 = vadd.f32 0.0, %v4093
        %v4095 = vpop.f32.mrf.mxu0
        %v4096 = vadd.f32 0.0, %v4095
        %4097 = vmatmul.bf16.gmra.mxu0 %v4025
        %v4098 = vpop.f32.mrf.mxu0
        %v4099 = vadd.f32 0.0, %v4098
        %v4100 = vpop.f32.mrf.mxu0
        %v4101 = vadd.f32 0.0, %v4100
        %4102 = vmatmul.bf16.gmra.mxu0 %v4028
        %v4103 = vpop.f32.mrf.mxu0
        %v4104 = vadd.f32 0.0, %v4103
        %v4105 = vpop.f32.mrf.mxu0
        %v4106 = vadd.f32 0.0, %v4105
        %4107 = vmatmul.bf16.gmra.mxu0 %v4031
        %v4108 = vpop.f32.mrf.mxu0
        %v4109 = vadd.f32 0.0, %v4108
        %v4110 = vpop.f32.mrf.mxu0
        %v4111 = vadd.f32 0.0, %v4110
        %4112 = vmatmul.bf16.gmra.mxu0 %v4034
        %v4113 = vpop.f32.mrf.mxu0
        %v4114 = vadd.f32 0.0, %v4113
        %v4115 = vpop.f32.mrf.mxu0
        %v4116 = vadd.f32 0.0, %v4115
        %4117 = vmatmul.bf16.gmra.mxu0 %v4037
        %v4118 = vpop.f32.mrf.mxu0
        %v4119 = vadd.f32 0.0, %v4118
        %v4120 = vpop.f32.mrf.mxu0
        %v4121 = vadd.f32 0.0, %v4120
        %4122 = vmatmul.bf16.gmra.mxu0 %v4040
        %v4123 = vpop.f32.mrf.mxu0
        %v4124 = vadd.f32 0.0, %v4123
        %v4125 = vpop.f32.mrf.mxu0
        %v4126 = vadd.f32 0.0, %v4125
        %4127 = vmatmul.bf16.gmra.mxu0 %v4043
        %v4128 = vpop.f32.mrf.mxu0
        %v4129 = vadd.f32 0.0, %v4128
        %v4130 = vpop.f32.mrf.mxu0
        %v4131 = vadd.f32 0.0, %v4130
        %4132 = vmatmul.bf16.gmra.mxu0 %v4046
        %v4133 = vpop.f32.mrf.mxu0
        %v4134 = vadd.f32 0.0, %v4133
        %v4135 = vpop.f32.mrf.mxu0
        %v4136 = vadd.f32 0.0, %v4135
        %4137 = vmatmul.bf16.gmra.mxu0 %v4049
        %v4138 = vpop.f32.mrf.mxu0
        %v4139 = vadd.f32 0.0, %v4138
        %v4140 = vpop.f32.mrf.mxu0
        %v4141 = vadd.f32 0.0, %v4140
        %4142 = vdwg.mxu0
        %v4143 = vld [vmem:[#allocation3] sm:$0xff]
        %v4144 = vld [vmem:[#allocation3 + $0x8] sm:$0xff]
        %v4145 = vld [vmem:[#allocation3 + $0x10] sm:$0xff]
        %v4146 = vld [vmem:[#allocation3 + $0x18] sm:$0xff]
        %v4147 = vld [vmem:[#allocation3 + $0x20] sm:$0xff]
        %v4148 = vld [vmem:[#allocation3 + $0x28] sm:$0xff]
        %v4149 = vld [vmem:[#allocation3 + $0x30] sm:$0xff]
        %v4150 = vld [vmem:[#allocation3 + $0x38] sm:$0xff]
        %v4151 = vld [vmem:[#allocation3 + $0x40] sm:$0xff]
        %v4152 = vld [vmem:[#allocation3 + $0x48] sm:$0xff]
        %v4153 = vld [vmem:[#allocation3 + $0x50] sm:$0xff]
        %v4154 = vld [vmem:[#allocation3 + $0x58] sm:$0xff]
        %v4155 = vld [vmem:[#allocation3 + $0x60] sm:$0xff]
        %v4156 = vld [vmem:[#allocation3 + $0x68] sm:$0xff]
        %v4157 = vld [vmem:[#allocation3 + $0x70] sm:$0xff]
        %v4158 = vld [vmem:[#allocation3 + $0x78] sm:$0xff]
        %v4159 = vld [vmem:[#allocation3 + $0x80] sm:$0xff]
        %v4160 = vld [vmem:[#allocation3 + $0x88] sm:$0xff]
        %v4161 = vld [vmem:[#allocation3 + $0x90] sm:$0xff]
        %v4162 = vld [vmem:[#allocation3 + $0x98] sm:$0xff]
        %v4163 = vld [vmem:[#allocation3 + $0xa0] sm:$0xff]
        %v4164 = vld [vmem:[#allocation3 + $0xa8] sm:$0xff]
        %v4165 = vld [vmem:[#allocation3 + $0xb0] sm:$0xff]
        %v4166 = vld [vmem:[#allocation3 + $0xb8] sm:$0xff]
        %v4167 = vld [vmem:[#allocation3 + $0xc0] sm:$0xff]
        %v4168 = vld [vmem:[#allocation3 + $0xc8] sm:$0xff]
        %v4169 = vld [vmem:[#allocation3 + $0xd0] sm:$0xff]
        %v4170 = vld [vmem:[#allocation3 + $0xd8] sm:$0xff]
        %v4171 = vld [vmem:[#allocation3 + $0xe0] sm:$0xff]
        %v4172 = vld [vmem:[#allocation3 + $0xe8] sm:$0xff]
        %v4173 = vld [vmem:[#allocation3 + $0xf0] sm:$0xff]
        %v4174 = vld [vmem:[#allocation3 + $0xf8] sm:$0xff]
        %v4175 = vadd.f32 %v4143, %v4064
        %v4176 = vadd.f32 %v4144, %v4066
        %v4177 = vadd.f32 %v4145, %v4069
        %v4178 = vadd.f32 %v4146, %v4071
        %v4179 = vadd.f32 %v4147, %v4074
        %v4180 = vadd.f32 %v4148, %v4076
        %v4181 = vadd.f32 %v4149, %v4079
        %v4182 = vadd.f32 %v4150, %v4081
        %v4183 = vadd.f32 %v4151, %v4084
        %v4184 = vadd.f32 %v4152, %v4086
        %v4185 = vadd.f32 %v4153, %v4089
        %v4186 = vadd.f32 %v4154, %v4091
        %v4187 = vadd.f32 %v4155, %v4094
        %v4188 = vadd.f32 %v4156, %v4096
        %v4189 = vadd.f32 %v4157, %v4099
        %v4190 = vadd.f32 %v4158, %v4101
        %v4191 = vadd.f32 %v4159, %v4104
        %v4192 = vadd.f32 %v4160, %v4106
        %v4193 = vadd.f32 %v4161, %v4109
        %v4194 = vadd.f32 %v4162, %v4111
        %v4195 = vadd.f32 %v4163, %v4114
        %v4196 = vadd.f32 %v4164, %v4116
        %v4197 = vadd.f32 %v4165, %v4119
        %v4198 = vadd.f32 %v4166, %v4121
        %v4199 = vadd.f32 %v4167, %v4124
        %v4200 = vadd.f32 %v4168, %v4126
        %v4201 = vadd.f32 %v4169, %v4129
        %v4202 = vadd.f32 %v4170, %v4131
        %v4203 = vadd.f32 %v4171, %v4134
        %v4204 = vadd.f32 %v4172, %v4136
        %v4205 = vadd.f32 %v4173, %v4139
        %v4206 = vadd.f32 %v4174, %v4141
        %4207 = vst.msk [vmem:[#allocation3] sm:$0xff] %vm1075, %v4175
        %4208 = vst.msk [vmem:[#allocation3 + $0x8] sm:$0xff] %vm1075, %v4176
        %4209 = vst.msk [vmem:[#allocation3 + $0x10] sm:$0xff] %vm1075, %v4177
        %4210 = vst.msk [vmem:[#allocation3 + $0x18] sm:$0xff] %vm1075, %v4178
        %4211 = vst.msk [vmem:[#allocation3 + $0x20] sm:$0xff] %vm1075, %v4179
        %4212 = vst.msk [vmem:[#allocation3 + $0x28] sm:$0xff] %vm1075, %v4180
        %4213 = vst.msk [vmem:[#allocation3 + $0x30] sm:$0xff] %vm1075, %v4181
        %4214 = vst.msk [vmem:[#allocation3 + $0x38] sm:$0xff] %vm1075, %v4182
        %4215 = vst.msk [vmem:[#allocation3 + $0x40] sm:$0xff] %vm1075, %v4183
        %4216 = vst.msk [vmem:[#allocation3 + $0x48] sm:$0xff] %vm1075, %v4184
        %4217 = vst.msk [vmem:[#allocation3 + $0x50] sm:$0xff] %vm1075, %v4185
        %4218 = vst.msk [vmem:[#allocation3 + $0x58] sm:$0xff] %vm1075, %v4186
        %4219 = vst.msk [vmem:[#allocation3 + $0x60] sm:$0xff] %vm1075, %v4187
        %4220 = vst.msk [vmem:[#allocation3 + $0x68] sm:$0xff] %vm1075, %v4188
        %4221 = vst.msk [vmem:[#allocation3 + $0x70] sm:$0xff] %vm1075, %v4189
        %4222 = vst.msk [vmem:[#allocation3 + $0x78] sm:$0xff] %vm1075, %v4190
        %4223 = vst.msk [vmem:[#allocation3 + $0x80] sm:$0xff] %vm1075, %v4191
        %4224 = vst.msk [vmem:[#allocation3 + $0x88] sm:$0xff] %vm1075, %v4192
        %4225 = vst.msk [vmem:[#allocation3 + $0x90] sm:$0xff] %vm1075, %v4193
        %4226 = vst.msk [vmem:[#allocation3 + $0x98] sm:$0xff] %vm1075, %v4194
        %4227 = vst.msk [vmem:[#allocation3 + $0xa0] sm:$0xff] %vm1075, %v4195
        %4228 = vst.msk [vmem:[#allocation3 + $0xa8] sm:$0xff] %vm1075, %v4196
        %4229 = vst.msk [vmem:[#allocation3 + $0xb0] sm:$0xff] %vm1075, %v4197
        %4230 = vst.msk [vmem:[#allocation3 + $0xb8] sm:$0xff] %vm1075, %v4198
        %4231 = vst.msk [vmem:[#allocation3 + $0xc0] sm:$0xff] %vm1075, %v4199
        %4232 = vst.msk [vmem:[#allocation3 + $0xc8] sm:$0xff] %vm1075, %v4200
        %4233 = vst.msk [vmem:[#allocation3 + $0xd0] sm:$0xff] %vm1075, %v4201
        %4234 = vst.msk [vmem:[#allocation3 + $0xd8] sm:$0xff] %vm1075, %v4202
        %4235 = vst.msk [vmem:[#allocation3 + $0xe0] sm:$0xff] %vm1075, %v4203
        %4236 = vst.msk [vmem:[#allocation3 + $0xe8] sm:$0xff] %vm1075, %v4204
        %4237 = vst.msk [vmem:[#allocation3 + $0xf0] sm:$0xff] %vm1075, %v4205
        %4238 = vst.msk [vmem:[#allocation3 + $0xf8] sm:$0xff] %vm1075, %v4206
        %v4239 = vld [vmem:[%s3888] sm:$0xf]
        %v4240 = vld [vmem:[%s3888 + $0x4] sm:$0xf]
        %v4241 = vld [vmem:[%s3888 + $0x8] sm:$0x1]
        %v4242 = vld [vmem:[%s3888 + $0xc] sm:$0xf]
        %v4243 = vld [vmem:[%s3888 + $0x10] sm:$0xf]
        %v4244 = vld [vmem:[%s3888 + $0x14] sm:$0x1]
        %v4245 = vld [vmem:[%s3888 + $0x18] sm:$0xf]
        %v4246 = vld [vmem:[%s3888 + $0x1c] sm:$0xf]
        %v4247 = vld [vmem:[%s3888 + $0x20] sm:$0x1]
        %v4248 = vld [vmem:[%s3888 + $0x24] sm:$0xf]
        %v4249 = vld [vmem:[%s3888 + $0x28] sm:$0xf]
        %v4250 = vld [vmem:[%s3888 + $0x2c] sm:$0x1]
        %v4251 = vld [vmem:[%s3888 + $0x30] sm:$0xf]
        %v4252 = vld [vmem:[%s3888 + $0x34] sm:$0xf]
        %v4253 = vld [vmem:[%s3888 + $0x38] sm:$0x1]
        %v4254 = vld [vmem:[%s3888 + $0x3c] sm:$0xf]
        %v4255 = vld [vmem:[%s3888 + $0x40] sm:$0xf]
        %v4256 = vld [vmem:[%s3888 + $0x44] sm:$0x1]
        %v4257 = vld [vmem:[%s3888 + $0x48] sm:$0xf]
        %v4258 = vld [vmem:[%s3888 + $0x4c] sm:$0xf]
        %v4259 = vld [vmem:[%s3888 + $0x50] sm:$0x1]
        %v4260 = vld [vmem:[%s3888 + $0x54] sm:$0xf]
        %v4261 = vld [vmem:[%s3888 + $0x58] sm:$0xf]
        %v4262 = vld [vmem:[%s3888 + $0x5c] sm:$0x1]
        %v4263 = vld [vmem:[%s3888 + $0x60] sm:$0xf]
        %v4264 = vld [vmem:[%s3888 + $0x64] sm:$0xf]
        %v4265 = vld [vmem:[%s3888 + $0x68] sm:$0x1]
        %v4266 = vld [vmem:[%s3888 + $0x6c] sm:$0xf]
        %v4267 = vld [vmem:[%s3888 + $0x70] sm:$0xf]
        %v4268 = vld [vmem:[%s3888 + $0x74] sm:$0x1]
        %v4269 = vld [vmem:[%s3888 + $0x78] sm:$0xf]
        %v4270 = vld [vmem:[%s3888 + $0x7c] sm:$0xf]
        %v4271 = vld [vmem:[%s3888 + $0x80] sm:$0x1]
        %v4272 = vld [vmem:[%s3888 + $0x84] sm:$0xf]
        %v4273 = vld [vmem:[%s3888 + $0x88] sm:$0xf]
        %v4274 = vld [vmem:[%s3888 + $0x8c] sm:$0x1]
        %v4275 = vld [vmem:[%s3888 + $0x90] sm:$0xf]
        %v4276 = vld [vmem:[%s3888 + $0x94] sm:$0xf]
        %v4277 = vld [vmem:[%s3888 + $0x98] sm:$0x1]
        %v4278 = vld [vmem:[%s3888 + $0x9c] sm:$0xf]
        %v4279 = vld [vmem:[%s3888 + $0xa0] sm:$0xf]
        %v4280 = vld [vmem:[%s3888 + $0xa4] sm:$0x1]
        %v4281 = vld [vmem:[%s3888 + $0xa8] sm:$0xf]
        %v4282 = vld [vmem:[%s3888 + $0xac] sm:$0xf]
        %v4283 = vld [vmem:[%s3888 + $0xb0] sm:$0x1]
        %v4284 = vld [vmem:[%s3888 + $0xb4] sm:$0xf]
        %v4285 = vld [vmem:[%s3888 + $0xb8] sm:$0xf]
        %v4286 = vld [vmem:[%s3888 + $0xbc] sm:$0x1]
        %v4288 = vshrl.u32 %v4239, 16
        %v4290 = vrot.slane %v4288, 4
        %v4291 = vshll.u32 %v4239, 16
        %v4293 = vrot.slane %v4291, 5
        %v4294 = vor.u32 %v4290, %v4293
        %v4295 = vrot.slane %v4294, 4
        %v4297 = vshll.u32 %v4240, 16
        %v4299 = vrot.slane %v4297, 5
        %v4300 = vsel %vm1158, %v4295, %v4299
        %v4301 = vshrl.u32 %v4240, 16
        %v4303 = vrot.slane %v4301, 4
        %v4304 = vor.u32 %v4303, %v4299
        %v4305 = vrot.slane %v4304, 4
        %v4307 = vshll.u32 %v4241, 16
        %v4309 = vrot.slane %v4307, 5
        %v4310 = vsel %vm1158, %v4305, %v4309
        %v4312 = vshrl.u32 %v4242, 16
        %v4314 = vrot.slane %v4312, 4
        %v4315 = vshll.u32 %v4242, 16
        %v4317 = vrot.slane %v4315, 5
        %v4318 = vor.u32 %v4314, %v4317
        %v4319 = vrot.slane %v4318, 4
        %v4321 = vshll.u32 %v4243, 16
        %v4323 = vrot.slane %v4321, 5
        %v4324 = vsel %vm1158, %v4319, %v4323
        %v4325 = vshrl.u32 %v4243, 16
        %v4327 = vrot.slane %v4325, 4
        %v4328 = vor.u32 %v4327, %v4323
        %v4329 = vrot.slane %v4328, 4
        %v4331 = vshll.u32 %v4244, 16
        %v4333 = vrot.slane %v4331, 5
        %v4334 = vsel %vm1158, %v4329, %v4333
        %v4336 = vshrl.u32 %v4245, 16
        %v4338 = vrot.slane %v4336, 4
        %v4339 = vshll.u32 %v4245, 16
        %v4341 = vrot.slane %v4339, 5
        %v4342 = vor.u32 %v4338, %v4341
        %v4343 = vrot.slane %v4342, 4
        %v4345 = vshll.u32 %v4246, 16
        %v4347 = vrot.slane %v4345, 5
        %v4348 = vsel %vm1158, %v4343, %v4347
        %v4349 = vshrl.u32 %v4246, 16
        %v4351 = vrot.slane %v4349, 4
        %v4352 = vor.u32 %v4351, %v4347
        %v4353 = vrot.slane %v4352, 4
        %v4355 = vshll.u32 %v4247, 16
        %v4357 = vrot.slane %v4355, 5
        %v4358 = vsel %vm1158, %v4353, %v4357
        %v4360 = vshrl.u32 %v4248, 16
        %v4362 = vrot.slane %v4360, 4
        %v4363 = vshll.u32 %v4248, 16
        %v4365 = vrot.slane %v4363, 5
        %v4366 = vor.u32 %v4362, %v4365
        %v4367 = vrot.slane %v4366, 4
        %v4369 = vshll.u32 %v4249, 16
        %v4371 = vrot.slane %v4369, 5
        %v4372 = vsel %vm1158, %v4367, %v4371
        %v4373 = vshrl.u32 %v4249, 16
        %v4375 = vrot.slane %v4373, 4
        %v4376 = vor.u32 %v4375, %v4371
        %v4377 = vrot.slane %v4376, 4
        %v4379 = vshll.u32 %v4250, 16
        %v4381 = vrot.slane %v4379, 5
        %v4382 = vsel %vm1158, %v4377, %v4381
        %v4384 = vshrl.u32 %v4251, 16
        %v4386 = vrot.slane %v4384, 4
        %v4387 = vshll.u32 %v4251, 16
        %v4389 = vrot.slane %v4387, 5
        %v4390 = vor.u32 %v4386, %v4389
        %v4391 = vrot.slane %v4390, 4
        %v4393 = vshll.u32 %v4252, 16
        %v4395 = vrot.slane %v4393, 5
        %v4396 = vsel %vm1158, %v4391, %v4395
        %v4397 = vshrl.u32 %v4252, 16
        %v4399 = vrot.slane %v4397, 4
        %v4400 = vor.u32 %v4399, %v4395
        %v4401 = vrot.slane %v4400, 4
        %v4403 = vshll.u32 %v4253, 16
        %v4405 = vrot.slane %v4403, 5
        %v4406 = vsel %vm1158, %v4401, %v4405
        %v4408 = vshrl.u32 %v4254, 16
        %v4410 = vrot.slane %v4408, 4
        %v4411 = vshll.u32 %v4254, 16
        %v4413 = vrot.slane %v4411, 5
        %v4414 = vor.u32 %v4410, %v4413
        %v4415 = vrot.slane %v4414, 4
        %v4417 = vshll.u32 %v4255, 16
        %v4419 = vrot.slane %v4417, 5
        %v4420 = vsel %vm1158, %v4415, %v4419
        %v4421 = vshrl.u32 %v4255, 16
        %v4423 = vrot.slane %v4421, 4
        %v4424 = vor.u32 %v4423, %v4419
        %v4425 = vrot.slane %v4424, 4
        %v4427 = vshll.u32 %v4256, 16
        %v4429 = vrot.slane %v4427, 5
        %v4430 = vsel %vm1158, %v4425, %v4429
        %v4432 = vshrl.u32 %v4257, 16
        %v4434 = vrot.slane %v4432, 4
        %v4435 = vshll.u32 %v4257, 16
        %v4437 = vrot.slane %v4435, 5
        %v4438 = vor.u32 %v4434, %v4437
        %v4439 = vrot.slane %v4438, 4
        %v4441 = vshll.u32 %v4258, 16
        %v4443 = vrot.slane %v4441, 5
        %v4444 = vsel %vm1158, %v4439, %v4443
        %v4445 = vshrl.u32 %v4258, 16
        %v4447 = vrot.slane %v4445, 4
        %v4448 = vor.u32 %v4447, %v4443
        %v4449 = vrot.slane %v4448, 4
        %v4451 = vshll.u32 %v4259, 16
        %v4453 = vrot.slane %v4451, 5
        %v4454 = vsel %vm1158, %v4449, %v4453
        %v4456 = vshrl.u32 %v4260, 16
        %v4458 = vrot.slane %v4456, 4
        %v4459 = vshll.u32 %v4260, 16
        %v4461 = vrot.slane %v4459, 5
        %v4462 = vor.u32 %v4458, %v4461
        %v4463 = vrot.slane %v4462, 4
        %v4465 = vshll.u32 %v4261, 16
        %v4467 = vrot.slane %v4465, 5
        %v4468 = vsel %vm1158, %v4463, %v4467
        %v4469 = vshrl.u32 %v4261, 16
        %v4471 = vrot.slane %v4469, 4
        %v4472 = vor.u32 %v4471, %v4467
        %v4473 = vrot.slane %v4472, 4
        %v4475 = vshll.u32 %v4262, 16
        %v4477 = vrot.slane %v4475, 5
        %v4478 = vsel %vm1158, %v4473, %v4477
        %v4480 = vshrl.u32 %v4263, 16
        %v4482 = vrot.slane %v4480, 4
        %v4483 = vshll.u32 %v4263, 16
        %v4485 = vrot.slane %v4483, 5
        %v4486 = vor.u32 %v4482, %v4485
        %v4487 = vrot.slane %v4486, 4
        %v4489 = vshll.u32 %v4264, 16
        %v4491 = vrot.slane %v4489, 5
        %v4492 = vsel %vm1158, %v4487, %v4491
        %v4493 = vshrl.u32 %v4264, 16
        %v4495 = vrot.slane %v4493, 4
        %v4496 = vor.u32 %v4495, %v4491
        %v4497 = vrot.slane %v4496, 4
        %v4499 = vshll.u32 %v4265, 16
        %v4501 = vrot.slane %v4499, 5
        %v4502 = vsel %vm1158, %v4497, %v4501
        %v4504 = vshrl.u32 %v4266, 16
        %v4506 = vrot.slane %v4504, 4
        %v4507 = vshll.u32 %v4266, 16
        %v4509 = vrot.slane %v4507, 5
        %v4510 = vor.u32 %v4506, %v4509
        %v4511 = vrot.slane %v4510, 4
        %v4513 = vshll.u32 %v4267, 16
        %v4515 = vrot.slane %v4513, 5
        %v4516 = vsel %vm1158, %v4511, %v4515
        %v4517 = vshrl.u32 %v4267, 16
        %v4519 = vrot.slane %v4517, 4
        %v4520 = vor.u32 %v4519, %v4515
        %v4521 = vrot.slane %v4520, 4
        %v4523 = vshll.u32 %v4268, 16
        %v4525 = vrot.slane %v4523, 5
        %v4526 = vsel %vm1158, %v4521, %v4525
        %v4528 = vshrl.u32 %v4269, 16
        %v4530 = vrot.slane %v4528, 4
        %v4531 = vshll.u32 %v4269, 16
        %v4533 = vrot.slane %v4531, 5
        %v4534 = vor.u32 %v4530, %v4533
        %v4535 = vrot.slane %v4534, 4
        %v4537 = vshll.u32 %v4270, 16
        %v4539 = vrot.slane %v4537, 5
        %v4540 = vsel %vm1158, %v4535, %v4539
        %v4541 = vshrl.u32 %v4270, 16
        %v4543 = vrot.slane %v4541, 4
        %v4544 = vor.u32 %v4543, %v4539
        %v4545 = vrot.slane %v4544, 4
        %v4547 = vshll.u32 %v4271, 16
        %v4549 = vrot.slane %v4547, 5
        %v4550 = vsel %vm1158, %v4545, %v4549
        %v4552 = vshrl.u32 %v4272, 16
        %v4554 = vrot.slane %v4552, 4
        %v4555 = vshll.u32 %v4272, 16
        %v4557 = vrot.slane %v4555, 5
        %v4558 = vor.u32 %v4554, %v4557
        %v4559 = vrot.slane %v4558, 4
        %v4561 = vshll.u32 %v4273, 16
        %v4563 = vrot.slane %v4561, 5
        %v4564 = vsel %vm1158, %v4559, %v4563
        %v4565 = vshrl.u32 %v4273, 16
        %v4567 = vrot.slane %v4565, 4
        %v4568 = vor.u32 %v4567, %v4563
        %v4569 = vrot.slane %v4568, 4
        %v4571 = vshll.u32 %v4274, 16
        %v4573 = vrot.slane %v4571, 5
        %v4574 = vsel %vm1158, %v4569, %v4573
        %v4576 = vshrl.u32 %v4275, 16
        %v4578 = vrot.slane %v4576, 4
        %v4579 = vshll.u32 %v4275, 16
        %v4581 = vrot.slane %v4579, 5
        %v4582 = vor.u32 %v4578, %v4581
        %v4583 = vrot.slane %v4582, 4
        %v4585 = vshll.u32 %v4276, 16
        %v4587 = vrot.slane %v4585, 5
        %v4588 = vsel %vm1158, %v4583, %v4587
        %v4589 = vshrl.u32 %v4276, 16
        %v4591 = vrot.slane %v4589, 4
        %v4592 = vor.u32 %v4591, %v4587
        %v4593 = vrot.slane %v4592, 4
        %v4595 = vshll.u32 %v4277, 16
        %v4597 = vrot.slane %v4595, 5
        %v4598 = vsel %vm1158, %v4593, %v4597
        %v4600 = vshrl.u32 %v4278, 16
        %v4602 = vrot.slane %v4600, 4
        %v4603 = vshll.u32 %v4278, 16
        %v4605 = vrot.slane %v4603, 5
        %v4606 = vor.u32 %v4602, %v4605
        %v4607 = vrot.slane %v4606, 4
        %v4609 = vshll.u32 %v4279, 16
        %v4611 = vrot.slane %v4609, 5
        %v4612 = vsel %vm1158, %v4607, %v4611
        %v4613 = vshrl.u32 %v4279, 16
        %v4615 = vrot.slane %v4613, 4
        %v4616 = vor.u32 %v4615, %v4611
        %v4617 = vrot.slane %v4616, 4
        %v4619 = vshll.u32 %v4280, 16
        %v4621 = vrot.slane %v4619, 5
        %v4622 = vsel %vm1158, %v4617, %v4621
        %v4624 = vshrl.u32 %v4281, 16
        %v4626 = vrot.slane %v4624, 4
        %v4627 = vshll.u32 %v4281, 16
        %v4629 = vrot.slane %v4627, 5
        %v4630 = vor.u32 %v4626, %v4629
        %v4631 = vrot.slane %v4630, 4
        %v4633 = vshll.u32 %v4282, 16
        %v4635 = vrot.slane %v4633, 5
        %v4636 = vsel %vm1158, %v4631, %v4635
        %v4637 = vshrl.u32 %v4282, 16
        %v4639 = vrot.slane %v4637, 4
        %v4640 = vor.u32 %v4639, %v4635
        %v4641 = vrot.slane %v4640, 4
        %v4643 = vshll.u32 %v4283, 16
        %v4645 = vrot.slane %v4643, 5
        %v4646 = vsel %vm1158, %v4641, %v4645
        %v4648 = vshrl.u32 %v4284, 16
        %v4650 = vrot.slane %v4648, 4
        %v4651 = vshll.u32 %v4284, 16
        %v4653 = vrot.slane %v4651, 5
        %v4654 = vor.u32 %v4650, %v4653
        %v4655 = vrot.slane %v4654, 4
        %v4657 = vshll.u32 %v4285, 16
        %v4659 = vrot.slane %v4657, 5
        %v4660 = vsel %vm1158, %v4655, %v4659
        %v4661 = vshrl.u32 %v4285, 16
        %v4663 = vrot.slane %v4661, 4
        %v4664 = vor.u32 %v4663, %v4659
        %v4665 = vrot.slane %v4664, 4
        %v4667 = vshll.u32 %v4286, 16
        %v4669 = vrot.slane %v4667, 5
        %v4670 = vsel %vm1158, %v4665, %v4669
        %s4671 = scalar_lea.vmem %s1, 28
        %v4672 = vld [vmem:[%s4671] sm:$0xf]
        %v4673 = vunpack.c.l.b16 %v4300
        %v4674 = vunpack.c.l.b16 %v4310
        %v4675 = vunpack.c.l.b16 %v4324
        %v4676 = vunpack.c.l.b16 %v4334
        %v4677 = vunpack.c.l.b16 %v4348
        %v4678 = vunpack.c.l.b16 %v4358
        %v4679 = vunpack.c.l.b16 %v4372
        %v4680 = vunpack.c.l.b16 %v4382
        %v4681 = vunpack.c.l.b16 %v4396
        %v4682 = vunpack.c.l.b16 %v4406
        %v4683 = vunpack.c.l.b16 %v4420
        %v4684 = vunpack.c.l.b16 %v4430
        %v4685 = vunpack.c.l.b16 %v4444
        %v4686 = vunpack.c.l.b16 %v4454
        %v4687 = vunpack.c.l.b16 %v4468
        %v4688 = vunpack.c.l.b16 %v4478
        %v4689 = vunpack.c.l.b16 %v4492
        %v4690 = vunpack.c.l.b16 %v4502
        %v4691 = vunpack.c.l.b16 %v4516
        %v4692 = vunpack.c.l.b16 %v4526
        %v4693 = vunpack.c.l.b16 %v4540
        %v4694 = vunpack.c.l.b16 %v4550
        %v4695 = vunpack.c.l.b16 %v4564
        %v4696 = vunpack.c.l.b16 %v4574
        %v4697 = vunpack.c.l.b16 %v4588
        %v4698 = vunpack.c.l.b16 %v4598
        %v4699 = vunpack.c.l.b16 %v4612
        %v4700 = vunpack.c.l.b16 %v4622
        %v4701 = vunpack.c.l.b16 %v4636
        %v4702 = vunpack.c.l.b16 %v4646
        %v4703 = vunpack.c.l.b16 %v4660
        %v4704 = vunpack.c.l.b16 %v4670
        %v4705 = vpack.c.b16 %v4674, %v4673
        %v4706 = vpack.c.b16 %v4676, %v4675
        %v4707 = vpack.c.b16 %v4678, %v4677
        %v4708 = vpack.c.b16 %v4680, %v4679
        %v4709 = vpack.c.b16 %v4682, %v4681
        %v4710 = vpack.c.b16 %v4684, %v4683
        %v4711 = vpack.c.b16 %v4686, %v4685
        %v4712 = vpack.c.b16 %v4688, %v4687
        %v4713 = vpack.c.b16 %v4690, %v4689
        %v4714 = vpack.c.b16 %v4692, %v4691
        %v4715 = vpack.c.b16 %v4694, %v4693
        %v4716 = vpack.c.b16 %v4696, %v4695
        %v4717 = vpack.c.b16 %v4698, %v4697
        %v4718 = vpack.c.b16 %v4700, %v4699
        %v4719 = vpack.c.b16 %v4702, %v4701
        %v4720 = vpack.c.b16 %v4704, %v4703
        %v4722 = vsel %vm933, %v4705, 0
        %v4725 = vsel %vm933, %v4706, 0
        %v4728 = vsel %vm933, %v4707, 0
        %v4731 = vsel %vm933, %v4708, 0
        %v4734 = vsel %vm933, %v4709, 0
        %v4737 = vsel %vm933, %v4710, 0
        %v4740 = vsel %vm933, %v4711, 0
        %v4743 = vsel %vm933, %v4712, 0
        %v4746 = vsel %vm933, %v4713, 0
        %v4749 = vsel %vm933, %v4714, 0
        %v4752 = vsel %vm933, %v4715, 0
        %v4755 = vsel %vm933, %v4716, 0
        %v4758 = vsel %vm933, %v4717, 0
        %v4761 = vsel %vm933, %v4718, 0
        %v4764 = vsel %vm933, %v4719, 0
        %v4767 = vsel %vm933, %v4720, 0
        %v4770 = vsel %vm982, %v4672, 0
        %4772 = vmatpush.bf16.msra.mxu0 0
        %4773 = vmatpush.bf16.msra.mxu0 0
        %4774 = vmatpush.bf16.msra.mxu0 0
        %4775 = vmatpush.bf16.msra.mxu0 0
        %4776 = vmatpush.bf16.msra.mxu0 0
        %4777 = vmatpush.bf16.msra.mxu0 0
        %4778 = vmatpush.bf16.msra.mxu0 0
        %4779 = vmatpush.bf16.msra.mxu0 %v4770
        %4780 = vmatmul.bf16.gmra.mxu0 %v4722
        %v4781 = vpop.f32.mrf.mxu0
        %v4782 = vadd.f32 0.0, %v4781
        %v4783 = vpop.f32.mrf.mxu0
        %v4784 = vadd.f32 0.0, %v4783
        %4785 = vmatmul.bf16.gmra.mxu0 %v4725
        %v4786 = vpop.f32.mrf.mxu0
        %v4787 = vadd.f32 0.0, %v4786
        %v4788 = vpop.f32.mrf.mxu0
        %v4789 = vadd.f32 0.0, %v4788
        %4790 = vmatmul.bf16.gmra.mxu0 %v4728
        %v4791 = vpop.f32.mrf.mxu0
        %v4792 = vadd.f32 0.0, %v4791
        %v4793 = vpop.f32.mrf.mxu0
        %v4794 = vadd.f32 0.0, %v4793
        %4795 = vmatmul.bf16.gmra.mxu0 %v4731
        %v4796 = vpop.f32.mrf.mxu0
        %v4797 = vadd.f32 0.0, %v4796
        %v4798 = vpop.f32.mrf.mxu0
        %v4799 = vadd.f32 0.0, %v4798
        %4800 = vmatmul.bf16.gmra.mxu0 %v4734
        %v4801 = vpop.f32.mrf.mxu0
        %v4802 = vadd.f32 0.0, %v4801
        %v4803 = vpop.f32.mrf.mxu0
        %v4804 = vadd.f32 0.0, %v4803
        %4805 = vmatmul.bf16.gmra.mxu0 %v4737
        %v4806 = vpop.f32.mrf.mxu0
        %v4807 = vadd.f32 0.0, %v4806
        %v4808 = vpop.f32.mrf.mxu0
        %v4809 = vadd.f32 0.0, %v4808
        %4810 = vmatmul.bf16.gmra.mxu0 %v4740
        %v4811 = vpop.f32.mrf.mxu0
        %v4812 = vadd.f32 0.0, %v4811
        %v4813 = vpop.f32.mrf.mxu0
        %v4814 = vadd.f32 0.0, %v4813
        %4815 = vmatmul.bf16.gmra.mxu0 %v4743
        %v4816 = vpop.f32.mrf.mxu0
        %v4817 = vadd.f32 0.0, %v4816
        %v4818 = vpop.f32.mrf.mxu0
        %v4819 = vadd.f32 0.0, %v4818
        %4820 = vmatmul.bf16.gmra.mxu0 %v4746
        %v4821 = vpop.f32.mrf.mxu0
        %v4822 = vadd.f32 0.0, %v4821
        %v4823 = vpop.f32.mrf.mxu0
        %v4824 = vadd.f32 0.0, %v4823
        %4825 = vmatmul.bf16.gmra.mxu0 %v4749
        %v4826 = vpop.f32.mrf.mxu0
        %v4827 = vadd.f32 0.0, %v4826
        %v4828 = vpop.f32.mrf.mxu0
        %v4829 = vadd.f32 0.0, %v4828
        %4830 = vmatmul.bf16.gmra.mxu0 %v4752
        %v4831 = vpop.f32.mrf.mxu0
        %v4832 = vadd.f32 0.0, %v4831
        %v4833 = vpop.f32.mrf.mxu0
        %v4834 = vadd.f32 0.0, %v4833
        %4835 = vmatmul.bf16.gmra.mxu0 %v4755
        %v4836 = vpop.f32.mrf.mxu0
        %v4837 = vadd.f32 0.0, %v4836
        %v4838 = vpop.f32.mrf.mxu0
        %v4839 = vadd.f32 0.0, %v4838
        %4840 = vmatmul.bf16.gmra.mxu0 %v4758
        %v4841 = vpop.f32.mrf.mxu0
        %v4842 = vadd.f32 0.0, %v4841
        %v4843 = vpop.f32.mrf.mxu0
        %v4844 = vadd.f32 0.0, %v4843
        %4845 = vmatmul.bf16.gmra.mxu0 %v4761
        %v4846 = vpop.f32.mrf.mxu0
        %v4847 = vadd.f32 0.0, %v4846
        %v4848 = vpop.f32.mrf.mxu0
        %v4849 = vadd.f32 0.0, %v4848
        %4850 = vmatmul.bf16.gmra.mxu0 %v4764
        %v4851 = vpop.f32.mrf.mxu0
        %v4852 = vadd.f32 0.0, %v4851
        %v4853 = vpop.f32.mrf.mxu0
        %v4854 = vadd.f32 0.0, %v4853
        %4855 = vmatmul.bf16.gmra.mxu0 %v4767
        %v4856 = vpop.f32.mrf.mxu0
        %v4857 = vadd.f32 0.0, %v4856
        %v4858 = vpop.f32.mrf.mxu0
        %v4859 = vadd.f32 0.0, %v4858
        %4860 = vdwg.mxu0
        %v4861 = vld [vmem:[#allocation3] sm:$0xff]
        %v4862 = vld [vmem:[#allocation3 + $0x8] sm:$0xff]
        %v4863 = vld [vmem:[#allocation3 + $0x10] sm:$0xff]
        %v4864 = vld [vmem:[#allocation3 + $0x18] sm:$0xff]
        %v4865 = vld [vmem:[#allocation3 + $0x20] sm:$0xff]
        %v4866 = vld [vmem:[#allocation3 + $0x28] sm:$0xff]
        %v4867 = vld [vmem:[#allocation3 + $0x30] sm:$0xff]
        %v4868 = vld [vmem:[#allocation3 + $0x38] sm:$0xff]
        %v4869 = vld [vmem:[#allocation3 + $0x40] sm:$0xff]
        %v4870 = vld [vmem:[#allocation3 + $0x48] sm:$0xff]
        %v4871 = vld [vmem:[#allocation3 + $0x50] sm:$0xff]
        %v4872 = vld [vmem:[#allocation3 + $0x58] sm:$0xff]
        %v4873 = vld [vmem:[#allocation3 + $0x60] sm:$0xff]
        %v4874 = vld [vmem:[#allocation3 + $0x68] sm:$0xff]
        %v4875 = vld [vmem:[#allocation3 + $0x70] sm:$0xff]
        %v4876 = vld [vmem:[#allocation3 + $0x78] sm:$0xff]
        %v4877 = vld [vmem:[#allocation3 + $0x80] sm:$0xff]
        %v4878 = vld [vmem:[#allocation3 + $0x88] sm:$0xff]
        %v4879 = vld [vmem:[#allocation3 + $0x90] sm:$0xff]
        %v4880 = vld [vmem:[#allocation3 + $0x98] sm:$0xff]
        %v4881 = vld [vmem:[#allocation3 + $0xa0] sm:$0xff]
        %v4882 = vld [vmem:[#allocation3 + $0xa8] sm:$0xff]
        %v4883 = vld [vmem:[#allocation3 + $0xb0] sm:$0xff]
        %v4884 = vld [vmem:[#allocation3 + $0xb8] sm:$0xff]
        %v4885 = vld [vmem:[#allocation3 + $0xc0] sm:$0xff]
        %v4886 = vld [vmem:[#allocation3 + $0xc8] sm:$0xff]
        %v4887 = vld [vmem:[#allocation3 + $0xd0] sm:$0xff]
        %v4888 = vld [vmem:[#allocation3 + $0xd8] sm:$0xff]
        %v4889 = vld [vmem:[#allocation3 + $0xe0] sm:$0xff]
        %v4890 = vld [vmem:[#allocation3 + $0xe8] sm:$0xff]
        %v4891 = vld [vmem:[#allocation3 + $0xf0] sm:$0xff]
        %v4892 = vld [vmem:[#allocation3 + $0xf8] sm:$0xff]
        %v4893 = vadd.f32 %v4861, %v4782
        %v4894 = vadd.f32 %v4862, %v4784
        %v4895 = vadd.f32 %v4863, %v4787
        %v4896 = vadd.f32 %v4864, %v4789
        %v4897 = vadd.f32 %v4865, %v4792
        %v4898 = vadd.f32 %v4866, %v4794
        %v4899 = vadd.f32 %v4867, %v4797
        %v4900 = vadd.f32 %v4868, %v4799
        %v4901 = vadd.f32 %v4869, %v4802
        %v4902 = vadd.f32 %v4870, %v4804
        %v4903 = vadd.f32 %v4871, %v4807
        %v4904 = vadd.f32 %v4872, %v4809
        %v4905 = vadd.f32 %v4873, %v4812
        %v4906 = vadd.f32 %v4874, %v4814
        %v4907 = vadd.f32 %v4875, %v4817
        %v4908 = vadd.f32 %v4876, %v4819
        %v4909 = vadd.f32 %v4877, %v4822
        %v4910 = vadd.f32 %v4878, %v4824
        %v4911 = vadd.f32 %v4879, %v4827
        %v4912 = vadd.f32 %v4880, %v4829
        %v4913 = vadd.f32 %v4881, %v4832
        %v4914 = vadd.f32 %v4882, %v4834
        %v4915 = vadd.f32 %v4883, %v4837
        %v4916 = vadd.f32 %v4884, %v4839
        %v4917 = vadd.f32 %v4885, %v4842
        %v4918 = vadd.f32 %v4886, %v4844
        %v4919 = vadd.f32 %v4887, %v4847
        %v4920 = vadd.f32 %v4888, %v4849
        %v4921 = vadd.f32 %v4889, %v4852
        %v4922 = vadd.f32 %v4890, %v4854
        %v4923 = vadd.f32 %v4891, %v4857
        %v4924 = vadd.f32 %v4892, %v4859
        %4925 = vst.msk [vmem:[#allocation3] sm:$0xff] %vm1075, %v4893
        %4926 = vst.msk [vmem:[#allocation3 + $0x8] sm:$0xff] %vm1075, %v4894
        %4927 = vst.msk [vmem:[#allocation3 + $0x10] sm:$0xff] %vm1075, %v4895
        %4928 = vst.msk [vmem:[#allocation3 + $0x18] sm:$0xff] %vm1075, %v4896
        %4929 = vst.msk [vmem:[#allocation3 + $0x20] sm:$0xff] %vm1075, %v4897
        %4930 = vst.msk [vmem:[#allocation3 + $0x28] sm:$0xff] %vm1075, %v4898
        %4931 = vst.msk [vmem:[#allocation3 + $0x30] sm:$0xff] %vm1075, %v4899
        %4932 = vst.msk [vmem:[#allocation3 + $0x38] sm:$0xff] %vm1075, %v4900
        %4933 = vst.msk [vmem:[#allocation3 + $0x40] sm:$0xff] %vm1075, %v4901
        %4934 = vst.msk [vmem:[#allocation3 + $0x48] sm:$0xff] %vm1075, %v4902
        %4935 = vst.msk [vmem:[#allocation3 + $0x50] sm:$0xff] %vm1075, %v4903
        %4936 = vst.msk [vmem:[#allocation3 + $0x58] sm:$0xff] %vm1075, %v4904
        %4937 = vst.msk [vmem:[#allocation3 + $0x60] sm:$0xff] %vm1075, %v4905
        %4938 = vst.msk [vmem:[#allocation3 + $0x68] sm:$0xff] %vm1075, %v4906
        %4939 = vst.msk [vmem:[#allocation3 + $0x70] sm:$0xff] %vm1075, %v4907
        %4940 = vst.msk [vmem:[#allocation3 + $0x78] sm:$0xff] %vm1075, %v4908
        %4941 = vst.msk [vmem:[#allocation3 + $0x80] sm:$0xff] %vm1075, %v4909
        %4942 = vst.msk [vmem:[#allocation3 + $0x88] sm:$0xff] %vm1075, %v4910
        %4943 = vst.msk [vmem:[#allocation3 + $0x90] sm:$0xff] %vm1075, %v4911
        %4944 = vst.msk [vmem:[#allocation3 + $0x98] sm:$0xff] %vm1075, %v4912
        %4945 = vst.msk [vmem:[#allocation3 + $0xa0] sm:$0xff] %vm1075, %v4913
        %4946 = vst.msk [vmem:[#allocation3 + $0xa8] sm:$0xff] %vm1075, %v4914
        %4947 = vst.msk [vmem:[#allocation3 + $0xb0] sm:$0xff] %vm1075, %v4915
        %4948 = vst.msk [vmem:[#allocation3 + $0xb8] sm:$0xff] %vm1075, %v4916
        %4949 = vst.msk [vmem:[#allocation3 + $0xc0] sm:$0xff] %vm1075, %v4917
        %4950 = vst.msk [vmem:[#allocation3 + $0xc8] sm:$0xff] %vm1075, %v4918
        %4951 = vst.msk [vmem:[#allocation3 + $0xd0] sm:$0xff] %vm1075, %v4919
        %4952 = vst.msk [vmem:[#allocation3 + $0xd8] sm:$0xff] %vm1075, %v4920
        %4953 = vst.msk [vmem:[#allocation3 + $0xe0] sm:$0xff] %vm1075, %v4921
        %4954 = vst.msk [vmem:[#allocation3 + $0xe8] sm:$0xff] %vm1075, %v4922
        %4955 = vst.msk [vmem:[#allocation3 + $0xf0] sm:$0xff] %vm1075, %v4923
        %4956 = vst.msk [vmem:[#allocation3 + $0xf8] sm:$0xff] %vm1075, %v4924
        %v4957 = vld [vmem:[%s3888] sm:$0xe]
        %v4958 = vld [vmem:[%s3888 + $0x4] sm:$0xf]
        %v4959 = vld [vmem:[%s3888 + $0x8] sm:$0x1]
        %v4960 = vld [vmem:[%s3888 + $0xc] sm:$0xe]
        %v4961 = vld [vmem:[%s3888 + $0x10] sm:$0xf]
        %v4962 = vld [vmem:[%s3888 + $0x14] sm:$0x1]
        %v4963 = vld [vmem:[%s3888 + $0x18] sm:$0xe]
        %v4964 = vld [vmem:[%s3888 + $0x1c] sm:$0xf]
        %v4965 = vld [vmem:[%s3888 + $0x20] sm:$0x1]
        %v4966 = vld [vmem:[%s3888 + $0x24] sm:$0xe]
        %v4967 = vld [vmem:[%s3888 + $0x28] sm:$0xf]
        %v4968 = vld [vmem:[%s3888 + $0x2c] sm:$0x1]
        %v4969 = vld [vmem:[%s3888 + $0x30] sm:$0xe]
        %v4970 = vld [vmem:[%s3888 + $0x34] sm:$0xf]
        %v4971 = vld [vmem:[%s3888 + $0x38] sm:$0x1]
        %v4972 = vld [vmem:[%s3888 + $0x3c] sm:$0xe]
        %v4973 = vld [vmem:[%s3888 + $0x40] sm:$0xf]
        %v4974 = vld [vmem:[%s3888 + $0x44] sm:$0x1]
        %v4975 = vld [vmem:[%s3888 + $0x48] sm:$0xe]
        %v4976 = vld [vmem:[%s3888 + $0x4c] sm:$0xf]
        %v4977 = vld [vmem:[%s3888 + $0x50] sm:$0x1]
        %v4978 = vld [vmem:[%s3888 + $0x54] sm:$0xe]
        %v4979 = vld [vmem:[%s3888 + $0x58] sm:$0xf]
        %v4980 = vld [vmem:[%s3888 + $0x5c] sm:$0x1]
        %v4981 = vld [vmem:[%s3888 + $0x60] sm:$0xe]
        %v4982 = vld [vmem:[%s3888 + $0x64] sm:$0xf]
        %v4983 = vld [vmem:[%s3888 + $0x68] sm:$0x1]
        %v4984 = vld [vmem:[%s3888 + $0x6c] sm:$0xe]
        %v4985 = vld [vmem:[%s3888 + $0x70] sm:$0xf]
        %v4986 = vld [vmem:[%s3888 + $0x74] sm:$0x1]
        %v4987 = vld [vmem:[%s3888 + $0x78] sm:$0xe]
        %v4988 = vld [vmem:[%s3888 + $0x7c] sm:$0xf]
        %v4989 = vld [vmem:[%s3888 + $0x80] sm:$0x1]
        %v4990 = vld [vmem:[%s3888 + $0x84] sm:$0xe]
        %v4991 = vld [vmem:[%s3888 + $0x88] sm:$0xf]
        %v4992 = vld [vmem:[%s3888 + $0x8c] sm:$0x1]
        %v4993 = vld [vmem:[%s3888 + $0x90] sm:$0xe]
        %v4994 = vld [vmem:[%s3888 + $0x94] sm:$0xf]
        %v4995 = vld [vmem:[%s3888 + $0x98] sm:$0x1]
        %v4996 = vld [vmem:[%s3888 + $0x9c] sm:$0xe]
        %v4997 = vld [vmem:[%s3888 + $0xa0] sm:$0xf]
        %v4998 = vld [vmem:[%s3888 + $0xa4] sm:$0x1]
        %v4999 = vld [vmem:[%s3888 + $0xa8] sm:$0xe]
        %v5000 = vld [vmem:[%s3888 + $0xac] sm:$0xf]
        %v5001 = vld [vmem:[%s3888 + $0xb0] sm:$0x1]
        %v5002 = vld [vmem:[%s3888 + $0xb4] sm:$0xe]
        %v5003 = vld [vmem:[%s3888 + $0xb8] sm:$0xf]
        %v5004 = vld [vmem:[%s3888 + $0xbc] sm:$0x1]
        %v5053 = vrot.slane %v4957, 5
        %v5054 = vrot.slane %v5053, 4
        %v5055 = vrot.slane %v4958, 5
        %v5056 = vsel %vm1927, %v5054, %v5055
        %v5057 = vrot.slane %v5055, 4
        %v5058 = vrot.slane %v4959, 5
        %v5059 = vsel %vm1927, %v5057, %v5058
        %v5060 = vrot.slane %v4960, 5
        %v5061 = vrot.slane %v5060, 4
        %v5062 = vrot.slane %v4961, 5
        %v5063 = vsel %vm1927, %v5061, %v5062
        %v5064 = vrot.slane %v5062, 4
        %v5065 = vrot.slane %v4962, 5
        %v5066 = vsel %vm1927, %v5064, %v5065
        %v5067 = vrot.slane %v4963, 5
        %v5068 = vrot.slane %v5067, 4
        %v5069 = vrot.slane %v4964, 5
        %v5070 = vsel %vm1927, %v5068, %v5069
        %v5071 = vrot.slane %v5069, 4
        %v5072 = vrot.slane %v4965, 5
        %v5073 = vsel %vm1927, %v5071, %v5072
        %v5074 = vrot.slane %v4966, 5
        %v5075 = vrot.slane %v5074, 4
        %v5076 = vrot.slane %v4967, 5
        %v5077 = vsel %vm1927, %v5075, %v5076
        %v5078 = vrot.slane %v5076, 4
        %v5079 = vrot.slane %v4968, 5
        %v5080 = vsel %vm1927, %v5078, %v5079
        %v5081 = vrot.slane %v4969, 5
        %v5082 = vrot.slane %v5081, 4
        %v5083 = vrot.slane %v4970, 5
        %v5084 = vsel %vm1927, %v5082, %v5083
        %v5085 = vrot.slane %v5083, 4
        %v5086 = vrot.slane %v4971, 5
        %v5087 = vsel %vm1927, %v5085, %v5086
        %v5088 = vrot.slane %v4972, 5
        %v5089 = vrot.slane %v5088, 4
        %v5090 = vrot.slane %v4973, 5
        %v5091 = vsel %vm1927, %v5089, %v5090
        %v5092 = vrot.slane %v5090, 4
        %v5093 = vrot.slane %v4974, 5
        %v5094 = vsel %vm1927, %v5092, %v5093
        %v5095 = vrot.slane %v4975, 5
        %v5096 = vrot.slane %v5095, 4
        %v5097 = vrot.slane %v4976, 5
        %v5098 = vsel %vm1927, %v5096, %v5097
        %v5099 = vrot.slane %v5097, 4
        %v5100 = vrot.slane %v4977, 5
        %v5101 = vsel %vm1927, %v5099, %v5100
        %v5102 = vrot.slane %v4978, 5
        %v5103 = vrot.slane %v5102, 4
        %v5104 = vrot.slane %v4979, 5
        %v5105 = vsel %vm1927, %v5103, %v5104
        %v5106 = vrot.slane %v5104, 4
        %v5107 = vrot.slane %v4980, 5
        %v5108 = vsel %vm1927, %v5106, %v5107
        %v5109 = vrot.slane %v4981, 5
        %v5110 = vrot.slane %v5109, 4
        %v5111 = vrot.slane %v4982, 5
        %v5112 = vsel %vm1927, %v5110, %v5111
        %v5113 = vrot.slane %v5111, 4
        %v5114 = vrot.slane %v4983, 5
        %v5115 = vsel %vm1927, %v5113, %v5114
        %v5116 = vrot.slane %v4984, 5
        %v5117 = vrot.slane %v5116, 4
        %v5118 = vrot.slane %v4985, 5
        %v5119 = vsel %vm1927, %v5117, %v5118
        %v5120 = vrot.slane %v5118, 4
        %v5121 = vrot.slane %v4986, 5
        %v5122 = vsel %vm1927, %v5120, %v5121
        %v5123 = vrot.slane %v4987, 5
        %v5124 = vrot.slane %v5123, 4
        %v5125 = vrot.slane %v4988, 5
        %v5126 = vsel %vm1927, %v5124, %v5125
        %v5127 = vrot.slane %v5125, 4
        %v5128 = vrot.slane %v4989, 5
        %v5129 = vsel %vm1927, %v5127, %v5128
        %v5130 = vrot.slane %v4990, 5
        %v5131 = vrot.slane %v5130, 4
        %v5132 = vrot.slane %v4991, 5
        %v5133 = vsel %vm1927, %v5131, %v5132
        %v5134 = vrot.slane %v5132, 4
        %v5135 = vrot.slane %v4992, 5
        %v5136 = vsel %vm1927, %v5134, %v5135
        %v5137 = vrot.slane %v4993, 5
        %v5138 = vrot.slane %v5137, 4
        %v5139 = vrot.slane %v4994, 5
        %v5140 = vsel %vm1927, %v5138, %v5139
        %v5141 = vrot.slane %v5139, 4
        %v5142 = vrot.slane %v4995, 5
        %v5143 = vsel %vm1927, %v5141, %v5142
        %v5144 = vrot.slane %v4996, 5
        %v5145 = vrot.slane %v5144, 4
        %v5146 = vrot.slane %v4997, 5
        %v5147 = vsel %vm1927, %v5145, %v5146
        %v5148 = vrot.slane %v5146, 4
        %v5149 = vrot.slane %v4998, 5
        %v5150 = vsel %vm1927, %v5148, %v5149
        %v5151 = vrot.slane %v4999, 5
        %v5152 = vrot.slane %v5151, 4
        %v5153 = vrot.slane %v5000, 5
        %v5154 = vsel %vm1927, %v5152, %v5153
        %v5155 = vrot.slane %v5153, 4
        %v5156 = vrot.slane %v5001, 5
        %v5157 = vsel %vm1927, %v5155, %v5156
        %v5158 = vrot.slane %v5002, 5
        %v5159 = vrot.slane %v5158, 4
        %v5160 = vrot.slane %v5003, 5
        %v5161 = vsel %vm1927, %v5159, %v5160
        %v5162 = vrot.slane %v5160, 4
        %v5163 = vrot.slane %v5004, 5
        %v5164 = vsel %vm1927, %v5162, %v5163
        %s5165 = scalar_lea.vmem %s1, 32
        %v5166 = vld [vmem:[%s5165] sm:$0xf]
        %v5167 = vunpack.c.l.b16 %v5056
        %v5168 = vunpack.c.l.b16 %v5059
        %v5169 = vunpack.c.l.b16 %v5063
        %v5170 = vunpack.c.l.b16 %v5066
        %v5171 = vunpack.c.l.b16 %v5070
        %v5172 = vunpack.c.l.b16 %v5073
        %v5173 = vunpack.c.l.b16 %v5077
        %v5174 = vunpack.c.l.b16 %v5080
        %v5175 = vunpack.c.l.b16 %v5084
        %v5176 = vunpack.c.l.b16 %v5087
        %v5177 = vunpack.c.l.b16 %v5091
        %v5178 = vunpack.c.l.b16 %v5094
        %v5179 = vunpack.c.l.b16 %v5098
        %v5180 = vunpack.c.l.b16 %v5101
        %v5181 = vunpack.c.l.b16 %v5105
        %v5182 = vunpack.c.l.b16 %v5108
        %v5183 = vunpack.c.l.b16 %v5112
        %v5184 = vunpack.c.l.b16 %v5115
        %v5185 = vunpack.c.l.b16 %v5119
        %v5186 = vunpack.c.l.b16 %v5122
        %v5187 = vunpack.c.l.b16 %v5126
        %v5188 = vunpack.c.l.b16 %v5129
        %v5189 = vunpack.c.l.b16 %v5133
        %v5190 = vunpack.c.l.b16 %v5136
        %v5191 = vunpack.c.l.b16 %v5140
        %v5192 = vunpack.c.l.b16 %v5143
        %v5193 = vunpack.c.l.b16 %v5147
        %v5194 = vunpack.c.l.b16 %v5150
        %v5195 = vunpack.c.l.b16 %v5154
        %v5196 = vunpack.c.l.b16 %v5157
        %v5197 = vunpack.c.l.b16 %v5161
        %v5198 = vunpack.c.l.b16 %v5164
        %v5199 = vpack.c.b16 %v5168, %v5167
        %v5200 = vpack.c.b16 %v5170, %v5169
        %v5201 = vpack.c.b16 %v5172, %v5171
        %v5202 = vpack.c.b16 %v5174, %v5173
        %v5203 = vpack.c.b16 %v5176, %v5175
        %v5204 = vpack.c.b16 %v5178, %v5177
        %v5205 = vpack.c.b16 %v5180, %v5179
        %v5206 = vpack.c.b16 %v5182, %v5181
        %v5207 = vpack.c.b16 %v5184, %v5183
        %v5208 = vpack.c.b16 %v5186, %v5185
        %v5209 = vpack.c.b16 %v5188, %v5187
        %v5210 = vpack.c.b16 %v5190, %v5189
        %v5211 = vpack.c.b16 %v5192, %v5191
        %v5212 = vpack.c.b16 %v5194, %v5193
        %v5213 = vpack.c.b16 %v5196, %v5195
        %v5214 = vpack.c.b16 %v5198, %v5197
        %v5216 = vsel %vm933, %v5199, 0
        %v5219 = vsel %vm933, %v5200, 0
        %v5222 = vsel %vm933, %v5201, 0
        %v5225 = vsel %vm933, %v5202, 0
        %v5228 = vsel %vm933, %v5203, 0
        %v5231 = vsel %vm933, %v5204, 0
        %v5234 = vsel %vm933, %v5205, 0
        %v5237 = vsel %vm933, %v5206, 0
        %v5240 = vsel %vm933, %v5207, 0
        %v5243 = vsel %vm933, %v5208, 0
        %v5246 = vsel %vm933, %v5209, 0
        %v5249 = vsel %vm933, %v5210, 0
        %v5252 = vsel %vm933, %v5211, 0
        %v5255 = vsel %vm933, %v5212, 0
        %v5258 = vsel %vm933, %v5213, 0
        %v5261 = vsel %vm933, %v5214, 0
        %v5264 = vsel %vm982, %v5166, 0
        %5266 = vmatpush.bf16.msra.mxu0 0
        %5267 = vmatpush.bf16.msra.mxu0 0
        %5268 = vmatpush.bf16.msra.mxu0 0
        %5269 = vmatpush.bf16.msra.mxu0 0
        %5270 = vmatpush.bf16.msra.mxu0 0
        %5271 = vmatpush.bf16.msra.mxu0 0
        %5272 = vmatpush.bf16.msra.mxu0 0
        %5273 = vmatpush.bf16.msra.mxu0 %v5264
        %5274 = vmatmul.bf16.gmra.mxu0 %v5216
        %v5275 = vpop.f32.mrf.mxu0
        %v5276 = vadd.f32 0.0, %v5275
        %v5277 = vpop.f32.mrf.mxu0
        %v5278 = vadd.f32 0.0, %v5277
        %5279 = vmatmul.bf16.gmra.mxu0 %v5219
        %v5280 = vpop.f32.mrf.mxu0
        %v5281 = vadd.f32 0.0, %v5280
        %v5282 = vpop.f32.mrf.mxu0
        %v5283 = vadd.f32 0.0, %v5282
        %5284 = vmatmul.bf16.gmra.mxu0 %v5222
        %v5285 = vpop.f32.mrf.mxu0
        %v5286 = vadd.f32 0.0, %v5285
        %v5287 = vpop.f32.mrf.mxu0
        %v5288 = vadd.f32 0.0, %v5287
        %5289 = vmatmul.bf16.gmra.mxu0 %v5225
        %v5290 = vpop.f32.mrf.mxu0
        %v5291 = vadd.f32 0.0, %v5290
        %v5292 = vpop.f32.mrf.mxu0
        %v5293 = vadd.f32 0.0, %v5292
        %5294 = vmatmul.bf16.gmra.mxu0 %v5228
        %v5295 = vpop.f32.mrf.mxu0
        %v5296 = vadd.f32 0.0, %v5295
        %v5297 = vpop.f32.mrf.mxu0
        %v5298 = vadd.f32 0.0, %v5297
        %5299 = vmatmul.bf16.gmra.mxu0 %v5231
        %v5300 = vpop.f32.mrf.mxu0
        %v5301 = vadd.f32 0.0, %v5300
        %v5302 = vpop.f32.mrf.mxu0
        %v5303 = vadd.f32 0.0, %v5302
        %5304 = vmatmul.bf16.gmra.mxu0 %v5234
        %v5305 = vpop.f32.mrf.mxu0
        %v5306 = vadd.f32 0.0, %v5305
        %v5307 = vpop.f32.mrf.mxu0
        %v5308 = vadd.f32 0.0, %v5307
        %5309 = vmatmul.bf16.gmra.mxu0 %v5237
        %v5310 = vpop.f32.mrf.mxu0
        %v5311 = vadd.f32 0.0, %v5310
        %v5312 = vpop.f32.mrf.mxu0
        %v5313 = vadd.f32 0.0, %v5312
        %5314 = vmatmul.bf16.gmra.mxu0 %v5240
        %v5315 = vpop.f32.mrf.mxu0
        %v5316 = vadd.f32 0.0, %v5315
        %v5317 = vpop.f32.mrf.mxu0
        %v5318 = vadd.f32 0.0, %v5317
        %5319 = vmatmul.bf16.gmra.mxu0 %v5243
        %v5320 = vpop.f32.mrf.mxu0
        %v5321 = vadd.f32 0.0, %v5320
        %v5322 = vpop.f32.mrf.mxu0
        %v5323 = vadd.f32 0.0, %v5322
        %5324 = vmatmul.bf16.gmra.mxu0 %v5246
        %v5325 = vpop.f32.mrf.mxu0
        %v5326 = vadd.f32 0.0, %v5325
        %v5327 = vpop.f32.mrf.mxu0
        %v5328 = vadd.f32 0.0, %v5327
        %5329 = vmatmul.bf16.gmra.mxu0 %v5249
        %v5330 = vpop.f32.mrf.mxu0
        %v5331 = vadd.f32 0.0, %v5330
        %v5332 = vpop.f32.mrf.mxu0
        %v5333 = vadd.f32 0.0, %v5332
        %5334 = vmatmul.bf16.gmra.mxu0 %v5252
        %v5335 = vpop.f32.mrf.mxu0
        %v5336 = vadd.f32 0.0, %v5335
        %v5337 = vpop.f32.mrf.mxu0
        %v5338 = vadd.f32 0.0, %v5337
        %5339 = vmatmul.bf16.gmra.mxu0 %v5255
        %v5340 = vpop.f32.mrf.mxu0
        %v5341 = vadd.f32 0.0, %v5340
        %v5342 = vpop.f32.mrf.mxu0
        %v5343 = vadd.f32 0.0, %v5342
        %5344 = vmatmul.bf16.gmra.mxu0 %v5258
        %v5345 = vpop.f32.mrf.mxu0
        %v5346 = vadd.f32 0.0, %v5345
        %v5347 = vpop.f32.mrf.mxu0
        %v5348 = vadd.f32 0.0, %v5347
        %5349 = vmatmul.bf16.gmra.mxu0 %v5261
        %v5350 = vpop.f32.mrf.mxu0
        %v5351 = vadd.f32 0.0, %v5350
        %v5352 = vpop.f32.mrf.mxu0
        %v5353 = vadd.f32 0.0, %v5352
        %5354 = vdwg.mxu0
        %v5355 = vld [vmem:[#allocation3] sm:$0xff]
        %v5356 = vld [vmem:[#allocation3 + $0x8] sm:$0xff]
        %v5357 = vld [vmem:[#allocation3 + $0x10] sm:$0xff]
        %v5358 = vld [vmem:[#allocation3 + $0x18] sm:$0xff]
        %v5359 = vld [vmem:[#allocation3 + $0x20] sm:$0xff]
        %v5360 = vld [vmem:[#allocation3 + $0x28] sm:$0xff]
        %v5361 = vld [vmem:[#allocation3 + $0x30] sm:$0xff]
        %v5362 = vld [vmem:[#allocation3 + $0x38] sm:$0xff]
        %v5363 = vld [vmem:[#allocation3 + $0x40] sm:$0xff]
        %v5364 = vld [vmem:[#allocation3 + $0x48] sm:$0xff]
        %v5365 = vld [vmem:[#allocation3 + $0x50] sm:$0xff]
        %v5366 = vld [vmem:[#allocation3 + $0x58] sm:$0xff]
        %v5367 = vld [vmem:[#allocation3 + $0x60] sm:$0xff]
        %v5368 = vld [vmem:[#allocation3 + $0x68] sm:$0xff]
        %v5369 = vld [vmem:[#allocation3 + $0x70] sm:$0xff]
        %v5370 = vld [vmem:[#allocation3 + $0x78] sm:$0xff]
        %v5371 = vld [vmem:[#allocation3 + $0x80] sm:$0xff]
        %v5372 = vld [vmem:[#allocation3 + $0x88] sm:$0xff]
        %v5373 = vld [vmem:[#allocation3 + $0x90] sm:$0xff]
        %v5374 = vld [vmem:[#allocation3 + $0x98] sm:$0xff]
        %v5375 = vld [vmem:[#allocation3 + $0xa0] sm:$0xff]
        %v5376 = vld [vmem:[#allocation3 + $0xa8] sm:$0xff]
        %v5377 = vld [vmem:[#allocation3 + $0xb0] sm:$0xff]
        %v5378 = vld [vmem:[#allocation3 + $0xb8] sm:$0xff]
        %v5379 = vld [vmem:[#allocation3 + $0xc0] sm:$0xff]
        %v5380 = vld [vmem:[#allocation3 + $0xc8] sm:$0xff]
        %v5381 = vld [vmem:[#allocation3 + $0xd0] sm:$0xff]
        %v5382 = vld [vmem:[#allocation3 + $0xd8] sm:$0xff]
        %v5383 = vld [vmem:[#allocation3 + $0xe0] sm:$0xff]
        %v5384 = vld [vmem:[#allocation3 + $0xe8] sm:$0xff]
        %v5385 = vld [vmem:[#allocation3 + $0xf0] sm:$0xff]
        %v5386 = vld [vmem:[#allocation3 + $0xf8] sm:$0xff]
        %v5387 = vadd.f32 %v5355, %v5276
        %v5388 = vadd.f32 %v5356, %v5278
        %v5389 = vadd.f32 %v5357, %v5281
        %v5390 = vadd.f32 %v5358, %v5283
        %v5391 = vadd.f32 %v5359, %v5286
        %v5392 = vadd.f32 %v5360, %v5288
        %v5393 = vadd.f32 %v5361, %v5291
        %v5394 = vadd.f32 %v5362, %v5293
        %v5395 = vadd.f32 %v5363, %v5296
        %v5396 = vadd.f32 %v5364, %v5298
        %v5397 = vadd.f32 %v5365, %v5301
        %v5398 = vadd.f32 %v5366, %v5303
        %v5399 = vadd.f32 %v5367, %v5306
        %v5400 = vadd.f32 %v5368, %v5308
        %v5401 = vadd.f32 %v5369, %v5311
        %v5402 = vadd.f32 %v5370, %v5313
        %v5403 = vadd.f32 %v5371, %v5316
        %v5404 = vadd.f32 %v5372, %v5318
        %v5405 = vadd.f32 %v5373, %v5321
        %v5406 = vadd.f32 %v5374, %v5323
        %v5407 = vadd.f32 %v5375, %v5326
        %v5408 = vadd.f32 %v5376, %v5328
        %v5409 = vadd.f32 %v5377, %v5331
        %v5410 = vadd.f32 %v5378, %v5333
        %v5411 = vadd.f32 %v5379, %v5336
        %v5412 = vadd.f32 %v5380, %v5338
        %v5413 = vadd.f32 %v5381, %v5341
        %v5414 = vadd.f32 %v5382, %v5343
        %v5415 = vadd.f32 %v5383, %v5346
        %v5416 = vadd.f32 %v5384, %v5348
        %v5417 = vadd.f32 %v5385, %v5351
        %v5418 = vadd.f32 %v5386, %v5353
        %5419 = vst.msk [vmem:[#allocation3] sm:$0xff] %vm1075, %v5387
        %5420 = vst.msk [vmem:[#allocation3 + $0x8] sm:$0xff] %vm1075, %v5388
        %5421 = vst.msk [vmem:[#allocation3 + $0x10] sm:$0xff] %vm1075, %v5389
        %5422 = vst.msk [vmem:[#allocation3 + $0x18] sm:$0xff] %vm1075, %v5390
        %5423 = vst.msk [vmem:[#allocation3 + $0x20] sm:$0xff] %vm1075, %v5391
        %5424 = vst.msk [vmem:[#allocation3 + $0x28] sm:$0xff] %vm1075, %v5392
        %5425 = vst.msk [vmem:[#allocation3 + $0x30] sm:$0xff] %vm1075, %v5393
        %5426 = vst.msk [vmem:[#allocation3 + $0x38] sm:$0xff] %vm1075, %v5394
        %5427 = vst.msk [vmem:[#allocation3 + $0x40] sm:$0xff] %vm1075, %v5395
        %5428 = vst.msk [vmem:[#allocation3 + $0x48] sm:$0xff] %vm1075, %v5396
        %5429 = vst.msk [vmem:[#allocation3 + $0x50] sm:$0xff] %vm1075, %v5397
        %5430 = vst.msk [vmem:[#allocation3 + $0x58] sm:$0xff] %vm1075, %v5398
        %5431 = vst.msk [vmem:[#allocation3 + $0x60] sm:$0xff] %vm1075, %v5399
        %5432 = vst.msk [vmem:[#allocation3 + $0x68] sm:$0xff] %vm1075, %v5400
        %5433 = vst.msk [vmem:[#allocation3 + $0x70] sm:$0xff] %vm1075, %v5401
        %5434 = vst.msk [vmem:[#allocation3 + $0x78] sm:$0xff] %vm1075, %v5402
        %5435 = vst.msk [vmem:[#allocation3 + $0x80] sm:$0xff] %vm1075, %v5403
        %5436 = vst.msk [vmem:[#allocation3 + $0x88] sm:$0xff] %vm1075, %v5404
        %5437 = vst.msk [vmem:[#allocation3 + $0x90] sm:$0xff] %vm1075, %v5405
        %5438 = vst.msk [vmem:[#allocation3 + $0x98] sm:$0xff] %vm1075, %v5406
        %5439 = vst.msk [vmem:[#allocation3 + $0xa0] sm:$0xff] %vm1075, %v5407
        %5440 = vst.msk [vmem:[#allocation3 + $0xa8] sm:$0xff] %vm1075, %v5408
        %5441 = vst.msk [vmem:[#allocation3 + $0xb0] sm:$0xff] %vm1075, %v5409
        %5442 = vst.msk [vmem:[#allocation3 + $0xb8] sm:$0xff] %vm1075, %v5410
        %5443 = vst.msk [vmem:[#allocation3 + $0xc0] sm:$0xff] %vm1075, %v5411
        %5444 = vst.msk [vmem:[#allocation3 + $0xc8] sm:$0xff] %vm1075, %v5412
        %5445 = vst.msk [vmem:[#allocation3 + $0xd0] sm:$0xff] %vm1075, %v5413
        %5446 = vst.msk [vmem:[#allocation3 + $0xd8] sm:$0xff] %vm1075, %v5414
        %5447 = vst.msk [vmem:[#allocation3 + $0xe0] sm:$0xff] %vm1075, %v5415
        %5448 = vst.msk [vmem:[#allocation3 + $0xe8] sm:$0xff] %vm1075, %v5416
        %5449 = vst.msk [vmem:[#allocation3 + $0xf0] sm:$0xff] %vm1075, %v5417
        %5450 = vst.msk [vmem:[#allocation3 + $0xf8] sm:$0xff] %vm1075, %v5418
        %v5451 = vld [vmem:[#allocation3] sm:$0xff]
        %v5452 = vld [vmem:[#allocation3 + $0x8] sm:$0xff]
        %v5453 = vld [vmem:[#allocation3 + $0x10] sm:$0xff]
        %v5454 = vld [vmem:[#allocation3 + $0x18] sm:$0xff]
        %v5455 = vld [vmem:[#allocation3 + $0x20] sm:$0xff]
        %v5456 = vld [vmem:[#allocation3 + $0x28] sm:$0xff]
        %v5457 = vld [vmem:[#allocation3 + $0x30] sm:$0xff]
        %v5458 = vld [vmem:[#allocation3 + $0x38] sm:$0xff]
        %v5459 = vld [vmem:[#allocation3 + $0x40] sm:$0xff]
        %v5460 = vld [vmem:[#allocation3 + $0x48] sm:$0xff]
        %v5461 = vld [vmem:[#allocation3 + $0x50] sm:$0xff]
        %v5462 = vld [vmem:[#allocation3 + $0x58] sm:$0xff]
        %v5463 = vld [vmem:[#allocation3 + $0x60] sm:$0xff]
        %v5464 = vld [vmem:[#allocation3 + $0x68] sm:$0xff]
        %v5465 = vld [vmem:[#allocation3 + $0x70] sm:$0xff]
        %v5466 = vld [vmem:[#allocation3 + $0x78] sm:$0xff]
        %v5467 = vld [vmem:[#allocation3 + $0x80] sm:$0xff]
        %v5468 = vld [vmem:[#allocation3 + $0x88] sm:$0xff]
        %v5469 = vld [vmem:[#allocation3 + $0x90] sm:$0xff]
        %v5470 = vld [vmem:[#allocation3 + $0x98] sm:$0xff]
        %v5471 = vld [vmem:[#allocation3 + $0xa0] sm:$0xff]
        %v5472 = vld [vmem:[#allocation3 + $0xa8] sm:$0xff]
        %v5473 = vld [vmem:[#allocation3 + $0xb0] sm:$0xff]
        %v5474 = vld [vmem:[#allocation3 + $0xb8] sm:$0xff]
        %v5475 = vld [vmem:[#allocation3 + $0xc0] sm:$0xff]
        %v5476 = vld [vmem:[#allocation3 + $0xc8] sm:$0xff]
        %v5477 = vld [vmem:[#allocation3 + $0xd0] sm:$0xff]
        %v5478 = vld [vmem:[#allocation3 + $0xd8] sm:$0xff]
        %v5479 = vld [vmem:[#allocation3 + $0xe0] sm:$0xff]
        %v5480 = vld [vmem:[#allocation3 + $0xe8] sm:$0xff]
        %v5481 = vld [vmem:[#allocation3 + $0xf0] sm:$0xff]
        %v5482 = vld [vmem:[#allocation3 + $0xf8] sm:$0xff]
        %v5483 = vld [vmem:[%s2] sm:$0x1]
        %v5485 = vperm.slane %v5483, 0
        %v5487 = vmul.f32 %v5451, %v5485
        %v5488 = vmul.f32 %v5452, %v5485
        %v5489 = vmul.f32 %v5453, %v5485
        %v5490 = vmul.f32 %v5454, %v5485
        %v5491 = vmul.f32 %v5455, %v5485
        %v5492 = vmul.f32 %v5456, %v5485
        %v5493 = vmul.f32 %v5457, %v5485
        %v5494 = vmul.f32 %v5458, %v5485
        %v5495 = vmul.f32 %v5459, %v5485
        %v5496 = vmul.f32 %v5460, %v5485
        %v5497 = vmul.f32 %v5461, %v5485
        %v5498 = vmul.f32 %v5462, %v5485
        %v5499 = vmul.f32 %v5463, %v5485
        %v5500 = vmul.f32 %v5464, %v5485
        %v5501 = vmul.f32 %v5465, %v5485
        %v5502 = vmul.f32 %v5466, %v5485
        %v5503 = vmul.f32 %v5467, %v5485
        %v5504 = vmul.f32 %v5468, %v5485
        %v5505 = vmul.f32 %v5469, %v5485
        %v5506 = vmul.f32 %v5470, %v5485
        %v5507 = vmul.f32 %v5471, %v5485
        %v5508 = vmul.f32 %v5472, %v5485
        %v5509 = vmul.f32 %v5473, %v5485
        %v5510 = vmul.f32 %v5474, %v5485
        %v5511 = vmul.f32 %v5475, %v5485
        %v5512 = vmul.f32 %v5476, %v5485
        %v5513 = vmul.f32 %v5477, %v5485
        %v5514 = vmul.f32 %v5478, %v5485
        %v5515 = vmul.f32 %v5479, %v5485
        %v5516 = vmul.f32 %v5480, %v5485
        %v5517 = vmul.f32 %v5481, %v5485
        %v5518 = vmul.f32 %v5482, %v5485
        %v5519 = vld [vmem:[%s3] sm:$0x1]
        %v5521 = vperm.slane %v5519, 0
        %v5523 = vadd.f32 %v5487, %v5521
        %v5524 = vadd.f32 %v5488, %v5521
        %v5525 = vadd.f32 %v5489, %v5521
        %v5526 = vadd.f32 %v5490, %v5521
        %v5527 = vadd.f32 %v5491, %v5521
        %v5528 = vadd.f32 %v5492, %v5521
        %v5529 = vadd.f32 %v5493, %v5521
        %v5530 = vadd.f32 %v5494, %v5521
        %v5531 = vadd.f32 %v5495, %v5521
        %v5532 = vadd.f32 %v5496, %v5521
        %v5533 = vadd.f32 %v5497, %v5521
        %v5534 = vadd.f32 %v5498, %v5521
        %v5535 = vadd.f32 %v5499, %v5521
        %v5536 = vadd.f32 %v5500, %v5521
        %v5537 = vadd.f32 %v5501, %v5521
        %v5538 = vadd.f32 %v5502, %v5521
        %v5539 = vadd.f32 %v5503, %v5521
        %v5540 = vadd.f32 %v5504, %v5521
        %v5541 = vadd.f32 %v5505, %v5521
        %v5542 = vadd.f32 %v5506, %v5521
        %v5543 = vadd.f32 %v5507, %v5521
        %v5544 = vadd.f32 %v5508, %v5521
        %v5545 = vadd.f32 %v5509, %v5521
        %v5546 = vadd.f32 %v5510, %v5521
        %v5547 = vadd.f32 %v5511, %v5521
        %v5548 = vadd.f32 %v5512, %v5521
        %v5549 = vadd.f32 %v5513, %v5521
        %v5550 = vadd.f32 %v5514, %v5521
        %v5551 = vadd.f32 %v5515, %v5521
        %v5552 = vadd.f32 %v5516, %v5521
        %v5553 = vadd.f32 %v5517, %v5521
        %v5554 = vadd.f32 %v5518, %v5521
        %v5555 = vmax.f32 %v5523, 0.0
        %v5556 = vmax.f32 %v5524, 0.0
        %v5557 = vmax.f32 %v5525, 0.0
        %v5558 = vmax.f32 %v5526, 0.0
        %v5559 = vmax.f32 %v5527, 0.0
        %v5560 = vmax.f32 %v5528, 0.0
        %v5561 = vmax.f32 %v5529, 0.0
        %v5562 = vmax.f32 %v5530, 0.0
        %v5563 = vmax.f32 %v5531, 0.0
        %v5564 = vmax.f32 %v5532, 0.0
        %v5565 = vmax.f32 %v5533, 0.0
        %v5566 = vmax.f32 %v5534, 0.0
        %v5567 = vmax.f32 %v5535, 0.0
        %v5568 = vmax.f32 %v5536, 0.0
        %v5569 = vmax.f32 %v5537, 0.0
        %v5570 = vmax.f32 %v5538, 0.0
        %v5571 = vmax.f32 %v5539, 0.0
        %v5572 = vmax.f32 %v5540, 0.0
        %v5573 = vmax.f32 %v5541, 0.0
        %v5574 = vmax.f32 %v5542, 0.0
        %v5575 = vmax.f32 %v5543, 0.0
        %v5576 = vmax.f32 %v5544, 0.0
        %v5577 = vmax.f32 %v5545, 0.0
        %v5578 = vmax.f32 %v5546, 0.0
        %v5579 = vmax.f32 %v5547, 0.0
        %v5580 = vmax.f32 %v5548, 0.0
        %v5581 = vmax.f32 %v5549, 0.0
        %v5582 = vmax.f32 %v5550, 0.0
        %v5583 = vmax.f32 %v5551, 0.0
        %v5584 = vmax.f32 %v5552, 0.0
        %v5585 = vmax.f32 %v5553, 0.0
        %v5586 = vmax.f32 %v5554, 0.0
        %v5587 = vpack.c.bf16 %v5555, %v5555
        %v5588 = vpack.c.bf16 %v5556, %v5556
        %v5589 = vpack.c.bf16 %v5557, %v5557
        %v5590 = vpack.c.bf16 %v5558, %v5558
        %v5591 = vpack.c.bf16 %v5559, %v5559
        %v5592 = vpack.c.bf16 %v5560, %v5560
        %v5593 = vpack.c.bf16 %v5561, %v5561
        %v5594 = vpack.c.bf16 %v5562, %v5562
        %v5595 = vpack.c.bf16 %v5563, %v5563
        %v5596 = vpack.c.bf16 %v5564, %v5564
        %v5597 = vpack.c.bf16 %v5565, %v5565
        %v5598 = vpack.c.bf16 %v5566, %v5566
        %v5599 = vpack.c.bf16 %v5567, %v5567
        %v5600 = vpack.c.bf16 %v5568, %v5568
        %v5601 = vpack.c.bf16 %v5569, %v5569
        %v5602 = vpack.c.bf16 %v5570, %v5570
        %v5603 = vpack.c.bf16 %v5571, %v5571
        %v5604 = vpack.c.bf16 %v5572, %v5572
        %v5605 = vpack.c.bf16 %v5573, %v5573
        %v5606 = vpack.c.bf16 %v5574, %v5574
        %v5607 = vpack.c.bf16 %v5575, %v5575
        %v5608 = vpack.c.bf16 %v5576, %v5576
        %v5609 = vpack.c.bf16 %v5577, %v5577
        %v5610 = vpack.c.bf16 %v5578, %v5578
        %v5611 = vpack.c.bf16 %v5579, %v5579
        %v5612 = vpack.c.bf16 %v5580, %v5580
        %v5613 = vpack.c.bf16 %v5581, %v5581
        %v5614 = vpack.c.bf16 %v5582, %v5582
        %v5615 = vpack.c.bf16 %v5583, %v5583
        %v5616 = vpack.c.bf16 %v5584, %v5584
        %v5617 = vpack.c.bf16 %v5585, %v5585
        %v5618 = vpack.c.bf16 %v5586, %v5586
        %vm5619 = vcmask 519168
        %5620 = vst.msk [vmem:[%s204] sm:$0xf] %vm5619, %v5587
        %5621 = vst.msk [vmem:[%s204 + $0x4] sm:$0xf] %vm5619, %v5588
        %5622 = vst.msk [vmem:[%s204 + $0x8] sm:$0xf] %vm5619, %v5589
        %5623 = vst.msk [vmem:[%s204 + $0xc] sm:$0xf] %vm5619, %v5590
        %5624 = vst.msk [vmem:[%s204 + $0x10] sm:$0xf] %vm5619, %v5591
        %5625 = vst.msk [vmem:[%s204 + $0x14] sm:$0xf] %vm5619, %v5592
        %5626 = vst.msk [vmem:[%s204 + $0x18] sm:$0xf] %vm5619, %v5593
        %5627 = vst.msk [vmem:[%s204 + $0x1c] sm:$0xf] %vm5619, %v5594
        %5628 = vst.msk [vmem:[%s204 + $0x20] sm:$0xf] %vm5619, %v5595
        %5629 = vst.msk [vmem:[%s204 + $0x24] sm:$0xf] %vm5619, %v5596
        %5630 = vst.msk [vmem:[%s204 + $0x28] sm:$0xf] %vm5619, %v5597
        %5631 = vst.msk [vmem:[%s204 + $0x2c] sm:$0xf] %vm5619, %v5598
        %5632 = vst.msk [vmem:[%s204 + $0x30] sm:$0xf] %vm5619, %v5599
        %5633 = vst.msk [vmem:[%s204 + $0x34] sm:$0xf] %vm5619, %v5600
        %5634 = vst.msk [vmem:[%s204 + $0x38] sm:$0xf] %vm5619, %v5601
        %5635 = vst.msk [vmem:[%s204 + $0x3c] sm:$0xf] %vm5619, %v5602
        %5636 = vst.msk [vmem:[%s204 + $0x40] sm:$0xf] %vm5619, %v5603
        %5637 = vst.msk [vmem:[%s204 + $0x44] sm:$0xf] %vm5619, %v5604
        %5638 = vst.msk [vmem:[%s204 + $0x48] sm:$0xf] %vm5619, %v5605
        %5639 = vst.msk [vmem:[%s204 + $0x4c] sm:$0xf] %vm5619, %v5606
        %5640 = vst.msk [vmem:[%s204 + $0x50] sm:$0xf] %vm5619, %v5607
        %5641 = vst.msk [vmem:[%s204 + $0x54] sm:$0xf] %vm5619, %v5608
        %5642 = vst.msk [vmem:[%s204 + $0x58] sm:$0xf] %vm5619, %v5609
        %5643 = vst.msk [vmem:[%s204 + $0x5c] sm:$0xf] %vm5619, %v5610
        %5644 = vst.msk [vmem:[%s204 + $0x60] sm:$0xf] %vm5619, %v5611
        %5645 = vst.msk [vmem:[%s204 + $0x64] sm:$0xf] %vm5619, %v5612
        %5646 = vst.msk [vmem:[%s204 + $0x68] sm:$0xf] %vm5619, %v5613
        %5647 = vst.msk [vmem:[%s204 + $0x6c] sm:$0xf] %vm5619, %v5614
        %5648 = vst.msk [vmem:[%s204 + $0x70] sm:$0xf] %vm5619, %v5615
        %5649 = vst.msk [vmem:[%s204 + $0x74] sm:$0xf] %vm5619, %v5616
        %5650 = vst.msk [vmem:[%s204 + $0x78] sm:$0xf] %vm5619, %v5617
        %5651 = vst.msk [vmem:[%s204 + $0x7c] sm:$0xf] %vm5619, %v5618
        %s5652 = sand.u32 %s129, 1
        %s5653 = scalar_lea.sflag [#allocation5], %s5652
        %s5654 = sand.u32 %s129, 1
        %s5655 = smul.addr %s5654, 128
        %s5656 = scalar_lea.vmem [#allocation4], %s5655
        // Predicated region
        $region45: #{tpu_custom_call.1} parent=35 // pred_check
          %p5657 = pneg %p139
        $region46: #{tpu_custom_call.1} parent=35 // pred_check_branch
          %5659 = sbr.rel (%p5657) target = $region48
        $region47: #{tpu_custom_call.1} parent=35 // pred_region
          %s5660 = smul.u32 16, %s23
          %5662 = vsyncadd %s5653, 0
          %s5663 = smul.addr %s5660, 2
          %s5664 = smul.addr %s22, 32
          %s5665 = sadd.s32 %s5663, %s5664
          %s5666 = smul.addr %s5665, 4
          %s5667 = scalar_lea.hbm %s4, %s5666
          %s5668 = sshll.u32 %s5656, 4
          %s5669 = int_to_ptr.vmem [resolvable:$true] %s5668
          %s5670 = sshll.u32 %s5667, 4
          %s5671 = int_to_ptr.hbm [resolvable:$true] %s5670
          %5676 = dma.vmem_to_hbm [thread:$0]  %s5669, 2048, %s5671, %s5653, 64, 64, 4
        $region48: #{tpu_custom_call.1} parent=35 // pred_fallthru
          _
      $region36: #{tpu_custom_call.1} parent=5 // pred_fallthru
        _
      %p5677 = scmp.le.s32.totalorder 2, %s13
      // Predicated region
      $region49: #{tpu_custom_call.1} parent=5 // pred_check
        %p5678 = pneg %p5677
      $region50: #{tpu_custom_call.1} parent=5 // pred_check_branch
        %5680 = sbr.rel (%p5678) target = $region52
      $region51: #{tpu_custom_call.1} parent=5 // pred_region
        %s5681 = ssub.s32 %s13, 2
        // Predicated region
        $region53: #{tpu_custom_call.1} parent=51 // pred_check
          %p5682 = pneg %p145
        $region54: #{tpu_custom_call.1} parent=51 // pred_check_branch
          %5684 = sbr.rel (%p5682) target = $region56
        $region55: #{tpu_custom_call.1} parent=51 // pred_region
          %s5685 = sand.u32 %s130, 1
          %s5686 = scalar_lea.sflag [#allocation5], %s5685
          %s5687 = sand.u32 %s130, 1
          %s5688 = smul.addr %s5687, 128
          %s5689 = scalar_lea.vmem [#allocation4], %s5688
          %5691 = dma.done %s5686, 2048
        $region56: #{tpu_custom_call.1} parent=51 // pred_fallthru
          _
      $region52: #{tpu_custom_call.1} parent=5 // pred_fallthru
        _
    $region6: #{tpu_custom_call.1} parent=1 // loop_footer
      %s17 = sadd.s32 1, %s13
    $region7: #{tpu_custom_call.1} parent=1 // loop_footer_branch
      %12 = sbr.rel target = $region3
    $region8: #{tpu_custom_call.1} parent=1 // loop_exit
      _
    %5692 = vsyncpa [#allocation5], 1
    %s5693 = scalar_lea.sflag [#allocation5], 1
    %5694 = vsyncpa %s5693, 1

</llo_original>
